<compile_context>
chip_gen: v7x
topology: tpu7x:2x2x1
jax: 0.10.0
libtpu: 0.0.40
codegen_flags: <defaults>
</compile_context>

<pallas_src>
import math

import jax
import jax.numpy as jnp
from jax.experimental import pallas as pl
from jax.experimental.pallas import tpu as pltpu


# ----------------------------------------------------------------------------
# Fused BR kernel (one halo'd row tile per grid step)
# ----------------------------------------------------------------------------
def _make_br_kernel(n_row_tiles):
    def kernel(x_ref, w1_ref, b1_ref, w2_ref, b2_ref, o_ref, mid_ref):
        _, th4, wp, c = x_ref.shape          # halo'd input tile (1, TH+4, W+4, C)
        th, w = th4 - 4, wp - 4              # output tile rows / image width
        eh, ew = th + 2, w + 2               # conv1 extended tile (= conv2's halo)

        t = pl.program_id(0) % n_row_tiles   # row-tile index within the image

        # ---- conv1: pack all 9 taps into K -> ONE (EH*EW, 9C) x (9C, C) matmul
        taps = [x_ref[0, ki:ki + eh, kj:kj + ew, :]
                for ki in range(3) for kj in range(3)]
        col = jnp.concatenate(taps, axis=-1).reshape(eh * ew, 9 * c)   # bf16
        a = jnp.dot(col, w1_ref[...], preferred_element_type=jnp.float32)
        a = jnp.maximum(a + b1_ref[...], 0.0).reshape(eh, ew, c)       # f32 epilogue

        # conv2's padding=1 zero-pads conv1's OUTPUT: zero the ring positions of
        # the extended tile that lie outside the valid conv1 output range.
        row = jax.lax.broadcasted_iota(jnp.int32, (eh, ew, 1), 0)
        colm = jax.lax.broadcasted_iota(jnp.int32, (eh, ew, 1), 1)
        valid = (colm > 0) & (colm < ew - 1)
        valid = valid & ((row > 0) | (t > 0))
        valid = valid & ((row < eh - 1) | (t < n_row_tiles - 1))
        mid_ref[...] = jnp.where(valid, a, 0.0).astype(mid_ref.dtype)  # bf16 in VMEM

        # ---- conv2: im2col from the VMEM-resident intermediate -> ONE matmul
        taps2 = [mid_ref[ki:ki + th, kj:kj + w, :]
                 for ki in range(3) for kj in range(3)]
        col2 = jnp.concatenate(taps2, axis=-1).reshape(th * w, 9 * c)
        y = jnp.dot(col2, w2_ref[...], preferred_element_type=jnp.float32)
        y = y + b2_ref[...]

        # ---- residual add: identity = center of the halo'd input tile
        res = x_ref[0, 2:2 + th, 2:2 + w, :].reshape(th * w, c).astype(jnp.float32)
        o_ref[...] = (y + res).reshape(1, th * w, c).astype(o_ref.dtype)

    return kernel


def _pick_tile_h(h, target=8):
    """Largest divisor of h that is <= target (row-tile height)."""
    for th in range(min(target, h), 0, -1):
        if h % th == 0:
            return th
    return h


# ----------------------------------------------------------------------------
# Parameters (synthetic, deterministic) and forward wrapper
# ----------------------------------------------------------------------------
def init_br_params(key, out_c):
    """Conv2d(out_c, out_c, 3, padding=1) x 2, weights in HWIO layout + biases."""
    k1, k2, k3, k4 = jax.random.split(key, 4)
    std = 1.0 / math.sqrt(9 * out_c)
    return {
        "w1": jax.random.normal(k1, (3, 3, out_c, out_c), jnp.float32) * std,
        "b1": jax.random.uniform(k3, (out_c,), jnp.float32, -std, std),
        "w2": jax.random.normal(k2, (3, 3, out_c, out_c), jnp.float32) * std,
        "b2": jax.random.uniform(k4, (out_c,), jnp.float32, -std, std),
    }


def br_forward(params, x_nchw, tile_h=None):
    """BR.forward: x + conv2(relu(conv1(x))).  NCHW in / NCHW out."""
    x = jnp.transpose(x_nchw, (0, 2, 3, 1))                   # NCHW -> NHWC
    n, h, w, c = x.shape
    th = _pick_tile_h(h) if tile_h is None else tile_h
    assert h % th == 0, (h, th)
    n_tiles = h // th
    g = n * n_tiles
    eh, ew = th + 2, w + 2

    # bf16 activations into the kernel (half the HBM traffic; MXU runs bf16).
    xp = jnp.pad(x.astype(jnp.bfloat16), ((0, 0), (2, 2), (2, 2), (0, 0)))
    # Halo-overlapping row windows (pure layout glue): each grid step gets a
    # self-contained (TH+4, W+4, C) block that the BlockSpec double-buffers.
    win = jnp.stack([xp[:, t * th: t * th + th + 4] for t in range(n_tiles)],
                    axis=1).reshape(g, th + 4, w + 4, c)

    # K = 9*C im2col-packed weights (tap-major, channel-minor) in bf16.
    w1 = params["w1"].reshape(9 * c, c).astype(jnp.bfloat16)
    w2 = params["w2"].reshape(9 * c, c).astype(jnp.bfloat16)
    b1 = params["b1"].reshape(1, c).astype(jnp.float32)
    b2 = params["b2"].reshape(1, c).astype(jnp.float32)

    # Cost / VMEM budgeting for the chosen tile.
    flops = 2 * g * 9 * c * c * (eh * ew + th * w)
    bytes_accessed = (win.size * 2 + g * th * w * c * 4
                      + (w1.size + w2.size) * 2 + (b1.size + b2.size) * 4)
    in_blk = (th + 4) * (w + 4) * c * 2
    out_blk = th * w * c * 4
    col_blk = eh * ew * 9 * c * 2
    vmem_est = (2 * (in_blk + out_blk) + (w1.size + w2.size) * 2
                + eh * ew * c * 2 + 4 * col_blk)
    vmem_limit = int(min(max(4 * vmem_est, 32 * 1024 * 1024), 64 * 1024 * 1024))

    out = pl.pallas_call(
        _make_br_kernel(n_tiles),
        out_shape=jax.ShapeDtypeStruct((g, th * w, c), jnp.float32),
        grid=(g,),
        in_specs=[
            pl.BlockSpec((1, th + 4, w + 4, c), lambda i: (i, 0, 0, 0)),
            pl.BlockSpec((9 * c, c), lambda i: (0, 0)),
            pl.BlockSpec((1, c), lambda i: (0, 0)),
            pl.BlockSpec((9 * c, c), lambda i: (0, 0)),
            pl.BlockSpec((1, c), lambda i: (0, 0)),
        ],
        # Matmul-native (TH*W, C) 2-D output slab; NHWC recovered for free below.
        out_specs=pl.BlockSpec((1, th * w, c), lambda i: (i, 0, 0)),
        scratch_shapes=[pltpu.VMEM((eh, ew, c), jnp.bfloat16)],
        compiler_params=pltpu.CompilerParams(
            dimension_semantics=("parallel",),
            vmem_limit_bytes=vmem_limit),
        cost_estimate=pl.CostEstimate(
            flops=int(flops), transcendentals=0,
            bytes_accessed=int(bytes_accessed)),
    )(win, w1, b1, w2, b2)

    out = out.reshape(n, n_tiles, th, w, c).reshape(n, h, w, c)   # metadata only
    return jnp.transpose(out, (0, 3, 1, 2))                       # NHWC -> NCHW


# ----------------------------------------------------------------------------
# Pure-JAX reference (same bf16 matmul inputs + f32 accumulation)
# ----------------------------------------------------------------------------
def br_reference(params, x_nchw):
    x = jnp.transpose(x_nchw, (0, 2, 3, 1)).astype(jnp.bfloat16)
    dn = ("NHWC", "HWIO", "NHWC")
    a = jax.lax.conv_general_dilated(
        x, params["w1"].astype(jnp.bfloat16), (1, 1), "SAME",
        dimension_numbers=dn, preferred_element_type=jnp.float32)
    a = jnp.maximum(a + params["b1"], 0.0)
    y = jax.lax.conv_general_dilated(
        a.astype(jnp.bfloat16), params["w2"].astype(jnp.bfloat16), (1, 1),
        "SAME", dimension_numbers=dn, preferred_element_type=jnp.float32)
    y = y + params["b2"] + x.astype(jnp.float32)
    return jnp.transpose(y, (0, 3, 1, 2))


# ----------------------------------------------------------------------------
if __name__ == "__main__":
    N, C, H, W = 2, 32, 16, 16
    key = jax.random.PRNGKey(0)
    k_params, k_x = jax.random.split(key)
    params = init_br_params(k_params, C)
    x = jax.random.normal(k_x, (N, C, H, W), jnp.float32)

    br = jax.jit(lambda p, a: br_forward(p, a, tile_h=8))
    out = br(params, x)
    jax.block_until_ready(out)

    assert out.shape == (N, C, H, W), out.shape
    assert bool(jnp.all(jnp.isfinite(out)))
    ref = br_reference(params, x)
    max_err = float(jnp.max(jnp.abs(out - ref)))
    assert max_err < 5e-2, max_err
    print("KERNEL_OK")
</pallas_src>

<mosaic_0001>
module attributes {stable_mosaic.version = 11 : i64} {
  func.func @kernel(%arg0: i32, %arg1: memref<1x12x20x32xbf16, #tpu.memory_space<vmem>>, %arg2: memref<288x32xbf16, #tpu.memory_space<vmem>>, %arg3: memref<1x32xf32, #tpu.memory_space<vmem>>, %arg4: memref<288x32xbf16, #tpu.memory_space<vmem>>, %arg5: memref<1x32xf32, #tpu.memory_space<vmem>>, %arg6: memref<1x128x32xf32, #tpu.memory_space<vmem>>, %arg7: memref<10x18x32xbf16, #tpu.memory_space<vmem>>) attributes {dimension_semantics = [#tpu.dimension_semantics<parallel>], iteration_bounds = array<i64: 4>, scalar_prefetch = 0 : i64, scratch_operands = 1 : i64, tpu.core_type = #tpu.core_type<tc>, window_params = [{transform_indices = @transform_0, window_bounds = array<i64: 1, 12, 20, 32>}, {pipeline_mode = #tpu.pipeline_mode<synchronous>, transform_indices = @transform_1, window_bounds = array<i64: 288, 32>}, {pipeline_mode = #tpu.pipeline_mode<synchronous>, transform_indices = @transform_2, window_bounds = array<i64: 1, 32>}, {pipeline_mode = #tpu.pipeline_mode<synchronous>, transform_indices = @transform_3, window_bounds = array<i64: 288, 32>}, {pipeline_mode = #tpu.pipeline_mode<synchronous>, transform_indices = @transform_4, window_bounds = array<i64: 1, 32>}, {transform_indices = @transform_5, window_bounds = array<i64: 1, 128, 32>}]} {
    %c2_i32 = arith.constant 2 : i32
    %c0_i32 = arith.constant 0 : i32
    %0 = arith.cmpi eq, %c2_i32, %c0_i32 : i32
    %c1_i32 = arith.constant 1 : i32
    %1 = arith.select %0, %c1_i32, %c2_i32 : i32
    %2 = arith.remsi %arg0, %1 : i32
    %c0_i32_0 = arith.constant 0 : i32
    %3 = arith.cmpi ne, %2, %c0_i32_0 : i32
    %c0_i32_1 = arith.constant 0 : i32
    %4 = arith.cmpi slt, %2, %c0_i32_1 : i32
    %c0_i32_2 = arith.constant 0 : i32
    %5 = arith.cmpi slt, %1, %c0_i32_2 : i32
    %6 = arith.xori %4, %5 : i1
    %7 = arith.andi %6, %3 : i1
    %8 = arith.addi %2, %1 : i32
    %9 = arith.select %7, %8, %2 : i32
    %c0 = arith.constant 0 : index
    %c0_3 = arith.constant 0 : index
    %c0_4 = arith.constant 0 : index
    %c0_5 = arith.constant 0 : index
    %10 = vector.load %arg1[%c0, %c0_3, %c0_4, %c0_5] : memref<1x12x20x32xbf16, #tpu.memory_space<vmem>>, vector<1x10x18x32xbf16>
    %11 = vector.shape_cast %10 : vector<1x10x18x32xbf16> to vector<10x18x32xbf16>
    %c0_6 = arith.constant 0 : index
    %c0_7 = arith.constant 0 : index
    %c1 = arith.constant 1 : index
    %c0_8 = arith.constant 0 : index
    %12 = vector.load %arg1[%c0_6, %c0_7, %c1, %c0_8] : memref<1x12x20x32xbf16, #tpu.memory_space<vmem>>, vector<1x10x18x32xbf16>
    %13 = vector.shape_cast %12 : vector<1x10x18x32xbf16> to vector<10x18x32xbf16>
    %c0_9 = arith.constant 0 : index
    %c0_10 = arith.constant 0 : index
    %c2 = arith.constant 2 : index
    %c0_11 = arith.constant 0 : index
    %14 = vector.load %arg1[%c0_9, %c0_10, %c2, %c0_11] : memref<1x12x20x32xbf16, #tpu.memory_space<vmem>>, vector<1x10x18x32xbf16>
    %15 = vector.shape_cast %14 : vector<1x10x18x32xbf16> to vector<10x18x32xbf16>
    %c0_12 = arith.constant 0 : index
    %c1_13 = arith.constant 1 : index
    %c0_14 = arith.constant 0 : index
    %c0_15 = arith.constant 0 : index
    %16 = vector.load %arg1[%c0_12, %c1_13, %c0_14, %c0_15] : memref<1x12x20x32xbf16, #tpu.memory_space<vmem>>, vector<1x10x18x32xbf16>
    %17 = vector.shape_cast %16 : vector<1x10x18x32xbf16> to vector<10x18x32xbf16>
    %c0_16 = arith.constant 0 : index
    %c1_17 = arith.constant 1 : index
    %c1_18 = arith.constant 1 : index
    %c0_19 = arith.constant 0 : index
    %18 = vector.load %arg1[%c0_16, %c1_17, %c1_18, %c0_19] : memref<1x12x20x32xbf16, #tpu.memory_space<vmem>>, vector<1x10x18x32xbf16>
    %19 = vector.shape_cast %18 : vector<1x10x18x32xbf16> to vector<10x18x32xbf16>
    %c0_20 = arith.constant 0 : index
    %c1_21 = arith.constant 1 : index
    %c2_22 = arith.constant 2 : index
    %c0_23 = arith.constant 0 : index
    %20 = vector.load %arg1[%c0_20, %c1_21, %c2_22, %c0_23] : memref<1x12x20x32xbf16, #tpu.memory_space<vmem>>, vector<1x10x18x32xbf16>
    %21 = vector.shape_cast %20 : vector<1x10x18x32xbf16> to vector<10x18x32xbf16>
    %c0_24 = arith.constant 0 : index
    %c2_25 = arith.constant 2 : index
    %c0_26 = arith.constant 0 : index
    %c0_27 = arith.constant 0 : index
    %22 = vector.load %arg1[%c0_24, %c2_25, %c0_26, %c0_27] : memref<1x12x20x32xbf16, #tpu.memory_space<vmem>>, vector<1x10x18x32xbf16>
    %23 = vector.shape_cast %22 : vector<1x10x18x32xbf16> to vector<10x18x32xbf16>
    %c0_28 = arith.constant 0 : index
    %c2_29 = arith.constant 2 : index
    %c1_30 = arith.constant 1 : index
    %c0_31 = arith.constant 0 : index
    %24 = vector.load %arg1[%c0_28, %c2_29, %c1_30, %c0_31] : memref<1x12x20x32xbf16, #tpu.memory_space<vmem>>, vector<1x10x18x32xbf16>
    %25 = vector.shape_cast %24 : vector<1x10x18x32xbf16> to vector<10x18x32xbf16>
    %c0_32 = arith.constant 0 : index
    %c2_33 = arith.constant 2 : index
    %c2_34 = arith.constant 2 : index
    %c0_35 = arith.constant 0 : index
    %26 = vector.load %arg1[%c0_32, %c2_33, %c2_34, %c0_35] : memref<1x12x20x32xbf16, #tpu.memory_space<vmem>>, vector<1x10x18x32xbf16>
    %27 = vector.shape_cast %26 : vector<1x10x18x32xbf16> to vector<10x18x32xbf16>
    %28 = tpu.concatenate %11, %13, %15, %17, %19, %21, %23, %25, %27 in 2 : vector<10x18x32xbf16>, vector<10x18x32xbf16>, vector<10x18x32xbf16>, vector<10x18x32xbf16>, vector<10x18x32xbf16>, vector<10x18x32xbf16>, vector<10x18x32xbf16>, vector<10x18x32xbf16>, vector<10x18x32xbf16> -> vector<10x18x288xbf16>
    %29 = vector.shape_cast %28 : vector<10x18x288xbf16> to vector<180x288xbf16>
    %c0_36 = arith.constant 0 : index
    %c0_37 = arith.constant 0 : index
    %30 = vector.load %arg2[%c0_36, %c0_37] : memref<288x32xbf16, #tpu.memory_space<vmem>>, vector<288x32xbf16>
    %cst = arith.constant dense<0.000000e+00> : vector<180x32xf32>
    %31 = tpu.matmul %29, %30, %cst {dimension_numbers = #tpu.dot_dimension_numbers<[1], [0], [0], [1], [0, 0, 1, 1], [], []>} : vector<180x288xbf16>, vector<288x32xbf16>, vector<180x32xf32> -> vector<180x32xf32>
    %c0_38 = arith.constant 0 : index
    %c0_39 = arith.constant 0 : index
    %32 = vector.load %arg3[%c0_38, %c0_39] : memref<1x32xf32, #tpu.memory_space<vmem>>, vector<1x32xf32>
    %33 = vector.broadcast %32 : vector<1x32xf32> to vector<180x32xf32>
    %34 = arith.addf %31, %33 : vector<180x32xf32>
    %cst_40 = arith.constant 0.000000e+00 : f32
    %35 = vector.broadcast %cst_40 : f32 to vector<180x32xf32>
    %36 = arith.maximumf %34, %35 : vector<180x32xf32>
    %37 = vector.shape_cast %36 : vector<180x32xf32> to vector<10x18x32xf32>
    %38 = tpu.iota {dimensions = array<i32: 0>} : vector<10x18x1xi32>
    %39 = tpu.iota {dimensions = array<i32: 1>} : vector<10x18x1xi32>
    %c0_i32_41 = arith.constant 0 : i32
    %40 = vector.broadcast %c0_i32_41 : i32 to vector<10x18x1xi32>
    %41 = arith.cmpi sgt, %39, %40 : vector<10x18x1xi32>
    %c17_i32 = arith.constant 17 : i32
    %42 = vector.broadcast %c17_i32 : i32 to vector<10x18x1xi32>
    %43 = arith.cmpi slt, %39, %42 : vector<10x18x1xi32>
    %44 = arith.andi %41, %43 : vector<10x18x1xi1>
    %c0_i32_42 = arith.constant 0 : i32
    %45 = vector.broadcast %c0_i32_42 : i32 to vector<10x18x1xi32>
    %46 = arith.cmpi sgt, %38, %45 : vector<10x18x1xi32>
    %c0_i32_43 = arith.constant 0 : i32
    %47 = arith.cmpi sgt, %9, %c0_i32_43 : i32
    %48 = vector.broadcast %47 : i1 to vector<10x18x1xi1>
    %49 = arith.ori %46, %48 : vector<10x18x1xi1>
    %50 = arith.andi %44, %49 : vector<10x18x1xi1>
    %c9_i32 = arith.constant 9 : i32
    %51 = vector.broadcast %c9_i32 : i32 to vector<10x18x1xi32>
    %52 = arith.cmpi slt, %38, %51 : vector<10x18x1xi32>
    %c1_i32_44 = arith.constant 1 : i32
    %53 = arith.cmpi slt, %9, %c1_i32_44 : i32
    %54 = vector.broadcast %53 : i1 to vector<10x18x1xi1>
    %55 = arith.ori %52, %54 : vector<10x18x1xi1>
    %56 = arith.andi %50, %55 : vector<10x18x1xi1>
    %cst_45 = arith.constant 0.000000e+00 : f32
    %57 = vector.shape_cast %56 : vector<10x18x1xi1> to vector<10x18x1xi1>
    %58 = vector.broadcast %57 : vector<10x18x1xi1> to vector<10x18x32xi1>
    %59 = vector.broadcast %cst_45 : f32 to vector<10x18x32xf32>
    %60 = arith.select %58, %37, %59 : vector<10x18x32xi1>, vector<10x18x32xf32>
    %61 = arith.truncf %60 : vector<10x18x32xf32> to vector<10x18x32xbf16>
    %c0_46 = arith.constant 0 : index
    %c0_47 = arith.constant 0 : index
    %c0_48 = arith.constant 0 : index
    %62 = vector.load %arg7[%c0_46, %c0_47, %c0_48] : memref<10x18x32xbf16, #tpu.memory_space<vmem>>, vector<10x18x32xbf16>
    tpu.vector_store %arg7[%c0_46, %c0_47, %c0_48], %61 {strides = array<i32>} : memref<10x18x32xbf16, #tpu.memory_space<vmem>>, vector<10x18x32xbf16>,
    %c0_49 = arith.constant 0 : index
    %c0_50 = arith.constant 0 : index
    %c0_51 = arith.constant 0 : index
    %63 = vector.load %arg7[%c0_49, %c0_50, %c0_51] : memref<10x18x32xbf16, #tpu.memory_space<vmem>>, vector<8x16x32xbf16>
    %c0_52 = arith.constant 0 : index
    %c1_53 = arith.constant 1 : index
    %c0_54 = arith.constant 0 : index
    %64 = vector.load %arg7[%c0_52, %c1_53, %c0_54] : memref<10x18x32xbf16, #tpu.memory_space<vmem>>, vector<8x16x32xbf16>
    %c0_55 = arith.constant 0 : index
    %c2_56 = arith.constant 2 : index
    %c0_57 = arith.constant 0 : index
    %65 = vector.load %arg7[%c0_55, %c2_56, %c0_57] : memref<10x18x32xbf16, #tpu.memory_space<vmem>>, vector<8x16x32xbf16>
    %c1_58 = arith.constant 1 : index
    %c0_59 = arith.constant 0 : index
    %c0_60 = arith.constant 0 : index
    %66 = vector.load %arg7[%c1_58, %c0_59, %c0_60] : memref<10x18x32xbf16, #tpu.memory_space<vmem>>, vector<8x16x32xbf16>
    %c1_61 = arith.constant 1 : index
    %c1_62 = arith.constant 1 : index
    %c0_63 = arith.constant 0 : index
    %67 = vector.load %arg7[%c1_61, %c1_62, %c0_63] : memref<10x18x32xbf16, #tpu.memory_space<vmem>>, vector<8x16x32xbf16>
    %c1_64 = arith.constant 1 : index
    %c2_65 = arith.constant 2 : index
    %c0_66 = arith.constant 0 : index
    %68 = vector.load %arg7[%c1_64, %c2_65, %c0_66] : memref<10x18x32xbf16, #tpu.memory_space<vmem>>, vector<8x16x32xbf16>
    %c2_67 = arith.constant 2 : index
    %c0_68 = arith.constant 0 : index
    %c0_69 = arith.constant 0 : index
    %69 = vector.load %arg7[%c2_67, %c0_68, %c0_69] : memref<10x18x32xbf16, #tpu.memory_space<vmem>>, vector<8x16x32xbf16>
    %c2_70 = arith.constant 2 : index
    %c1_71 = arith.constant 1 : index
    %c0_72 = arith.constant 0 : index
    %70 = vector.load %arg7[%c2_70, %c1_71, %c0_72] : memref<10x18x32xbf16, #tpu.memory_space<vmem>>, vector<8x16x32xbf16>
    %c2_73 = arith.constant 2 : index
    %c2_74 = arith.constant 2 : index
    %c0_75 = arith.constant 0 : index
    %71 = vector.load %arg7[%c2_73, %c2_74, %c0_75] : memref<10x18x32xbf16, #tpu.memory_space<vmem>>, vector<8x16x32xbf16>
    %72 = tpu.concatenate %63, %64, %65, %66, %67, %68, %69, %70, %71 in 2 : vector<8x16x32xbf16>, vector<8x16x32xbf16>, vector<8x16x32xbf16>, vector<8x16x32xbf16>, vector<8x16x32xbf16>, vector<8x16x32xbf16>, vector<8x16x32xbf16>, vector<8x16x32xbf16>, vector<8x16x32xbf16> -> vector<8x16x288xbf16>
    %73 = vector.shape_cast %72 : vector<8x16x288xbf16> to vector<128x288xbf16>
    %c0_76 = arith.constant 0 : index
    %c0_77 = arith.constant 0 : index
    %74 = vector.load %arg4[%c0_76, %c0_77] : memref<288x32xbf16, #tpu.memory_space<vmem>>, vector<288x32xbf16>
    %cst_78 = arith.constant dense<0.000000e+00> : vector<128x32xf32>
    %75 = tpu.matmul %73, %74, %cst_78 {dimension_numbers = #tpu.dot_dimension_numbers<[1], [0], [0], [1], [0, 0, 1, 1], [], []>} : vector<128x288xbf16>, vector<288x32xbf16>, vector<128x32xf32> -> vector<128x32xf32>
    %c0_79 = arith.constant 0 : index
    %c0_80 = arith.constant 0 : index
    %76 = vector.load %arg5[%c0_79, %c0_80] : memref<1x32xf32, #tpu.memory_space<vmem>>, vector<1x32xf32>
    %77 = vector.broadcast %76 : vector<1x32xf32> to vector<128x32xf32>
    %78 = arith.addf %75, %77 : vector<128x32xf32>
    %c0_81 = arith.constant 0 : index
    %c2_82 = arith.constant 2 : index
    %c2_83 = arith.constant 2 : index
    %c0_84 = arith.constant 0 : index
    %79 = vector.load %arg1[%c0_81, %c2_82, %c2_83, %c0_84] : memref<1x12x20x32xbf16, #tpu.memory_space<vmem>>, vector<1x8x16x32xbf16>
    %80 = vector.shape_cast %79 : vector<1x8x16x32xbf16> to vector<8x16x32xbf16>
    %81 = vector.shape_cast %80 : vector<8x16x32xbf16> to vector<128x32xbf16>
    %82 = arith.extf %81 : vector<128x32xbf16> to vector<128x32xf32>
    %83 = arith.addf %78, %82 : vector<128x32xf32>
    %84 = vector.shape_cast %83 : vector<128x32xf32> to vector<1x128x32xf32>
    %c0_85 = arith.constant 0 : index
    %c0_86 = arith.constant 0 : index
    %c0_87 = arith.constant 0 : index
    %85 = vector.load %arg6[%c0_85, %c0_86, %c0_87] : memref<1x128x32xf32, #tpu.memory_space<vmem>>, vector<1x128x32xf32>
    tpu.vector_store %arg6[%c0_85, %c0_86, %c0_87], %84 {strides = array<i32>} : memref<1x128x32xf32, #tpu.memory_space<vmem>>, vector<1x128x32xf32>,
    return
  }
  func.func @transform_0(%arg0: i32) -> (i32, i32, i32, i32) {
    %c0_i32 = arith.constant 0 : i32
    %c0_i32_0 = arith.constant 0 : i32
    %c0_i32_1 = arith.constant 0 : i32
    %c0_i32_2 = arith.constant 0 : i32
    return %arg0, %c0_i32, %c0_i32_0, %c0_i32_1 : i32, i32, i32, i32
  }
  func.func @transform_1(%arg0: i32) -> (i32, i32) {
    %c0_i32 = arith.constant 0 : i32
    %c0_i32_0 = arith.constant 0 : i32
    %c0_i32_1 = arith.constant 0 : i32
    return %c0_i32, %c0_i32_0 : i32, i32
  }
  func.func @transform_2(%arg0: i32) -> (i32, i32) {
    %c0_i32 = arith.constant 0 : i32
    %c0_i32_0 = arith.constant 0 : i32
    %c0_i32_1 = arith.constant 0 : i32
    return %c0_i32, %c0_i32_0 : i32, i32
  }
  func.func @transform_3(%arg0: i32) -> (i32, i32) {
    %c0_i32 = arith.constant 0 : i32
    %c0_i32_0 = arith.constant 0 : i32
    %c0_i32_1 = arith.constant 0 : i32
    return %c0_i32, %c0_i32_0 : i32, i32
  }
  func.func @transform_4(%arg0: i32) -> (i32, i32) {
    %c0_i32 = arith.constant 0 : i32
    %c0_i32_0 = arith.constant 0 : i32
    %c0_i32_1 = arith.constant 0 : i32
    return %c0_i32, %c0_i32_0 : i32, i32
  }
  func.func @transform_5(%arg0: i32) -> (i32, i32, i32) {
    %c0_i32 = arith.constant 0 : i32
    %c0_i32_0 = arith.constant 0 : i32
    %c0_i32_1 = arith.constant 0 : i32
    return %arg0, %c0_i32, %c0_i32_0 : i32, i32, i32
  }
}

</mosaic_0001>

<llo_original>
// kernel: _lambda_.1
$region0: #{_lambda_.1}
  #allocation0 [shape = 'u32[]', space=smem, size = 0x4, offset = 0x4, fixed_abs, tag = 'smem constant byte address 0x4 - core index']
  #allocation1 [shape = 'u32[144,128]{1,0:T(1,128)}', space=vmem, size = 0x12000, scoped, tag = 'internal scratch']
  #allocation2 [shape = 'bf16[10,18,32]{2,1,0:T(8,128)(2,1)}', space=vmem, size = 0xf000, scoped, tag = 'scratch operand']
  %s0 = inlined_call_operand.vmem [shape: bf16[4,12,20,32], index: 0, kind: input, shape index: {}]
  %s1 = inlined_call_operand.vmem [shape: bf16[288,32], index: 1, kind: input, shape index: {}]
  %s2 = inlined_call_operand.vmem [shape: f32[1,32], index: 2, kind: input, shape index: {}]
  %s3 = inlined_call_operand.vmem [shape: bf16[288,32], index: 3, kind: input, shape index: {}]
  %s4 = inlined_call_operand.vmem [shape: f32[1,32], index: 4, kind: input, shape index: {}]
  %s5 = inlined_call_operand.hbm [shape: f32[4,128,32], index: 5, kind: output, shape index: {}]
  %s6 = sld [smem:[#allocation0]]
  $region53: #{_lambda_.1} parent=0
    _
  %s8 = ssub.s32 1, %s6
  %s9 = scalar_select 0, %s8, %s6
  $region1: #{_lambda_.1} parent=0
    #allocation3 [shape = 'u8[131072]{0}', space=vmem, size = 0x20000, scoped, tag = 'output window, operand 0']
    #allocation4 [shape = 's32[2]{0}', space=sflag, size = 0x8, scoped, tag = 'scoped memory for _lambda_.1']
    %10 = vsyncpa [#allocation4], 0
    %s11 = scalar_lea.sflag [#allocation4], 1
    %12 = vsyncpa %s11, 0
    loop: start=0, step=1, limit=6
    $region2: #{_lambda_.1} parent=1 // loop_pre_header
      _
    $region3: #{_lambda_.1} parent=1 // loop_header
      %s14 = sphi 0, %s18
      %p15 = scmp.ge.s32.totalorder %s14, 6
      %s24 = sphi 0, %s26
      %s27 = sphi 0, %s24
      %s28 = sphi 0, %s27
      %s44 = sphi 0, %s28
      %s48 = sphi 0, %s48
      %s50 = sphi 0, %s48
      %s51 = sphi 0, %s50
      %s65 = sphi 0, %s51
      %s69 = sphi 0, %s69
      %s71 = sphi 0, %s69
      %s72 = sphi 0, %s71
      %s86 = sphi 0, %s72
      %s90 = sphi 0, %s90
      %s92 = sphi 0, %s90
      %s93 = sphi 0, %s92
      %s107 = sphi 0, %s93
      %s111 = sphi 0, %s111
      %s113 = sphi 0, %s111
      %s114 = sphi 0, %s113
      %s128 = sphi 0, %s114
      %s134 = sphi 0, %s136
      %s137 = sphi 0, %s134
      %s138 = sphi 0, %s137
      %s154 = sphi 0, %s138
    $region4: #{_lambda_.1} parent=1 // loop_header_branch
      %17 = sbr.rel (%p15) target = $region8
    $region5: #{_lambda_.1} parent=1 // loop_body
      %s19 = ssub.s32 %s14, 1
      %s20 = ssub.s32 %s14, 2
      %s21 = sadd.s32 %s14, 1
      %s22 = ssub.s32 %s14, %s21
      %p23 = scmp.eq.s32.totalorder %s22, 0
      %s25 = sadd.s32 %s24, 1
      %s26 = scalar_select %p23, %s24, %s25
      %p29 = pneg %p23
      %p30 = scmp.eq.s32.totalorder %s14, 3
      %p31 = por %p29, %p30
      %p32 = scmp.ne.s32.totalorder %s24, %s27
      %p33 = scmp.eq.s32.totalorder %s14, 0
      %p34 = por %p32, %p33
      %p35 = scmp.ne.s32.totalorder %s24, %s27
      %p36 = scmp.eq.s32.totalorder %s19, 3
      %p37 = por %p35, %p36
      %p38 = scmp.ne.s32.totalorder %s27, %s28
      %p39 = scmp.eq.s32.totalorder %s19, 0
      %p40 = por %p38, %p39
      %p41 = scmp.ne.s32.totalorder %s27, %s28
      %p42 = scmp.eq.s32.totalorder %s20, 3
      %p43 = por %p41, %p42
      %p45 = scmp.ne.s32.totalorder %s28, %s44
      %p46 = scmp.eq.s32.totalorder %s20, 0
      %p47 = por %p45, %p46
      %s49 = sadd.s32 %s48, 1
      %p52 = scmp.eq.s32.totalorder %s14, 3
      %p53 = scmp.ne.s32.totalorder %s48, %s50
      %p54 = scmp.eq.s32.totalorder %s14, 0
      %p55 = por %p53, %p54
      %p56 = scmp.ne.s32.totalorder %s48, %s50
      %p57 = scmp.eq.s32.totalorder %s19, 3
      %p58 = por %p56, %p57
      %p59 = scmp.ne.s32.totalorder %s50, %s51
      %p60 = scmp.eq.s32.totalorder %s19, 0
      %p61 = por %p59, %p60
      %p62 = scmp.ne.s32.totalorder %s50, %s51
      %p63 = scmp.eq.s32.totalorder %s20, 3
      %p64 = por %p62, %p63
      %p66 = scmp.ne.s32.totalorder %s51, %s65
      %p67 = scmp.eq.s32.totalorder %s20, 0
      %p68 = por %p66, %p67
      %s70 = sadd.s32 %s69, 1
      %p73 = scmp.eq.s32.totalorder %s14, 3
      %p74 = scmp.ne.s32.totalorder %s69, %s71
      %p75 = scmp.eq.s32.totalorder %s14, 0
      %p76 = por %p74, %p75
      %p77 = scmp.ne.s32.totalorder %s69, %s71
      %p78 = scmp.eq.s32.totalorder %s19, 3
      %p79 = por %p77, %p78
      %p80 = scmp.ne.s32.totalorder %s71, %s72
      %p81 = scmp.eq.s32.totalorder %s19, 0
      %p82 = por %p80, %p81
      %p83 = scmp.ne.s32.totalorder %s71, %s72
      %p84 = scmp.eq.s32.totalorder %s20, 3
      %p85 = por %p83, %p84
      %p87 = scmp.ne.s32.totalorder %s72, %s86
      %p88 = scmp.eq.s32.totalorder %s20, 0
      %p89 = por %p87, %p88
      %s91 = sadd.s32 %s90, 1
      %p94 = scmp.eq.s32.totalorder %s14, 3
      %p95 = scmp.ne.s32.totalorder %s90, %s92
      %p96 = scmp.eq.s32.totalorder %s14, 0
      %p97 = por %p95, %p96
      %p98 = scmp.ne.s32.totalorder %s90, %s92
      %p99 = scmp.eq.s32.totalorder %s19, 3
      %p100 = por %p98, %p99
      %p101 = scmp.ne.s32.totalorder %s92, %s93
      %p102 = scmp.eq.s32.totalorder %s19, 0
      %p103 = por %p101, %p102
      %p104 = scmp.ne.s32.totalorder %s92, %s93
      %p105 = scmp.eq.s32.totalorder %s20, 3
      %p106 = por %p104, %p105
      %p108 = scmp.ne.s32.totalorder %s93, %s107
      %p109 = scmp.eq.s32.totalorder %s20, 0
      %p110 = por %p108, %p109
      %s112 = sadd.s32 %s111, 1
      %p115 = scmp.eq.s32.totalorder %s14, 3
      %p116 = scmp.ne.s32.totalorder %s111, %s113
      %p117 = scmp.eq.s32.totalorder %s14, 0
      %p118 = por %p116, %p117
      %p119 = scmp.ne.s32.totalorder %s111, %s113
      %p120 = scmp.eq.s32.totalorder %s19, 3
      %p121 = por %p119, %p120
      %p122 = scmp.ne.s32.totalorder %s113, %s114
      %p123 = scmp.eq.s32.totalorder %s19, 0
      %p124 = por %p122, %p123
      %p125 = scmp.ne.s32.totalorder %s113, %s114
      %p126 = scmp.eq.s32.totalorder %s20, 3
      %p127 = por %p125, %p126
      %p129 = scmp.ne.s32.totalorder %s114, %s128
      %p130 = scmp.eq.s32.totalorder %s20, 0
      %p131 = por %p129, %p130
      %s132 = ssub.s32 %s14, %s21
      %p133 = scmp.eq.s32.totalorder %s132, 0
      %s135 = sadd.s32 %s134, 1
      %s136 = scalar_select %p133, %s134, %s135
      %p139 = pneg %p133
      %p140 = scmp.eq.s32.totalorder %s14, 3
      %p141 = por %p139, %p140
      %p142 = scmp.ne.s32.totalorder %s134, %s137
      %p143 = scmp.eq.s32.totalorder %s14, 0
      %p144 = por %p142, %p143
      %p145 = scmp.ne.s32.totalorder %s134, %s137
      %p146 = scmp.eq.s32.totalorder %s19, 3
      %p147 = por %p145, %p146
      %p148 = scmp.ne.s32.totalorder %s137, %s138
      %p149 = scmp.eq.s32.totalorder %s19, 0
      %p150 = por %p148, %p149
      %p151 = scmp.ne.s32.totalorder %s137, %s138
      %p152 = scmp.eq.s32.totalorder %s20, 3
      %p153 = por %p151, %p152
      %p155 = scmp.ne.s32.totalorder %s138, %s154
      %p156 = scmp.eq.s32.totalorder %s20, 0
      %p157 = por %p155, %p156
      %p158 = scmp.le.s32.totalorder 1, %s14
      %p159 = scmp.lt.s32.totalorder %s14, 5
      %p160 = pnand %p158, %p159
      %p161 = pneg %p160
      // Predicated region
      $region9: #{_lambda_.1} parent=5 // pred_check
        _
      $region10: #{_lambda_.1} parent=5 // pred_check_branch
        %163 = sbr.rel (%p160) target = $region12
      $region11: #{_lambda_.1} parent=5 // pred_region
        %s164 = ssub.s32 %s14, 1
        // Predicated region
        $region13: #{_lambda_.1} parent=11 // pred_check
          %p165 = pneg %p61
        $region14: #{_lambda_.1} parent=11 // pred_check_branch
          %167 = sbr.rel (%p165) target = $region16
        $region15: #{_lambda_.1} parent=11 // pred_region
          _
        $region16: #{_lambda_.1} parent=11 // pred_fallthru
          _
        // Predicated region
        $region17: #{_lambda_.1} parent=11 // pred_check
          %p168 = pneg %p82
        $region18: #{_lambda_.1} parent=11 // pred_check_branch
          %170 = sbr.rel (%p168) target = $region20
        $region19: #{_lambda_.1} parent=11 // pred_region
          _
        $region20: #{_lambda_.1} parent=11 // pred_fallthru
          _
        // Predicated region
        $region21: #{_lambda_.1} parent=11 // pred_check
          %p171 = pneg %p103
        $region22: #{_lambda_.1} parent=11 // pred_check_branch
          %173 = sbr.rel (%p171) target = $region24
        $region23: #{_lambda_.1} parent=11 // pred_region
          _
        $region24: #{_lambda_.1} parent=11 // pred_fallthru
          _
        // Predicated region
        $region25: #{_lambda_.1} parent=11 // pred_check
          %p174 = pneg %p124
        $region26: #{_lambda_.1} parent=11 // pred_check_branch
          %176 = sbr.rel (%p174) target = $region28
        $region27: #{_lambda_.1} parent=11 // pred_region
          _
        $region28: #{_lambda_.1} parent=11 // pred_fallthru
          _
      $region12: #{_lambda_.1} parent=5 // pred_fallthru
        _
      %p177 = scmp.lt.s32.totalorder %s14, 4
      // Predicated region
      $region29: #{_lambda_.1} parent=5 // pred_check
        %p178 = pneg %p177
      $region30: #{_lambda_.1} parent=5 // pred_check_branch
        %180 = sbr.rel (%p178) target = $region32
      $region31: #{_lambda_.1} parent=5 // pred_region
        // Predicated region
        $region33: #{_lambda_.1} parent=31 // pred_check
          %p181 = pneg %p34
        $region34: #{_lambda_.1} parent=31 // pred_check_branch
          %183 = sbr.rel (%p181) target = $region36
        $region35: #{_lambda_.1} parent=31 // pred_region
          %p184 = scmp.lt.s32.totalorder %s14, 3
          %s185 = scalar_select %p184, %s14, 3
          %s186 = smul.addr %s185, 36
          %s187 = smul.addr %s186, 4
          %s188 = scalar_lea.vmem %s0, %s187
        $region36: #{_lambda_.1} parent=31 // pred_fallthru
          _
      $region32: #{_lambda_.1} parent=5 // pred_fallthru
        _
      %p189 = scmp.le.s32.totalorder 1, %s14
      %p190 = scmp.lt.s32.totalorder %s14, 5
      %p191 = pnand %p189, %p190
      %p192 = pneg %p191
      // Predicated region
      $region37: #{_lambda_.1} parent=5 // pred_check
        _
      $region38: #{_lambda_.1} parent=5 // pred_check_branch
        %194 = sbr.rel (%p191) target = $region40
      $region39: #{_lambda_.1} parent=5 // pred_region
        %s195 = ssub.s32 %s14, 1
        %p196 = scmp.lt.s32.totalorder %s19, 3
        %s197 = scalar_select %p196, %s19, 3
        %s198 = smul.addr %s197, 36
        %s199 = smul.addr %s198, 4
        %s200 = scalar_lea.vmem %s0, %s199
        %p201 = pneg %p40
        %p202 = pneg %p37
        %p203 = pneg %p61
        %p204 = pneg %p58
        %p205 = pneg %p82
        %p206 = pneg %p79
        %p207 = pneg %p103
        %p208 = pneg %p100
        %p209 = pneg %p124
        %p210 = pneg %p121
        %p211 = pneg %p150
        %p212 = pneg %p147
        %s213 = sand.u32 %s137, 1
        %s214 = scalar_lea.sflag [#allocation4], %s213
        %s215 = sand.u32 %s137, 1
        %s216 = smul.addr %s215, 128
        %s217 = scalar_lea.vmem [#allocation3], %s216
        %p218 = scmp.lt.s32.totalorder %s19, 3
        %s219 = scalar_select %p218, %s19, 3
        %s220 = smul.addr %s219, 36
        %s221 = smul.addr %s220, 4
        %s222 = scalar_lea.vmem %s0, %s221
        %p224 = scmp.lt.s32.totalorder %s19, 0
        %s225 = ssub.s32 0, %s19
        %s226 = scalar_select %p224, %s225, %s19
        %s227 = sand.u32 %s226, 1
        %s228 = ssub.s32 0, %s227
        %s229 = scalar_select %p224, %s228, %s227
        %p230 = scmp.ne.s32.totalorder %s229, 0
        %p231 = scmp.lt.s32.totalorder %s229, 0
        %p232 = pnand %p231, %p230
        %p233 = pneg %p232
        %s234 = sadd.s32 %s229, 2
        %s235 = scalar_select %p233, %s234, %s229
        %v236 = vld [vmem:[%s222] sm:$0xf]
        %v237 = vld [vmem:[%s222 + $0x4] sm:$0xf]
        %v238 = vld [vmem:[%s222 + $0x8] sm:$0x1]
        %v239 = vld [vmem:[%s222 + $0xc] sm:$0xf]
        %v240 = vld [vmem:[%s222 + $0x10] sm:$0xf]
        %v241 = vld [vmem:[%s222 + $0x14] sm:$0x1]
        %v242 = vld [vmem:[%s222 + $0x18] sm:$0xf]
        %v243 = vld [vmem:[%s222 + $0x1c] sm:$0xf]
        %v244 = vld [vmem:[%s222 + $0x20] sm:$0x1]
        %v245 = vld [vmem:[%s222 + $0x24] sm:$0xf]
        %v246 = vld [vmem:[%s222 + $0x28] sm:$0xf]
        %v247 = vld [vmem:[%s222 + $0x2c] sm:$0x1]
        %v248 = vld [vmem:[%s222 + $0x30] sm:$0xf]
        %v249 = vld [vmem:[%s222 + $0x34] sm:$0xf]
        %v250 = vld [vmem:[%s222 + $0x38] sm:$0x1]
        %v251 = vld [vmem:[%s222 + $0x3c] sm:$0xf]
        %v252 = vld [vmem:[%s222 + $0x40] sm:$0xf]
        %v253 = vld [vmem:[%s222 + $0x44] sm:$0x1]
        %v254 = vld [vmem:[%s222 + $0x48] sm:$0xf]
        %v255 = vld [vmem:[%s222 + $0x4c] sm:$0xf]
        %v256 = vld [vmem:[%s222 + $0x50] sm:$0x1]
        %v257 = vld [vmem:[%s222 + $0x54] sm:$0xf]
        %v258 = vld [vmem:[%s222 + $0x58] sm:$0xf]
        %v259 = vld [vmem:[%s222 + $0x5c] sm:$0x1]
        %v260 = vld [vmem:[%s222 + $0x60] sm:$0xf]
        %v261 = vld [vmem:[%s222 + $0x64] sm:$0xf]
        %v262 = vld [vmem:[%s222 + $0x68] sm:$0x1]
        %v263 = vld [vmem:[%s222 + $0x6c] sm:$0xf]
        %v264 = vld [vmem:[%s222 + $0x70] sm:$0xf]
        %v265 = vld [vmem:[%s222 + $0x74] sm:$0x1]
        %v266 = vld [vmem:[%s222 + $0x8] sm:$0x3]
        %v267 = vld [vmem:[%s222 + $0x14] sm:$0x3]
        %v268 = vld [vmem:[%s222 + $0x20] sm:$0x3]
        %v269 = vld [vmem:[%s222 + $0x2c] sm:$0x3]
        %v270 = vld [vmem:[%s222 + $0x38] sm:$0x3]
        %v271 = vld [vmem:[%s222 + $0x44] sm:$0x3]
        %v272 = vld [vmem:[%s222 + $0x50] sm:$0x3]
        %v273 = vld [vmem:[%s222 + $0x5c] sm:$0x3]
        %v274 = vld [vmem:[%s222 + $0x68] sm:$0x3]
        %v275 = vld [vmem:[%s222 + $0x74] sm:$0x3]
        %v276 = vld [vmem:[%s222] sm:$0xe]
        %v277 = vld [vmem:[%s222 + $0xc] sm:$0xe]
        %v278 = vld [vmem:[%s222 + $0x18] sm:$0xe]
        %v279 = vld [vmem:[%s222 + $0x24] sm:$0xe]
        %v280 = vld [vmem:[%s222 + $0x30] sm:$0xe]
        %v281 = vld [vmem:[%s222 + $0x3c] sm:$0xe]
        %v282 = vld [vmem:[%s222 + $0x48] sm:$0xe]
        %v283 = vld [vmem:[%s222 + $0x54] sm:$0xe]
        %v284 = vld [vmem:[%s222 + $0x60] sm:$0xe]
        %v285 = vld [vmem:[%s222 + $0x6c] sm:$0xe]
        %s286 = scalar_lea.vmem %s222, 12
        %v287 = vld [vmem:[%s286] sm:$0xf]
        %v288 = vld [vmem:[%s286 + $0x4] sm:$0xf]
        %v289 = vld [vmem:[%s286 + $0x8] sm:$0x1]
        %v290 = vld [vmem:[%s286 + $0xc] sm:$0xf]
        %v291 = vld [vmem:[%s286 + $0x10] sm:$0xf]
        %v292 = vld [vmem:[%s286 + $0x14] sm:$0x1]
        %v293 = vld [vmem:[%s286 + $0x18] sm:$0xf]
        %v294 = vld [vmem:[%s286 + $0x1c] sm:$0xf]
        %v295 = vld [vmem:[%s286 + $0x20] sm:$0x1]
        %v296 = vld [vmem:[%s286 + $0x24] sm:$0xf]
        %v297 = vld [vmem:[%s286 + $0x28] sm:$0xf]
        %v298 = vld [vmem:[%s286 + $0x2c] sm:$0x1]
        %v299 = vld [vmem:[%s286 + $0x30] sm:$0xf]
        %v300 = vld [vmem:[%s286 + $0x34] sm:$0xf]
        %v301 = vld [vmem:[%s286 + $0x38] sm:$0x1]
        %v302 = vld [vmem:[%s286 + $0x3c] sm:$0xf]
        %v303 = vld [vmem:[%s286 + $0x40] sm:$0xf]
        %v304 = vld [vmem:[%s286 + $0x44] sm:$0x1]
        %v305 = vld [vmem:[%s286 + $0x48] sm:$0xf]
        %v306 = vld [vmem:[%s286 + $0x4c] sm:$0xf]
        %v307 = vld [vmem:[%s286 + $0x50] sm:$0x1]
        %v308 = vld [vmem:[%s286 + $0x54] sm:$0xf]
        %v309 = vld [vmem:[%s286 + $0x58] sm:$0xf]
        %v310 = vld [vmem:[%s286 + $0x5c] sm:$0x1]
        %v311 = vld [vmem:[%s286 + $0x60] sm:$0xf]
        %v312 = vld [vmem:[%s286 + $0x64] sm:$0xf]
        %v313 = vld [vmem:[%s286 + $0x68] sm:$0x1]
        %v314 = vld [vmem:[%s286 + $0x6c] sm:$0xf]
        %v315 = vld [vmem:[%s286 + $0x70] sm:$0xf]
        %v316 = vld [vmem:[%s286 + $0x74] sm:$0x1]
        %v317 = vld [vmem:[%s286 + $0x8] sm:$0x3]
        %v318 = vld [vmem:[%s286 + $0x14] sm:$0x3]
        %v319 = vld [vmem:[%s286 + $0x20] sm:$0x3]
        %v320 = vld [vmem:[%s286 + $0x2c] sm:$0x3]
        %v321 = vld [vmem:[%s286 + $0x38] sm:$0x3]
        %v322 = vld [vmem:[%s286 + $0x44] sm:$0x3]
        %v323 = vld [vmem:[%s286 + $0x50] sm:$0x3]
        %v324 = vld [vmem:[%s286 + $0x5c] sm:$0x3]
        %v325 = vld [vmem:[%s286 + $0x68] sm:$0x3]
        %v326 = vld [vmem:[%s286 + $0x74] sm:$0x3]
        %v327 = vld [vmem:[%s286] sm:$0xe]
        %v328 = vld [vmem:[%s286 + $0xc] sm:$0xe]
        %v329 = vld [vmem:[%s286 + $0x18] sm:$0xe]
        %v330 = vld [vmem:[%s286 + $0x24] sm:$0xe]
        %v331 = vld [vmem:[%s286 + $0x30] sm:$0xe]
        %v332 = vld [vmem:[%s286 + $0x3c] sm:$0xe]
        %v333 = vld [vmem:[%s286 + $0x48] sm:$0xe]
        %v334 = vld [vmem:[%s286 + $0x54] sm:$0xe]
        %v335 = vld [vmem:[%s286 + $0x60] sm:$0xe]
        %v336 = vld [vmem:[%s286 + $0x6c] sm:$0xe]
        %s337 = scalar_lea.vmem %s222, 24
        %v338 = vld [vmem:[%s337] sm:$0xf]
        %v339 = vld [vmem:[%s337 + $0x4] sm:$0xf]
        %v340 = vld [vmem:[%s337 + $0x8] sm:$0x1]
        %v341 = vld [vmem:[%s337 + $0xc] sm:$0xf]
        %v342 = vld [vmem:[%s337 + $0x10] sm:$0xf]
        %v343 = vld [vmem:[%s337 + $0x14] sm:$0x1]
        %v344 = vld [vmem:[%s337 + $0x18] sm:$0xf]
        %v345 = vld [vmem:[%s337 + $0x1c] sm:$0xf]
        %v346 = vld [vmem:[%s337 + $0x20] sm:$0x1]
        %v347 = vld [vmem:[%s337 + $0x24] sm:$0xf]
        %v348 = vld [vmem:[%s337 + $0x28] sm:$0xf]
        %v349 = vld [vmem:[%s337 + $0x2c] sm:$0x1]
        %v350 = vld [vmem:[%s337 + $0x30] sm:$0xf]
        %v351 = vld [vmem:[%s337 + $0x34] sm:$0xf]
        %v352 = vld [vmem:[%s337 + $0x38] sm:$0x1]
        %v353 = vld [vmem:[%s337 + $0x3c] sm:$0xf]
        %v354 = vld [vmem:[%s337 + $0x40] sm:$0xf]
        %v355 = vld [vmem:[%s337 + $0x44] sm:$0x1]
        %v356 = vld [vmem:[%s337 + $0x48] sm:$0xf]
        %v357 = vld [vmem:[%s337 + $0x4c] sm:$0xf]
        %v358 = vld [vmem:[%s337 + $0x50] sm:$0x1]
        %v359 = vld [vmem:[%s337 + $0x54] sm:$0xf]
        %v360 = vld [vmem:[%s337 + $0x58] sm:$0xf]
        %v361 = vld [vmem:[%s337 + $0x5c] sm:$0x1]
        %v362 = vld [vmem:[%s337 + $0x60] sm:$0xf]
        %v363 = vld [vmem:[%s337 + $0x64] sm:$0xf]
        %v364 = vld [vmem:[%s337 + $0x68] sm:$0x1]
        %v365 = vld [vmem:[%s337 + $0x6c] sm:$0xf]
        %v366 = vld [vmem:[%s337 + $0x70] sm:$0xf]
        %v367 = vld [vmem:[%s337 + $0x74] sm:$0x1]
        %v368 = vld [vmem:[%s337 + $0x8] sm:$0x3]
        %v369 = vld [vmem:[%s337 + $0x14] sm:$0x3]
        %v370 = vld [vmem:[%s337 + $0x20] sm:$0x3]
        %v371 = vld [vmem:[%s337 + $0x2c] sm:$0x3]
        %v372 = vld [vmem:[%s337 + $0x38] sm:$0x3]
        %v373 = vld [vmem:[%s337 + $0x44] sm:$0x3]
        %v374 = vld [vmem:[%s337 + $0x50] sm:$0x3]
        %v375 = vld [vmem:[%s337 + $0x5c] sm:$0x3]
        %v376 = vld [vmem:[%s337 + $0x68] sm:$0x3]
        %v377 = vld [vmem:[%s337 + $0x74] sm:$0x3]
        %v378 = vld [vmem:[%s337] sm:$0xe]
        %v379 = vld [vmem:[%s337 + $0xc] sm:$0xe]
        %v380 = vld [vmem:[%s337 + $0x18] sm:$0xe]
        %v381 = vld [vmem:[%s337 + $0x24] sm:$0xe]
        %v382 = vld [vmem:[%s337 + $0x30] sm:$0xe]
        %v383 = vld [vmem:[%s337 + $0x3c] sm:$0xe]
        %v384 = vld [vmem:[%s337 + $0x48] sm:$0xe]
        %v385 = vld [vmem:[%s337 + $0x54] sm:$0xe]
        %v386 = vld [vmem:[%s337 + $0x60] sm:$0xe]
        %v387 = vld [vmem:[%s337 + $0x6c] sm:$0xe]
        %v418 = vunpack.c.l.b16 %v236
        %v419 = vunpack.c.l.b16 %v237
        %v420 = vunpack.c.l.b16 %v238
        %v421 = vunpack.c.l.b16 %v239
        %v422 = vunpack.c.l.b16 %v240
        %v423 = vunpack.c.l.b16 %v241
        %v424 = vunpack.c.l.b16 %v242
        %v425 = vunpack.c.l.b16 %v243
        %v426 = vunpack.c.l.b16 %v244
        %v427 = vunpack.c.l.b16 %v245
        %v428 = vunpack.c.l.b16 %v246
        %v429 = vunpack.c.l.b16 %v247
        %v430 = vunpack.c.l.b16 %v248
        %v431 = vunpack.c.l.b16 %v249
        %v432 = vunpack.c.l.b16 %v250
        %v433 = vunpack.c.l.b16 %v251
        %v434 = vunpack.c.l.b16 %v252
        %v435 = vunpack.c.l.b16 %v253
        %v436 = vunpack.c.l.b16 %v254
        %v437 = vunpack.c.l.b16 %v255
        %v438 = vunpack.c.l.b16 %v256
        %v439 = vunpack.c.l.b16 %v257
        %v440 = vunpack.c.l.b16 %v258
        %v441 = vunpack.c.l.b16 %v259
        %v442 = vunpack.c.l.b16 %v260
        %v443 = vunpack.c.l.b16 %v261
        %v444 = vunpack.c.l.b16 %v262
        %v445 = vunpack.c.l.b16 %v263
        %v446 = vunpack.c.l.b16 %v264
        %v447 = vunpack.c.l.b16 %v265
        %v448 = vpack.c.b16 %v419, %v418
        %v449 = vpack.c.b16 %v420, %v420
        %v450 = vpack.c.b16 %v422, %v421
        %v451 = vpack.c.b16 %v423, %v423
        %v452 = vpack.c.b16 %v425, %v424
        %v453 = vpack.c.b16 %v426, %v426
        %v454 = vpack.c.b16 %v428, %v427
        %v455 = vpack.c.b16 %v429, %v429
        %v456 = vpack.c.b16 %v431, %v430
        %v457 = vpack.c.b16 %v432, %v432
        %v458 = vpack.c.b16 %v434, %v433
        %v459 = vpack.c.b16 %v435, %v435
        %v460 = vpack.c.b16 %v437, %v436
        %v461 = vpack.c.b16 %v438, %v438
        %v462 = vpack.c.b16 %v440, %v439
        %v463 = vpack.c.b16 %v441, %v441
        %v464 = vpack.c.b16 %v443, %v442
        %v465 = vpack.c.b16 %v444, %v444
        %v466 = vpack.c.b16 %v446, %v445
        %v467 = vpack.c.b16 %v447, %v447
        %v478 = vunpack.c.l.b16 %v266
        %v479 = vunpack.c.l.b16 %v267
        %v480 = vunpack.c.l.b16 %v268
        %v481 = vunpack.c.l.b16 %v269
        %v482 = vunpack.c.l.b16 %v270
        %v483 = vunpack.c.l.b16 %v271
        %v484 = vunpack.c.l.b16 %v272
        %v485 = vunpack.c.l.b16 %v273
        %v486 = vunpack.c.l.b16 %v274
        %v487 = vunpack.c.l.b16 %v275
        %v488 = vpack.c.b16 %v478, %v478
        %v489 = vpack.c.b16 %v479, %v479
        %v490 = vpack.c.b16 %v480, %v480
        %v491 = vpack.c.b16 %v481, %v481
        %v492 = vpack.c.b16 %v482, %v482
        %v493 = vpack.c.b16 %v483, %v483
        %v494 = vpack.c.b16 %v484, %v484
        %v495 = vpack.c.b16 %v485, %v485
        %v496 = vpack.c.b16 %v486, %v486
        %v497 = vpack.c.b16 %v487, %v487
        %vm498 = vsmask.f32 7424
        %v500 = vshrl.u32 %v448, 16
        %v502 = vshll.u32 %v448, 16
        %v504 = vrot.slane %v502, 1
        %v505 = vor.u32 %v500, %v504
        %v507 = vshll.u32 %v488, 16
        %v509 = vrot.slane %v507, 1
        %v510 = vsel %vm498, %v505, %v509
        %v511 = vshrl.u32 %v488, 16
        %v513 = vor.u32 %v511, %v509
        %v515 = vshrl.u32 %v450, 16
        %v517 = vshll.u32 %v450, 16
        %v519 = vrot.slane %v517, 1
        %v520 = vor.u32 %v515, %v519
        %v522 = vshll.u32 %v489, 16
        %v524 = vrot.slane %v522, 1
        %v525 = vsel %vm498, %v520, %v524
        %v526 = vshrl.u32 %v489, 16
        %v528 = vor.u32 %v526, %v524
        %v530 = vshrl.u32 %v452, 16
        %v532 = vshll.u32 %v452, 16
        %v534 = vrot.slane %v532, 1
        %v535 = vor.u32 %v530, %v534
        %v537 = vshll.u32 %v490, 16
        %v539 = vrot.slane %v537, 1
        %v540 = vsel %vm498, %v535, %v539
        %v541 = vshrl.u32 %v490, 16
        %v543 = vor.u32 %v541, %v539
        %v545 = vshrl.u32 %v454, 16
        %v547 = vshll.u32 %v454, 16
        %v549 = vrot.slane %v547, 1
        %v550 = vor.u32 %v545, %v549
        %v552 = vshll.u32 %v491, 16
        %v554 = vrot.slane %v552, 1
        %v555 = vsel %vm498, %v550, %v554
        %v556 = vshrl.u32 %v491, 16
        %v558 = vor.u32 %v556, %v554
        %v560 = vshrl.u32 %v456, 16
        %v562 = vshll.u32 %v456, 16
        %v564 = vrot.slane %v562, 1
        %v565 = vor.u32 %v560, %v564
        %v567 = vshll.u32 %v492, 16
        %v569 = vrot.slane %v567, 1
        %v570 = vsel %vm498, %v565, %v569
        %v571 = vshrl.u32 %v492, 16
        %v573 = vor.u32 %v571, %v569
        %v575 = vshrl.u32 %v458, 16
        %v577 = vshll.u32 %v458, 16
        %v579 = vrot.slane %v577, 1
        %v580 = vor.u32 %v575, %v579
        %v582 = vshll.u32 %v493, 16
        %v584 = vrot.slane %v582, 1
        %v585 = vsel %vm498, %v580, %v584
        %v586 = vshrl.u32 %v493, 16
        %v588 = vor.u32 %v586, %v584
        %v590 = vshrl.u32 %v460, 16
        %v592 = vshll.u32 %v460, 16
        %v594 = vrot.slane %v592, 1
        %v595 = vor.u32 %v590, %v594
        %v597 = vshll.u32 %v494, 16
        %v599 = vrot.slane %v597, 1
        %v600 = vsel %vm498, %v595, %v599
        %v601 = vshrl.u32 %v494, 16
        %v603 = vor.u32 %v601, %v599
        %v605 = vshrl.u32 %v462, 16
        %v607 = vshll.u32 %v462, 16
        %v609 = vrot.slane %v607, 1
        %v610 = vor.u32 %v605, %v609
        %v612 = vshll.u32 %v495, 16
        %v614 = vrot.slane %v612, 1
        %v615 = vsel %vm498, %v610, %v614
        %v616 = vshrl.u32 %v495, 16
        %v618 = vor.u32 %v616, %v614
        %v620 = vshrl.u32 %v464, 16
        %v622 = vshll.u32 %v464, 16
        %v624 = vrot.slane %v622, 1
        %v625 = vor.u32 %v620, %v624
        %v627 = vshll.u32 %v496, 16
        %v629 = vrot.slane %v627, 1
        %v630 = vsel %vm498, %v625, %v629
        %v631 = vshrl.u32 %v496, 16
        %v633 = vor.u32 %v631, %v629
        %v635 = vshrl.u32 %v466, 16
        %v637 = vshll.u32 %v466, 16
        %v639 = vrot.slane %v637, 1
        %v640 = vor.u32 %v635, %v639
        %v642 = vshll.u32 %v497, 16
        %v644 = vrot.slane %v642, 1
        %v645 = vsel %vm498, %v640, %v644
        %v646 = vshrl.u32 %v497, 16
        %v648 = vor.u32 %v646, %v644
        %649 = vrot.lane.b32.xlu0 %v510, 32
        %v650 = vpop.permute.xlu0 %649
        %651 = vrot.lane.b32.xlu0 %v513, 32
        %v652 = vpop.permute.xlu0 %651
        %653 = vrot.lane.b32.xlu0 %v525, 32
        %v654 = vpop.permute.xlu0 %653
        %655 = vrot.lane.b32.xlu0 %v528, 32
        %v656 = vpop.permute.xlu0 %655
        %657 = vrot.lane.b32.xlu0 %v540, 32
        %v658 = vpop.permute.xlu0 %657
        %659 = vrot.lane.b32.xlu0 %v543, 32
        %v660 = vpop.permute.xlu0 %659
        %661 = vrot.lane.b32.xlu0 %v555, 32
        %v662 = vpop.permute.xlu0 %661
        %663 = vrot.lane.b32.xlu0 %v558, 32
        %v664 = vpop.permute.xlu0 %663
        %665 = vrot.lane.b32.xlu0 %v570, 32
        %v666 = vpop.permute.xlu0 %665
        %667 = vrot.lane.b32.xlu0 %v573, 32
        %v668 = vpop.permute.xlu0 %667
        %669 = vrot.lane.b32.xlu0 %v585, 32
        %v670 = vpop.permute.xlu0 %669
        %671 = vrot.lane.b32.xlu0 %v588, 32
        %v672 = vpop.permute.xlu0 %671
        %673 = vrot.lane.b32.xlu0 %v600, 32
        %v674 = vpop.permute.xlu0 %673
        %675 = vrot.lane.b32.xlu0 %v603, 32
        %v676 = vpop.permute.xlu0 %675
        %677 = vrot.lane.b32.xlu0 %v615, 32
        %v678 = vpop.permute.xlu0 %677
        %679 = vrot.lane.b32.xlu0 %v618, 32
        %v680 = vpop.permute.xlu0 %679
        %681 = vrot.lane.b32.xlu0 %v630, 32
        %v682 = vpop.permute.xlu0 %681
        %683 = vrot.lane.b32.xlu0 %v633, 32
        %v684 = vpop.permute.xlu0 %683
        %685 = vrot.lane.b32.xlu0 %v645, 32
        %v686 = vpop.permute.xlu0 %685
        %687 = vrot.lane.b32.xlu0 %v648, 32
        %v688 = vpop.permute.xlu0 %687
        %v699 = vunpack.c.l.b16 %v276
        %v700 = vunpack.c.l.b16 %v277
        %v701 = vunpack.c.l.b16 %v278
        %v702 = vunpack.c.l.b16 %v279
        %v703 = vunpack.c.l.b16 %v280
        %v704 = vunpack.c.l.b16 %v281
        %v705 = vunpack.c.l.b16 %v282
        %v706 = vunpack.c.l.b16 %v283
        %v707 = vunpack.c.l.b16 %v284
        %v708 = vunpack.c.l.b16 %v285
        %v709 = vpack.c.b16 %v419, %v699
        %v710 = vpack.c.b16 %v422, %v700
        %v711 = vpack.c.b16 %v425, %v701
        %v712 = vpack.c.b16 %v428, %v702
        %v713 = vpack.c.b16 %v431, %v703
        %v714 = vpack.c.b16 %v434, %v704
        %v715 = vpack.c.b16 %v437, %v705
        %v716 = vpack.c.b16 %v440, %v706
        %v717 = vpack.c.b16 %v443, %v707
        %v718 = vpack.c.b16 %v446, %v708
        %vm719 = vcmask 1046528
        %v720 = vrot.slane %v709, 1
        %v721 = vrot.slane %v488, 1
        %v722 = vsel %vm719, %v720, %v721
        %v723 = vrot.slane %v710, 1
        %v724 = vrot.slane %v489, 1
        %v725 = vsel %vm719, %v723, %v724
        %v726 = vrot.slane %v711, 1
        %v727 = vrot.slane %v490, 1
        %v728 = vsel %vm719, %v726, %v727
        %v729 = vrot.slane %v712, 1
        %v730 = vrot.slane %v491, 1
        %v731 = vsel %vm719, %v729, %v730
        %v732 = vrot.slane %v713, 1
        %v733 = vrot.slane %v492, 1
        %v734 = vsel %vm719, %v732, %v733
        %v735 = vrot.slane %v714, 1
        %v736 = vrot.slane %v493, 1
        %v737 = vsel %vm719, %v735, %v736
        %v738 = vrot.slane %v715, 1
        %v739 = vrot.slane %v494, 1
        %v740 = vsel %vm719, %v738, %v739
        %v741 = vrot.slane %v716, 1
        %v742 = vrot.slane %v495, 1
        %v743 = vsel %vm719, %v741, %v742
        %v744 = vrot.slane %v717, 1
        %v745 = vrot.slane %v496, 1
        %v746 = vsel %vm719, %v744, %v745
        %v747 = vrot.slane %v718, 1
        %v748 = vrot.slane %v497, 1
        %v749 = vsel %vm719, %v747, %v748
        %750 = vrot.lane.b32.xlu0 %v722, 64
        %v751 = vpop.permute.xlu0 %750
        %752 = vrot.lane.b32.xlu0 %v721, 64
        %v753 = vpop.permute.xlu0 %752
        %754 = vrot.lane.b32.xlu0 %v725, 64
        %v755 = vpop.permute.xlu0 %754
        %756 = vrot.lane.b32.xlu0 %v724, 64
        %v757 = vpop.permute.xlu0 %756
        %758 = vrot.lane.b32.xlu0 %v728, 64
        %v759 = vpop.permute.xlu0 %758
        %760 = vrot.lane.b32.xlu0 %v727, 64
        %v761 = vpop.permute.xlu0 %760
        %762 = vrot.lane.b32.xlu0 %v731, 64
        %v763 = vpop.permute.xlu0 %762
        %764 = vrot.lane.b32.xlu0 %v730, 64
        %v765 = vpop.permute.xlu0 %764
        %766 = vrot.lane.b32.xlu0 %v734, 64
        %v767 = vpop.permute.xlu0 %766
        %768 = vrot.lane.b32.xlu0 %v733, 64
        %v769 = vpop.permute.xlu0 %768
        %770 = vrot.lane.b32.xlu0 %v737, 64
        %v771 = vpop.permute.xlu0 %770
        %772 = vrot.lane.b32.xlu0 %v736, 64
        %v773 = vpop.permute.xlu0 %772
        %774 = vrot.lane.b32.xlu0 %v740, 64
        %v775 = vpop.permute.xlu0 %774
        %776 = vrot.lane.b32.xlu0 %v739, 64
        %v777 = vpop.permute.xlu0 %776
        %778 = vrot.lane.b32.xlu0 %v743, 64
        %v779 = vpop.permute.xlu0 %778
        %780 = vrot.lane.b32.xlu0 %v742, 64
        %v781 = vpop.permute.xlu0 %780
        %782 = vrot.lane.b32.xlu0 %v746, 64
        %v783 = vpop.permute.xlu0 %782
        %784 = vrot.lane.b32.xlu0 %v745, 64
        %v785 = vpop.permute.xlu0 %784
        %786 = vrot.lane.b32.xlu0 %v749, 64
        %v787 = vpop.permute.xlu0 %786
        %788 = vrot.lane.b32.xlu0 %v748, 64
        %v789 = vpop.permute.xlu0 %788
        %v820 = vunpack.c.l.b16 %v287
        %v821 = vunpack.c.l.b16 %v288
        %v822 = vunpack.c.l.b16 %v289
        %v823 = vunpack.c.l.b16 %v290
        %v824 = vunpack.c.l.b16 %v291
        %v825 = vunpack.c.l.b16 %v292
        %v826 = vunpack.c.l.b16 %v293
        %v827 = vunpack.c.l.b16 %v294
        %v828 = vunpack.c.l.b16 %v295
        %v829 = vunpack.c.l.b16 %v296
        %v830 = vunpack.c.l.b16 %v297
        %v831 = vunpack.c.l.b16 %v298
        %v832 = vunpack.c.l.b16 %v299
        %v833 = vunpack.c.l.b16 %v300
        %v834 = vunpack.c.l.b16 %v301
        %v835 = vunpack.c.l.b16 %v302
        %v836 = vunpack.c.l.b16 %v303
        %v837 = vunpack.c.l.b16 %v304
        %v838 = vunpack.c.l.b16 %v305
        %v839 = vunpack.c.l.b16 %v306
        %v840 = vunpack.c.l.b16 %v307
        %v841 = vunpack.c.l.b16 %v308
        %v842 = vunpack.c.l.b16 %v309
        %v843 = vunpack.c.l.b16 %v310
        %v844 = vunpack.c.l.b16 %v311
        %v845 = vunpack.c.l.b16 %v312
        %v846 = vunpack.c.l.b16 %v313
        %v847 = vunpack.c.l.b16 %v314
        %v848 = vunpack.c.l.b16 %v315
        %v849 = vunpack.c.l.b16 %v316
        %v850 = vpack.c.b16 %v821, %v820
        %v851 = vpack.c.b16 %v822, %v822
        %v852 = vpack.c.b16 %v824, %v823
        %v853 = vpack.c.b16 %v825, %v825
        %v854 = vpack.c.b16 %v827, %v826
        %v855 = vpack.c.b16 %v828, %v828
        %v856 = vpack.c.b16 %v830, %v829
        %v857 = vpack.c.b16 %v831, %v831
        %v858 = vpack.c.b16 %v833, %v832
        %v859 = vpack.c.b16 %v834, %v834
        %v860 = vpack.c.b16 %v836, %v835
        %v861 = vpack.c.b16 %v837, %v837
        %v862 = vpack.c.b16 %v839, %v838
        %v863 = vpack.c.b16 %v840, %v840
        %v864 = vpack.c.b16 %v842, %v841
        %v865 = vpack.c.b16 %v843, %v843
        %v866 = vpack.c.b16 %v845, %v844
        %v867 = vpack.c.b16 %v846, %v846
        %v868 = vpack.c.b16 %v848, %v847
        %v869 = vpack.c.b16 %v849, %v849
        %870 = vrot.lane.b32.xlu0 %v850, 96
        %v871 = vpop.permute.xlu0 %870
        %872 = vrot.lane.b32.xlu0 %v851, 96
        %v873 = vpop.permute.xlu0 %872
        %874 = vrot.lane.b32.xlu0 %v852, 96
        %v875 = vpop.permute.xlu0 %874
        %876 = vrot.lane.b32.xlu0 %v853, 96
        %v877 = vpop.permute.xlu0 %876
        %878 = vrot.lane.b32.xlu0 %v854, 96
        %v879 = vpop.permute.xlu0 %878
        %880 = vrot.lane.b32.xlu0 %v855, 96
        %v881 = vpop.permute.xlu0 %880
        %882 = vrot.lane.b32.xlu0 %v856, 96
        %v883 = vpop.permute.xlu0 %882
        %884 = vrot.lane.b32.xlu0 %v857, 96
        %v885 = vpop.permute.xlu0 %884
        %886 = vrot.lane.b32.xlu0 %v858, 96
        %v887 = vpop.permute.xlu0 %886
        %888 = vrot.lane.b32.xlu0 %v859, 96
        %v889 = vpop.permute.xlu0 %888
        %890 = vrot.lane.b32.xlu0 %v860, 96
        %v891 = vpop.permute.xlu0 %890
        %892 = vrot.lane.b32.xlu0 %v861, 96
        %v893 = vpop.permute.xlu0 %892
        %894 = vrot.lane.b32.xlu0 %v862, 96
        %v895 = vpop.permute.xlu0 %894
        %896 = vrot.lane.b32.xlu0 %v863, 96
        %v897 = vpop.permute.xlu0 %896
        %898 = vrot.lane.b32.xlu0 %v864, 96
        %v899 = vpop.permute.xlu0 %898
        %900 = vrot.lane.b32.xlu0 %v865, 96
        %v901 = vpop.permute.xlu0 %900
        %902 = vrot.lane.b32.xlu0 %v866, 96
        %v903 = vpop.permute.xlu0 %902
        %904 = vrot.lane.b32.xlu0 %v867, 96
        %v905 = vpop.permute.xlu0 %904
        %906 = vrot.lane.b32.xlu0 %v868, 96
        %v907 = vpop.permute.xlu0 %906
        %908 = vrot.lane.b32.xlu0 %v869, 96
        %v909 = vpop.permute.xlu0 %908
        %v920 = vunpack.c.l.b16 %v317
        %v921 = vunpack.c.l.b16 %v318
        %v922 = vunpack.c.l.b16 %v319
        %v923 = vunpack.c.l.b16 %v320
        %v924 = vunpack.c.l.b16 %v321
        %v925 = vunpack.c.l.b16 %v322
        %v926 = vunpack.c.l.b16 %v323
        %v927 = vunpack.c.l.b16 %v324
        %v928 = vunpack.c.l.b16 %v325
        %v929 = vunpack.c.l.b16 %v326
        %v930 = vpack.c.b16 %v920, %v920
        %v931 = vpack.c.b16 %v921, %v921
        %v932 = vpack.c.b16 %v922, %v922
        %v933 = vpack.c.b16 %v923, %v923
        %v934 = vpack.c.b16 %v924, %v924
        %v935 = vpack.c.b16 %v925, %v925
        %v936 = vpack.c.b16 %v926, %v926
        %v937 = vpack.c.b16 %v927, %v927
        %v938 = vpack.c.b16 %v928, %v928
        %v939 = vpack.c.b16 %v929, %v929
        %v941 = vshrl.u32 %v850, 16
        %v943 = vshll.u32 %v850, 16
        %v945 = vrot.slane %v943, 1
        %v946 = vor.u32 %v941, %v945
        %v948 = vshll.u32 %v930, 16
        %v950 = vrot.slane %v948, 1
        %v951 = vsel %vm498, %v946, %v950
        %v952 = vshrl.u32 %v930, 16
        %v954 = vor.u32 %v952, %v950
        %v956 = vshrl.u32 %v852, 16
        %v958 = vshll.u32 %v852, 16
        %v960 = vrot.slane %v958, 1
        %v961 = vor.u32 %v956, %v960
        %v963 = vshll.u32 %v931, 16
        %v965 = vrot.slane %v963, 1
        %v966 = vsel %vm498, %v961, %v965
        %v967 = vshrl.u32 %v931, 16
        %v969 = vor.u32 %v967, %v965
        %v971 = vshrl.u32 %v854, 16
        %v973 = vshll.u32 %v854, 16
        %v975 = vrot.slane %v973, 1
        %v976 = vor.u32 %v971, %v975
        %v978 = vshll.u32 %v932, 16
        %v980 = vrot.slane %v978, 1
        %v981 = vsel %vm498, %v976, %v980
        %v982 = vshrl.u32 %v932, 16
        %v984 = vor.u32 %v982, %v980
        %v986 = vshrl.u32 %v856, 16
        %v988 = vshll.u32 %v856, 16
        %v990 = vrot.slane %v988, 1
        %v991 = vor.u32 %v986, %v990
        %v993 = vshll.u32 %v933, 16
        %v995 = vrot.slane %v993, 1
        %v996 = vsel %vm498, %v991, %v995
        %v997 = vshrl.u32 %v933, 16
        %v999 = vor.u32 %v997, %v995
        %v1001 = vshrl.u32 %v858, 16
        %v1003 = vshll.u32 %v858, 16
        %v1005 = vrot.slane %v1003, 1
        %v1006 = vor.u32 %v1001, %v1005
        %v1008 = vshll.u32 %v934, 16
        %v1010 = vrot.slane %v1008, 1
        %v1011 = vsel %vm498, %v1006, %v1010
        %v1012 = vshrl.u32 %v934, 16
        %v1014 = vor.u32 %v1012, %v1010
        %v1016 = vshrl.u32 %v860, 16
        %v1018 = vshll.u32 %v860, 16
        %v1020 = vrot.slane %v1018, 1
        %v1021 = vor.u32 %v1016, %v1020
        %v1023 = vshll.u32 %v935, 16
        %v1025 = vrot.slane %v1023, 1
        %v1026 = vsel %vm498, %v1021, %v1025
        %v1027 = vshrl.u32 %v935, 16
        %v1029 = vor.u32 %v1027, %v1025
        %v1031 = vshrl.u32 %v862, 16
        %v1033 = vshll.u32 %v862, 16
        %v1035 = vrot.slane %v1033, 1
        %v1036 = vor.u32 %v1031, %v1035
        %v1038 = vshll.u32 %v936, 16
        %v1040 = vrot.slane %v1038, 1
        %v1041 = vsel %vm498, %v1036, %v1040
        %v1042 = vshrl.u32 %v936, 16
        %v1044 = vor.u32 %v1042, %v1040
        %v1046 = vshrl.u32 %v864, 16
        %v1048 = vshll.u32 %v864, 16
        %v1050 = vrot.slane %v1048, 1
        %v1051 = vor.u32 %v1046, %v1050
        %v1053 = vshll.u32 %v937, 16
        %v1055 = vrot.slane %v1053, 1
        %v1056 = vsel %vm498, %v1051, %v1055
        %v1057 = vshrl.u32 %v937, 16
        %v1059 = vor.u32 %v1057, %v1055
        %v1061 = vshrl.u32 %v866, 16
        %v1063 = vshll.u32 %v866, 16
        %v1065 = vrot.slane %v1063, 1
        %v1066 = vor.u32 %v1061, %v1065
        %v1068 = vshll.u32 %v938, 16
        %v1070 = vrot.slane %v1068, 1
        %v1071 = vsel %vm498, %v1066, %v1070
        %v1072 = vshrl.u32 %v938, 16
        %v1074 = vor.u32 %v1072, %v1070
        %v1076 = vshrl.u32 %v868, 16
        %v1078 = vshll.u32 %v868, 16
        %v1080 = vrot.slane %v1078, 1
        %v1081 = vor.u32 %v1076, %v1080
        %v1083 = vshll.u32 %v939, 16
        %v1085 = vrot.slane %v1083, 1
        %v1086 = vsel %vm498, %v1081, %v1085
        %v1087 = vshrl.u32 %v939, 16
        %v1089 = vor.u32 %v1087, %v1085
        %v1100 = vunpack.c.l.b16 %v327
        %v1101 = vunpack.c.l.b16 %v328
        %v1102 = vunpack.c.l.b16 %v329
        %v1103 = vunpack.c.l.b16 %v330
        %v1104 = vunpack.c.l.b16 %v331
        %v1105 = vunpack.c.l.b16 %v332
        %v1106 = vunpack.c.l.b16 %v333
        %v1107 = vunpack.c.l.b16 %v334
        %v1108 = vunpack.c.l.b16 %v335
        %v1109 = vunpack.c.l.b16 %v336
        %v1110 = vpack.c.b16 %v821, %v1100
        %v1111 = vpack.c.b16 %v824, %v1101
        %v1112 = vpack.c.b16 %v827, %v1102
        %v1113 = vpack.c.b16 %v830, %v1103
        %v1114 = vpack.c.b16 %v833, %v1104
        %v1115 = vpack.c.b16 %v836, %v1105
        %v1116 = vpack.c.b16 %v839, %v1106
        %v1117 = vpack.c.b16 %v842, %v1107
        %v1118 = vpack.c.b16 %v845, %v1108
        %v1119 = vpack.c.b16 %v848, %v1109
        %v1120 = vrot.slane %v1110, 1
        %v1121 = vrot.slane %v930, 1
        %v1122 = vsel %vm719, %v1120, %v1121
        %v1123 = vrot.slane %v1111, 1
        %v1124 = vrot.slane %v931, 1
        %v1125 = vsel %vm719, %v1123, %v1124
        %v1126 = vrot.slane %v1112, 1
        %v1127 = vrot.slane %v932, 1
        %v1128 = vsel %vm719, %v1126, %v1127
        %v1129 = vrot.slane %v1113, 1
        %v1130 = vrot.slane %v933, 1
        %v1131 = vsel %vm719, %v1129, %v1130
        %v1132 = vrot.slane %v1114, 1
        %v1133 = vrot.slane %v934, 1
        %v1134 = vsel %vm719, %v1132, %v1133
        %v1135 = vrot.slane %v1115, 1
        %v1136 = vrot.slane %v935, 1
        %v1137 = vsel %vm719, %v1135, %v1136
        %v1138 = vrot.slane %v1116, 1
        %v1139 = vrot.slane %v936, 1
        %v1140 = vsel %vm719, %v1138, %v1139
        %v1141 = vrot.slane %v1117, 1
        %v1142 = vrot.slane %v937, 1
        %v1143 = vsel %vm719, %v1141, %v1142
        %v1144 = vrot.slane %v1118, 1
        %v1145 = vrot.slane %v938, 1
        %v1146 = vsel %vm719, %v1144, %v1145
        %v1147 = vrot.slane %v1119, 1
        %v1148 = vrot.slane %v939, 1
        %v1149 = vsel %vm719, %v1147, %v1148
        %1150 = vrot.lane.b32.xlu0 %v1122, 32
        %v1151 = vpop.permute.xlu0 %1150
        %1152 = vrot.lane.b32.xlu0 %v1121, 32
        %v1153 = vpop.permute.xlu0 %1152
        %1154 = vrot.lane.b32.xlu0 %v1125, 32
        %v1155 = vpop.permute.xlu0 %1154
        %1156 = vrot.lane.b32.xlu0 %v1124, 32
        %v1157 = vpop.permute.xlu0 %1156
        %1158 = vrot.lane.b32.xlu0 %v1128, 32
        %v1159 = vpop.permute.xlu0 %1158
        %1160 = vrot.lane.b32.xlu0 %v1127, 32
        %v1161 = vpop.permute.xlu0 %1160
        %1162 = vrot.lane.b32.xlu0 %v1131, 32
        %v1163 = vpop.permute.xlu0 %1162
        %1164 = vrot.lane.b32.xlu0 %v1130, 32
        %v1165 = vpop.permute.xlu0 %1164
        %1166 = vrot.lane.b32.xlu0 %v1134, 32
        %v1167 = vpop.permute.xlu0 %1166
        %1168 = vrot.lane.b32.xlu0 %v1133, 32
        %v1169 = vpop.permute.xlu0 %1168
        %1170 = vrot.lane.b32.xlu0 %v1137, 32
        %v1171 = vpop.permute.xlu0 %1170
        %1172 = vrot.lane.b32.xlu0 %v1136, 32
        %v1173 = vpop.permute.xlu0 %1172
        %1174 = vrot.lane.b32.xlu0 %v1140, 32
        %v1175 = vpop.permute.xlu0 %1174
        %1176 = vrot.lane.b32.xlu0 %v1139, 32
        %v1177 = vpop.permute.xlu0 %1176
        %1178 = vrot.lane.b32.xlu0 %v1143, 32
        %v1179 = vpop.permute.xlu0 %1178
        %1180 = vrot.lane.b32.xlu0 %v1142, 32
        %v1181 = vpop.permute.xlu0 %1180
        %1182 = vrot.lane.b32.xlu0 %v1146, 32
        %v1183 = vpop.permute.xlu0 %1182
        %1184 = vrot.lane.b32.xlu0 %v1145, 32
        %v1185 = vpop.permute.xlu0 %1184
        %1186 = vrot.lane.b32.xlu0 %v1149, 32
        %v1187 = vpop.permute.xlu0 %1186
        %1188 = vrot.lane.b32.xlu0 %v1148, 32
        %v1189 = vpop.permute.xlu0 %1188
        %v1220 = vunpack.c.l.b16 %v338
        %v1221 = vunpack.c.l.b16 %v339
        %v1222 = vunpack.c.l.b16 %v340
        %v1223 = vunpack.c.l.b16 %v341
        %v1224 = vunpack.c.l.b16 %v342
        %v1225 = vunpack.c.l.b16 %v343
        %v1226 = vunpack.c.l.b16 %v344
        %v1227 = vunpack.c.l.b16 %v345
        %v1228 = vunpack.c.l.b16 %v346
        %v1229 = vunpack.c.l.b16 %v347
        %v1230 = vunpack.c.l.b16 %v348
        %v1231 = vunpack.c.l.b16 %v349
        %v1232 = vunpack.c.l.b16 %v350
        %v1233 = vunpack.c.l.b16 %v351
        %v1234 = vunpack.c.l.b16 %v352
        %v1235 = vunpack.c.l.b16 %v353
        %v1236 = vunpack.c.l.b16 %v354
        %v1237 = vunpack.c.l.b16 %v355
        %v1238 = vunpack.c.l.b16 %v356
        %v1239 = vunpack.c.l.b16 %v357
        %v1240 = vunpack.c.l.b16 %v358
        %v1241 = vunpack.c.l.b16 %v359
        %v1242 = vunpack.c.l.b16 %v360
        %v1243 = vunpack.c.l.b16 %v361
        %v1244 = vunpack.c.l.b16 %v362
        %v1245 = vunpack.c.l.b16 %v363
        %v1246 = vunpack.c.l.b16 %v364
        %v1247 = vunpack.c.l.b16 %v365
        %v1248 = vunpack.c.l.b16 %v366
        %v1249 = vunpack.c.l.b16 %v367
        %v1250 = vpack.c.b16 %v1221, %v1220
        %v1251 = vpack.c.b16 %v1222, %v1222
        %v1252 = vpack.c.b16 %v1224, %v1223
        %v1253 = vpack.c.b16 %v1225, %v1225
        %v1254 = vpack.c.b16 %v1227, %v1226
        %v1255 = vpack.c.b16 %v1228, %v1228
        %v1256 = vpack.c.b16 %v1230, %v1229
        %v1257 = vpack.c.b16 %v1231, %v1231
        %v1258 = vpack.c.b16 %v1233, %v1232
        %v1259 = vpack.c.b16 %v1234, %v1234
        %v1260 = vpack.c.b16 %v1236, %v1235
        %v1261 = vpack.c.b16 %v1237, %v1237
        %v1262 = vpack.c.b16 %v1239, %v1238
        %v1263 = vpack.c.b16 %v1240, %v1240
        %v1264 = vpack.c.b16 %v1242, %v1241
        %v1265 = vpack.c.b16 %v1243, %v1243
        %v1266 = vpack.c.b16 %v1245, %v1244
        %v1267 = vpack.c.b16 %v1246, %v1246
        %v1268 = vpack.c.b16 %v1248, %v1247
        %v1269 = vpack.c.b16 %v1249, %v1249
        %1270 = vrot.lane.b32.xlu0 %v1250, 64
        %v1271 = vpop.permute.xlu0 %1270
        %1272 = vrot.lane.b32.xlu0 %v1251, 64
        %v1273 = vpop.permute.xlu0 %1272
        %1274 = vrot.lane.b32.xlu0 %v1252, 64
        %v1275 = vpop.permute.xlu0 %1274
        %1276 = vrot.lane.b32.xlu0 %v1253, 64
        %v1277 = vpop.permute.xlu0 %1276
        %1278 = vrot.lane.b32.xlu0 %v1254, 64
        %v1279 = vpop.permute.xlu0 %1278
        %1280 = vrot.lane.b32.xlu0 %v1255, 64
        %v1281 = vpop.permute.xlu0 %1280
        %1282 = vrot.lane.b32.xlu0 %v1256, 64
        %v1283 = vpop.permute.xlu0 %1282
        %1284 = vrot.lane.b32.xlu0 %v1257, 64
        %v1285 = vpop.permute.xlu0 %1284
        %1286 = vrot.lane.b32.xlu0 %v1258, 64
        %v1287 = vpop.permute.xlu0 %1286
        %1288 = vrot.lane.b32.xlu0 %v1259, 64
        %v1289 = vpop.permute.xlu0 %1288
        %1290 = vrot.lane.b32.xlu0 %v1260, 64
        %v1291 = vpop.permute.xlu0 %1290
        %1292 = vrot.lane.b32.xlu0 %v1261, 64
        %v1293 = vpop.permute.xlu0 %1292
        %1294 = vrot.lane.b32.xlu0 %v1262, 64
        %v1295 = vpop.permute.xlu0 %1294
        %1296 = vrot.lane.b32.xlu0 %v1263, 64
        %v1297 = vpop.permute.xlu0 %1296
        %1298 = vrot.lane.b32.xlu0 %v1264, 64
        %v1299 = vpop.permute.xlu0 %1298
        %1300 = vrot.lane.b32.xlu0 %v1265, 64
        %v1301 = vpop.permute.xlu0 %1300
        %1302 = vrot.lane.b32.xlu0 %v1266, 64
        %v1303 = vpop.permute.xlu0 %1302
        %1304 = vrot.lane.b32.xlu0 %v1267, 64
        %v1305 = vpop.permute.xlu0 %1304
        %1306 = vrot.lane.b32.xlu0 %v1268, 64
        %v1307 = vpop.permute.xlu0 %1306
        %1308 = vrot.lane.b32.xlu0 %v1269, 64
        %v1309 = vpop.permute.xlu0 %1308
        %v1320 = vunpack.c.l.b16 %v368
        %v1321 = vunpack.c.l.b16 %v369
        %v1322 = vunpack.c.l.b16 %v370
        %v1323 = vunpack.c.l.b16 %v371
        %v1324 = vunpack.c.l.b16 %v372
        %v1325 = vunpack.c.l.b16 %v373
        %v1326 = vunpack.c.l.b16 %v374
        %v1327 = vunpack.c.l.b16 %v375
        %v1328 = vunpack.c.l.b16 %v376
        %v1329 = vunpack.c.l.b16 %v377
        %v1330 = vpack.c.b16 %v1320, %v1320
        %v1331 = vpack.c.b16 %v1321, %v1321
        %v1332 = vpack.c.b16 %v1322, %v1322
        %v1333 = vpack.c.b16 %v1323, %v1323
        %v1334 = vpack.c.b16 %v1324, %v1324
        %v1335 = vpack.c.b16 %v1325, %v1325
        %v1336 = vpack.c.b16 %v1326, %v1326
        %v1337 = vpack.c.b16 %v1327, %v1327
        %v1338 = vpack.c.b16 %v1328, %v1328
        %v1339 = vpack.c.b16 %v1329, %v1329
        %v1341 = vshrl.u32 %v1250, 16
        %v1343 = vshll.u32 %v1250, 16
        %v1345 = vrot.slane %v1343, 1
        %v1346 = vor.u32 %v1341, %v1345
        %v1348 = vshll.u32 %v1330, 16
        %v1350 = vrot.slane %v1348, 1
        %v1351 = vsel %vm498, %v1346, %v1350
        %v1352 = vshrl.u32 %v1330, 16
        %v1354 = vor.u32 %v1352, %v1350
        %v1356 = vshrl.u32 %v1252, 16
        %v1358 = vshll.u32 %v1252, 16
        %v1360 = vrot.slane %v1358, 1
        %v1361 = vor.u32 %v1356, %v1360
        %v1363 = vshll.u32 %v1331, 16
        %v1365 = vrot.slane %v1363, 1
        %v1366 = vsel %vm498, %v1361, %v1365
        %v1367 = vshrl.u32 %v1331, 16
        %v1369 = vor.u32 %v1367, %v1365
        %v1371 = vshrl.u32 %v1254, 16
        %v1373 = vshll.u32 %v1254, 16
        %v1375 = vrot.slane %v1373, 1
        %v1376 = vor.u32 %v1371, %v1375
        %v1378 = vshll.u32 %v1332, 16
        %v1380 = vrot.slane %v1378, 1
        %v1381 = vsel %vm498, %v1376, %v1380
        %v1382 = vshrl.u32 %v1332, 16
        %v1384 = vor.u32 %v1382, %v1380
        %v1386 = vshrl.u32 %v1256, 16
        %v1388 = vshll.u32 %v1256, 16
        %v1390 = vrot.slane %v1388, 1
        %v1391 = vor.u32 %v1386, %v1390
        %v1393 = vshll.u32 %v1333, 16
        %v1395 = vrot.slane %v1393, 1
        %v1396 = vsel %vm498, %v1391, %v1395
        %v1397 = vshrl.u32 %v1333, 16
        %v1399 = vor.u32 %v1397, %v1395
        %v1401 = vshrl.u32 %v1258, 16
        %v1403 = vshll.u32 %v1258, 16
        %v1405 = vrot.slane %v1403, 1
        %v1406 = vor.u32 %v1401, %v1405
        %v1408 = vshll.u32 %v1334, 16
        %v1410 = vrot.slane %v1408, 1
        %v1411 = vsel %vm498, %v1406, %v1410
        %v1412 = vshrl.u32 %v1334, 16
        %v1414 = vor.u32 %v1412, %v1410
        %v1416 = vshrl.u32 %v1260, 16
        %v1418 = vshll.u32 %v1260, 16
        %v1420 = vrot.slane %v1418, 1
        %v1421 = vor.u32 %v1416, %v1420
        %v1423 = vshll.u32 %v1335, 16
        %v1425 = vrot.slane %v1423, 1
        %v1426 = vsel %vm498, %v1421, %v1425
        %v1427 = vshrl.u32 %v1335, 16
        %v1429 = vor.u32 %v1427, %v1425
        %v1431 = vshrl.u32 %v1262, 16
        %v1433 = vshll.u32 %v1262, 16
        %v1435 = vrot.slane %v1433, 1
        %v1436 = vor.u32 %v1431, %v1435
        %v1438 = vshll.u32 %v1336, 16
        %v1440 = vrot.slane %v1438, 1
        %v1441 = vsel %vm498, %v1436, %v1440
        %v1442 = vshrl.u32 %v1336, 16
        %v1444 = vor.u32 %v1442, %v1440
        %v1446 = vshrl.u32 %v1264, 16
        %v1448 = vshll.u32 %v1264, 16
        %v1450 = vrot.slane %v1448, 1
        %v1451 = vor.u32 %v1446, %v1450
        %v1453 = vshll.u32 %v1337, 16
        %v1455 = vrot.slane %v1453, 1
        %v1456 = vsel %vm498, %v1451, %v1455
        %v1457 = vshrl.u32 %v1337, 16
        %v1459 = vor.u32 %v1457, %v1455
        %v1461 = vshrl.u32 %v1266, 16
        %v1463 = vshll.u32 %v1266, 16
        %v1465 = vrot.slane %v1463, 1
        %v1466 = vor.u32 %v1461, %v1465
        %v1468 = vshll.u32 %v1338, 16
        %v1470 = vrot.slane %v1468, 1
        %v1471 = vsel %vm498, %v1466, %v1470
        %v1472 = vshrl.u32 %v1338, 16
        %v1474 = vor.u32 %v1472, %v1470
        %v1476 = vshrl.u32 %v1268, 16
        %v1478 = vshll.u32 %v1268, 16
        %v1480 = vrot.slane %v1478, 1
        %v1481 = vor.u32 %v1476, %v1480
        %v1483 = vshll.u32 %v1339, 16
        %v1485 = vrot.slane %v1483, 1
        %v1486 = vsel %vm498, %v1481, %v1485
        %v1487 = vshrl.u32 %v1339, 16
        %v1489 = vor.u32 %v1487, %v1485
        %1490 = vrot.lane.b32.xlu0 %v1351, 96
        %v1491 = vpop.permute.xlu0 %1490
        %1492 = vrot.lane.b32.xlu0 %v1354, 96
        %v1493 = vpop.permute.xlu0 %1492
        %1494 = vrot.lane.b32.xlu0 %v1366, 96
        %v1495 = vpop.permute.xlu0 %1494
        %1496 = vrot.lane.b32.xlu0 %v1369, 96
        %v1497 = vpop.permute.xlu0 %1496
        %1498 = vrot.lane.b32.xlu0 %v1381, 96
        %v1499 = vpop.permute.xlu0 %1498
        %1500 = vrot.lane.b32.xlu0 %v1384, 96
        %v1501 = vpop.permute.xlu0 %1500
        %1502 = vrot.lane.b32.xlu0 %v1396, 96
        %v1503 = vpop.permute.xlu0 %1502
        %1504 = vrot.lane.b32.xlu0 %v1399, 96
        %v1505 = vpop.permute.xlu0 %1504
        %1506 = vrot.lane.b32.xlu0 %v1411, 96
        %v1507 = vpop.permute.xlu0 %1506
        %1508 = vrot.lane.b32.xlu0 %v1414, 96
        %v1509 = vpop.permute.xlu0 %1508
        %1510 = vrot.lane.b32.xlu0 %v1426, 96
        %v1511 = vpop.permute.xlu0 %1510
        %1512 = vrot.lane.b32.xlu0 %v1429, 96
        %v1513 = vpop.permute.xlu0 %1512
        %1514 = vrot.lane.b32.xlu0 %v1441, 96
        %v1515 = vpop.permute.xlu0 %1514
        %1516 = vrot.lane.b32.xlu0 %v1444, 96
        %v1517 = vpop.permute.xlu0 %1516
        %1518 = vrot.lane.b32.xlu0 %v1456, 96
        %v1519 = vpop.permute.xlu0 %1518
        %1520 = vrot.lane.b32.xlu0 %v1459, 96
        %v1521 = vpop.permute.xlu0 %1520
        %1522 = vrot.lane.b32.xlu0 %v1471, 96
        %v1523 = vpop.permute.xlu0 %1522
        %1524 = vrot.lane.b32.xlu0 %v1474, 96
        %v1525 = vpop.permute.xlu0 %1524
        %1526 = vrot.lane.b32.xlu0 %v1486, 96
        %v1527 = vpop.permute.xlu0 %1526
        %1528 = vrot.lane.b32.xlu0 %v1489, 96
        %v1529 = vpop.permute.xlu0 %1528
        %v1540 = vunpack.c.l.b16 %v378
        %v1541 = vunpack.c.l.b16 %v379
        %v1542 = vunpack.c.l.b16 %v380
        %v1543 = vunpack.c.l.b16 %v381
        %v1544 = vunpack.c.l.b16 %v382
        %v1545 = vunpack.c.l.b16 %v383
        %v1546 = vunpack.c.l.b16 %v384
        %v1547 = vunpack.c.l.b16 %v385
        %v1548 = vunpack.c.l.b16 %v386
        %v1549 = vunpack.c.l.b16 %v387
        %v1550 = vpack.c.b16 %v1221, %v1540
        %v1551 = vpack.c.b16 %v1224, %v1541
        %v1552 = vpack.c.b16 %v1227, %v1542
        %v1553 = vpack.c.b16 %v1230, %v1543
        %v1554 = vpack.c.b16 %v1233, %v1544
        %v1555 = vpack.c.b16 %v1236, %v1545
        %v1556 = vpack.c.b16 %v1239, %v1546
        %v1557 = vpack.c.b16 %v1242, %v1547
        %v1558 = vpack.c.b16 %v1245, %v1548
        %v1559 = vpack.c.b16 %v1248, %v1549
        %v1560 = vrot.slane %v1550, 1
        %v1561 = vrot.slane %v1330, 1
        %v1562 = vsel %vm719, %v1560, %v1561
        %v1563 = vrot.slane %v1551, 1
        %v1564 = vrot.slane %v1331, 1
        %v1565 = vsel %vm719, %v1563, %v1564
        %v1566 = vrot.slane %v1552, 1
        %v1567 = vrot.slane %v1332, 1
        %v1568 = vsel %vm719, %v1566, %v1567
        %v1569 = vrot.slane %v1553, 1
        %v1570 = vrot.slane %v1333, 1
        %v1571 = vsel %vm719, %v1569, %v1570
        %v1572 = vrot.slane %v1554, 1
        %v1573 = vrot.slane %v1334, 1
        %v1574 = vsel %vm719, %v1572, %v1573
        %v1575 = vrot.slane %v1555, 1
        %v1576 = vrot.slane %v1335, 1
        %v1577 = vsel %vm719, %v1575, %v1576
        %v1578 = vrot.slane %v1556, 1
        %v1579 = vrot.slane %v1336, 1
        %v1580 = vsel %vm719, %v1578, %v1579
        %v1581 = vrot.slane %v1557, 1
        %v1582 = vrot.slane %v1337, 1
        %v1583 = vsel %vm719, %v1581, %v1582
        %v1584 = vrot.slane %v1558, 1
        %v1585 = vrot.slane %v1338, 1
        %v1586 = vsel %vm719, %v1584, %v1585
        %v1587 = vrot.slane %v1559, 1
        %v1588 = vrot.slane %v1339, 1
        %v1589 = vsel %vm719, %v1587, %v1588
        %vm1590 = vcmask 261120
        %v1592 = vsel %vm1590, %v448, %v650
        %v1595 = vsel %vm1590, %v449, %v652
        %v1597 = vsel %vm1590, %v450, %v654
        %v1600 = vsel %vm1590, %v451, %v656
        %v1602 = vsel %vm1590, %v452, %v658
        %v1605 = vsel %vm1590, %v453, %v660
        %v1607 = vsel %vm1590, %v454, %v662
        %v1610 = vsel %vm1590, %v455, %v664
        %v1612 = vsel %vm1590, %v456, %v666
        %v1615 = vsel %vm1590, %v457, %v668
        %v1617 = vsel %vm1590, %v458, %v670
        %v1620 = vsel %vm1590, %v459, %v672
        %v1622 = vsel %vm1590, %v460, %v674
        %v1625 = vsel %vm1590, %v461, %v676
        %v1627 = vsel %vm1590, %v462, %v678
        %v1630 = vsel %vm1590, %v463, %v680
        %v1632 = vsel %vm1590, %v464, %v682
        %v1635 = vsel %vm1590, %v465, %v684
        %v1637 = vsel %vm1590, %v466, %v686
        %v1640 = vsel %vm1590, %v467, %v688
        %vm1641 = vcmask 523264
        %v1643 = vsel %vm1641, %v1592, %v751
        %v1645 = vsel %vm1641, %v1595, %v753
        %v1647 = vsel %vm1641, %v1597, %v755
        %v1649 = vsel %vm1641, %v1600, %v757
        %v1651 = vsel %vm1641, %v1602, %v759
        %v1653 = vsel %vm1641, %v1605, %v761
        %v1655 = vsel %vm1641, %v1607, %v763
        %v1657 = vsel %vm1641, %v1610, %v765
        %v1659 = vsel %vm1641, %v1612, %v767
        %v1661 = vsel %vm1641, %v1615, %v769
        %v1663 = vsel %vm1641, %v1617, %v771
        %v1665 = vsel %vm1641, %v1620, %v773
        %v1667 = vsel %vm1641, %v1622, %v775
        %v1669 = vsel %vm1641, %v1625, %v777
        %v1671 = vsel %vm1641, %v1627, %v779
        %v1673 = vsel %vm1641, %v1630, %v781
        %v1675 = vsel %vm1641, %v1632, %v783
        %v1677 = vsel %vm1641, %v1635, %v785
        %v1679 = vsel %vm1641, %v1637, %v787
        %v1681 = vsel %vm1641, %v1640, %v789
        %vm1682 = vcmask 785408
        %v1684 = vsel %vm1682, %v1643, %v871
        %v1686 = vsel %vm1682, %v1645, %v873
        %v1688 = vsel %vm1682, %v1647, %v875
        %v1690 = vsel %vm1682, %v1649, %v877
        %v1692 = vsel %vm1682, %v1651, %v879
        %v1694 = vsel %vm1682, %v1653, %v881
        %v1696 = vsel %vm1682, %v1655, %v883
        %v1698 = vsel %vm1682, %v1657, %v885
        %v1700 = vsel %vm1682, %v1659, %v887
        %v1702 = vsel %vm1682, %v1661, %v889
        %v1704 = vsel %vm1682, %v1663, %v891
        %v1706 = vsel %vm1682, %v1665, %v893
        %v1708 = vsel %vm1682, %v1667, %v895
        %v1710 = vsel %vm1682, %v1669, %v897
        %v1712 = vsel %vm1682, %v1671, %v899
        %v1714 = vsel %vm1682, %v1673, %v901
        %v1716 = vsel %vm1682, %v1675, %v903
        %v1718 = vsel %vm1682, %v1677, %v905
        %v1720 = vsel %vm1682, %v1679, %v907
        %v1722 = vsel %vm1682, %v1681, %v909
        %v1725 = vsel %vm1590, %v951, %v1151
        %v1728 = vsel %vm1590, %v954, %v1153
        %v1731 = vsel %vm1590, %v966, %v1155
        %v1734 = vsel %vm1590, %v969, %v1157
        %v1737 = vsel %vm1590, %v981, %v1159
        %v1740 = vsel %vm1590, %v984, %v1161
        %v1743 = vsel %vm1590, %v996, %v1163
        %v1746 = vsel %vm1590, %v999, %v1165
        %v1749 = vsel %vm1590, %v1011, %v1167
        %v1752 = vsel %vm1590, %v1014, %v1169
        %v1755 = vsel %vm1590, %v1026, %v1171
        %v1758 = vsel %vm1590, %v1029, %v1173
        %v1761 = vsel %vm1590, %v1041, %v1175
        %v1764 = vsel %vm1590, %v1044, %v1177
        %v1767 = vsel %vm1590, %v1056, %v1179
        %v1770 = vsel %vm1590, %v1059, %v1181
        %v1773 = vsel %vm1590, %v1071, %v1183
        %v1776 = vsel %vm1590, %v1074, %v1185
        %v1779 = vsel %vm1590, %v1086, %v1187
        %v1782 = vsel %vm1590, %v1089, %v1189
        %v1784 = vsel %vm1641, %v1725, %v1271
        %v1786 = vsel %vm1641, %v1728, %v1273
        %v1788 = vsel %vm1641, %v1731, %v1275
        %v1790 = vsel %vm1641, %v1734, %v1277
        %v1792 = vsel %vm1641, %v1737, %v1279
        %v1794 = vsel %vm1641, %v1740, %v1281
        %v1796 = vsel %vm1641, %v1743, %v1283
        %v1798 = vsel %vm1641, %v1746, %v1285
        %v1800 = vsel %vm1641, %v1749, %v1287
        %v1802 = vsel %vm1641, %v1752, %v1289
        %v1804 = vsel %vm1641, %v1755, %v1291
        %v1806 = vsel %vm1641, %v1758, %v1293
        %v1808 = vsel %vm1641, %v1761, %v1295
        %v1810 = vsel %vm1641, %v1764, %v1297
        %v1812 = vsel %vm1641, %v1767, %v1299
        %v1814 = vsel %vm1641, %v1770, %v1301
        %v1816 = vsel %vm1641, %v1773, %v1303
        %v1818 = vsel %vm1641, %v1776, %v1305
        %v1820 = vsel %vm1641, %v1779, %v1307
        %v1822 = vsel %vm1641, %v1782, %v1309
        %v1824 = vsel %vm1682, %v1784, %v1491
        %v1826 = vsel %vm1682, %v1786, %v1493
        %v1828 = vsel %vm1682, %v1788, %v1495
        %v1830 = vsel %vm1682, %v1790, %v1497
        %v1832 = vsel %vm1682, %v1792, %v1499
        %v1834 = vsel %vm1682, %v1794, %v1501
        %v1836 = vsel %vm1682, %v1796, %v1503
        %v1838 = vsel %vm1682, %v1798, %v1505
        %v1840 = vsel %vm1682, %v1800, %v1507
        %v1842 = vsel %vm1682, %v1802, %v1509
        %v1844 = vsel %vm1682, %v1804, %v1511
        %v1846 = vsel %vm1682, %v1806, %v1513
        %v1848 = vsel %vm1682, %v1808, %v1515
        %v1850 = vsel %vm1682, %v1810, %v1517
        %v1852 = vsel %vm1682, %v1812, %v1519
        %v1854 = vsel %vm1682, %v1814, %v1521
        %v1856 = vsel %vm1682, %v1816, %v1523
        %v1858 = vsel %vm1682, %v1818, %v1525
        %v1860 = vsel %vm1682, %v1820, %v1527
        %v1862 = vsel %vm1682, %v1822, %v1529
        %v1903 = vcombine.low %v1684, %v1824
        %v1904 = vcombine.high %v1684, %v1824
        %v1905 = vcombine.high %v1562, %v1562
        %v1907 = vunpack.c.l.s4 1966171168
        %v1908 = vunpack.c.0.s8 %v1907
        %v1909 = vlaneseq
        %v1910 = vshrl.u32 %v1909, 7
        %v1911 = vsub.s32 %v1908, %v1910
        %v1912 = vrot.slane %v1903, %v1911
        %v1914 = vunpack.c.l.s4 1966171168
        %v1915 = vunpack.c.0.s8 %v1914
        %v1916 = vlaneseq
        %v1917 = vshrl.u32 %v1916, 7
        %v1918 = vsub.s32 %v1915, %v1917
        %v1919 = vrot.slane %v1904, %v1918
        %v1921 = vunpack.c.l.s4 1966171168
        %v1922 = vunpack.c.0.s8 %v1921
        %v1923 = vlaneseq
        %v1924 = vshrl.u32 %v1923, 7
        %v1925 = vsub.s32 %v1922, %v1924
        %v1926 = vrot.slane %v1562, %v1925
        %v1928 = vunpack.c.l.s4 1966171168
        %v1929 = vunpack.c.0.s8 %v1928
        %v1930 = vlaneseq
        %v1931 = vshrl.u32 %v1930, 7
        %v1932 = vsub.s32 %v1929, %v1931
        %v1933 = vrot.slane %v1905, %v1932
        %v1934 = vcombine.low %v1912, %v1926
        %v1935 = vcombine.high %v1912, %v1926
        %v1936 = vcombine.low %v1919, %v1933
        %v1937 = vcombine.high %v1919, %v1933
        %v1939 = vunpack.c.l.s4 1966171168
        %v1940 = vunpack.c.0.s8 %v1939
        %v1941 = vlaneseq
        %v1942 = vshrl.u32 %v1941, 7
        %v1943 = vsub.s32 %v1940, %v1942
        %v1944 = vrot.slane %v1934, %v1943
        %v1946 = vunpack.c.l.s4 1966171168
        %v1947 = vunpack.c.0.s8 %v1946
        %v1948 = vlaneseq
        %v1949 = vshrl.u32 %v1948, 7
        %v1950 = vsub.s32 %v1947, %v1949
        %v1951 = vrot.slane %v1936, %v1950
        %v1953 = vunpack.c.l.s4 1966171168
        %v1954 = vunpack.c.0.s8 %v1953
        %v1955 = vlaneseq
        %v1956 = vshrl.u32 %v1955, 7
        %v1957 = vsub.s32 %v1954, %v1956
        %v1958 = vrot.slane %v1935, %v1957
        %v1960 = vunpack.c.l.s4 1966171168
        %v1961 = vunpack.c.0.s8 %v1960
        %v1962 = vlaneseq
        %v1963 = vshrl.u32 %v1962, 7
        %v1964 = vsub.s32 %v1961, %v1963
        %v1965 = vrot.slane %v1937, %v1964
        %v1966 = vcombine.high %v1944, %v1944
        %v1967 = vcombine.high %v1951, %v1951
        %v1968 = vcombine.high %v1958, %v1958
        %v1969 = vcombine.high %v1965, %v1965
        %v1970 = vcombine.low %v1686, %v1826
        %v1972 = vunpack.c.l.s4 1966171168
        %v1973 = vunpack.c.0.s8 %v1972
        %v1974 = vlaneseq
        %v1975 = vshrl.u32 %v1974, 7
        %v1976 = vsub.s32 %v1973, %v1975
        %v1977 = vrot.slane %v1970, %v1976
        %v1979 = vunpack.c.l.s4 1966171168
        %v1980 = vunpack.c.0.s8 %v1979
        %v1981 = vlaneseq
        %v1982 = vshrl.u32 %v1981, 7
        %v1983 = vsub.s32 %v1980, %v1982
        %v1984 = vrot.slane %v1561, %v1983
        %v1985 = vcombine.low %v1977, %v1984
        %v1987 = vunpack.c.l.s4 1966171168
        %v1988 = vunpack.c.0.s8 %v1987
        %v1989 = vlaneseq
        %v1990 = vshrl.u32 %v1989, 7
        %v1991 = vsub.s32 %v1988, %v1990
        %v1992 = vrot.slane %v1985, %v1991
        %v1993 = vcombine.low %v1688, %v1828
        %v1994 = vcombine.high %v1688, %v1828
        %v1995 = vcombine.high %v1565, %v1565
        %v1997 = vunpack.c.l.s4 1966171168
        %v1998 = vunpack.c.0.s8 %v1997
        %v1999 = vlaneseq
        %v2000 = vshrl.u32 %v1999, 7
        %v2001 = vsub.s32 %v1998, %v2000
        %v2002 = vrot.slane %v1993, %v2001
        %v2004 = vunpack.c.l.s4 1966171168
        %v2005 = vunpack.c.0.s8 %v2004
        %v2006 = vlaneseq
        %v2007 = vshrl.u32 %v2006, 7
        %v2008 = vsub.s32 %v2005, %v2007
        %v2009 = vrot.slane %v1994, %v2008
        %v2011 = vunpack.c.l.s4 1966171168
        %v2012 = vunpack.c.0.s8 %v2011
        %v2013 = vlaneseq
        %v2014 = vshrl.u32 %v2013, 7
        %v2015 = vsub.s32 %v2012, %v2014
        %v2016 = vrot.slane %v1565, %v2015
        %v2018 = vunpack.c.l.s4 1966171168
        %v2019 = vunpack.c.0.s8 %v2018
        %v2020 = vlaneseq
        %v2021 = vshrl.u32 %v2020, 7
        %v2022 = vsub.s32 %v2019, %v2021
        %v2023 = vrot.slane %v1995, %v2022
        %v2024 = vcombine.low %v2002, %v2016
        %v2025 = vcombine.high %v2002, %v2016
        %v2026 = vcombine.low %v2009, %v2023
        %v2027 = vcombine.high %v2009, %v2023
        %v2029 = vunpack.c.l.s4 1966171168
        %v2030 = vunpack.c.0.s8 %v2029
        %v2031 = vlaneseq
        %v2032 = vshrl.u32 %v2031, 7
        %v2033 = vsub.s32 %v2030, %v2032
        %v2034 = vrot.slane %v2024, %v2033
        %v2036 = vunpack.c.l.s4 1966171168
        %v2037 = vunpack.c.0.s8 %v2036
        %v2038 = vlaneseq
        %v2039 = vshrl.u32 %v2038, 7
        %v2040 = vsub.s32 %v2037, %v2039
        %v2041 = vrot.slane %v2026, %v2040
        %v2043 = vunpack.c.l.s4 1966171168
        %v2044 = vunpack.c.0.s8 %v2043
        %v2045 = vlaneseq
        %v2046 = vshrl.u32 %v2045, 7
        %v2047 = vsub.s32 %v2044, %v2046
        %v2048 = vrot.slane %v2025, %v2047
        %v2050 = vunpack.c.l.s4 1966171168
        %v2051 = vunpack.c.0.s8 %v2050
        %v2052 = vlaneseq
        %v2053 = vshrl.u32 %v2052, 7
        %v2054 = vsub.s32 %v2051, %v2053
        %v2055 = vrot.slane %v2027, %v2054
        %v2056 = vcombine.high %v2034, %v2034
        %v2057 = vcombine.high %v2041, %v2041
        %v2058 = vcombine.high %v2048, %v2048
        %v2059 = vcombine.high %v2055, %v2055
        %v2060 = vcombine.low %v1690, %v1830
        %v2062 = vunpack.c.l.s4 1966171168
        %v2063 = vunpack.c.0.s8 %v2062
        %v2064 = vlaneseq
        %v2065 = vshrl.u32 %v2064, 7
        %v2066 = vsub.s32 %v2063, %v2065
        %v2067 = vrot.slane %v2060, %v2066
        %v2069 = vunpack.c.l.s4 1966171168
        %v2070 = vunpack.c.0.s8 %v2069
        %v2071 = vlaneseq
        %v2072 = vshrl.u32 %v2071, 7
        %v2073 = vsub.s32 %v2070, %v2072
        %v2074 = vrot.slane %v1564, %v2073
        %v2075 = vcombine.low %v2067, %v2074
        %v2077 = vunpack.c.l.s4 1966171168
        %v2078 = vunpack.c.0.s8 %v2077
        %v2079 = vlaneseq
        %v2080 = vshrl.u32 %v2079, 7
        %v2081 = vsub.s32 %v2078, %v2080
        %v2082 = vrot.slane %v2075, %v2081
        %v2083 = vcombine.low %v1692, %v1832
        %v2084 = vcombine.high %v1692, %v1832
        %v2085 = vcombine.high %v1568, %v1568
        %v2087 = vunpack.c.l.s4 1966171168
        %v2088 = vunpack.c.0.s8 %v2087
        %v2089 = vlaneseq
        %v2090 = vshrl.u32 %v2089, 7
        %v2091 = vsub.s32 %v2088, %v2090
        %v2092 = vrot.slane %v2083, %v2091
        %v2094 = vunpack.c.l.s4 1966171168
        %v2095 = vunpack.c.0.s8 %v2094
        %v2096 = vlaneseq
        %v2097 = vshrl.u32 %v2096, 7
        %v2098 = vsub.s32 %v2095, %v2097
        %v2099 = vrot.slane %v2084, %v2098
        %v2101 = vunpack.c.l.s4 1966171168
        %v2102 = vunpack.c.0.s8 %v2101
        %v2103 = vlaneseq
        %v2104 = vshrl.u32 %v2103, 7
        %v2105 = vsub.s32 %v2102, %v2104
        %v2106 = vrot.slane %v1568, %v2105
        %v2108 = vunpack.c.l.s4 1966171168
        %v2109 = vunpack.c.0.s8 %v2108
        %v2110 = vlaneseq
        %v2111 = vshrl.u32 %v2110, 7
        %v2112 = vsub.s32 %v2109, %v2111
        %v2113 = vrot.slane %v2085, %v2112
        %v2114 = vcombine.low %v2092, %v2106
        %v2115 = vcombine.high %v2092, %v2106
        %v2116 = vcombine.low %v2099, %v2113
        %v2117 = vcombine.high %v2099, %v2113
        %v2119 = vunpack.c.l.s4 1966171168
        %v2120 = vunpack.c.0.s8 %v2119
        %v2121 = vlaneseq
        %v2122 = vshrl.u32 %v2121, 7
        %v2123 = vsub.s32 %v2120, %v2122
        %v2124 = vrot.slane %v2114, %v2123
        %v2126 = vunpack.c.l.s4 1966171168
        %v2127 = vunpack.c.0.s8 %v2126
        %v2128 = vlaneseq
        %v2129 = vshrl.u32 %v2128, 7
        %v2130 = vsub.s32 %v2127, %v2129
        %v2131 = vrot.slane %v2116, %v2130
        %v2133 = vunpack.c.l.s4 1966171168
        %v2134 = vunpack.c.0.s8 %v2133
        %v2135 = vlaneseq
        %v2136 = vshrl.u32 %v2135, 7
        %v2137 = vsub.s32 %v2134, %v2136
        %v2138 = vrot.slane %v2115, %v2137
        %v2140 = vunpack.c.l.s4 1966171168
        %v2141 = vunpack.c.0.s8 %v2140
        %v2142 = vlaneseq
        %v2143 = vshrl.u32 %v2142, 7
        %v2144 = vsub.s32 %v2141, %v2143
        %v2145 = vrot.slane %v2117, %v2144
        %v2146 = vcombine.high %v2124, %v2124
        %v2147 = vcombine.high %v2131, %v2131
        %v2148 = vcombine.high %v2138, %v2138
        %v2149 = vcombine.high %v2145, %v2145
        %v2150 = vcombine.low %v1694, %v1834
        %v2152 = vunpack.c.l.s4 1966171168
        %v2153 = vunpack.c.0.s8 %v2152
        %v2154 = vlaneseq
        %v2155 = vshrl.u32 %v2154, 7
        %v2156 = vsub.s32 %v2153, %v2155
        %v2157 = vrot.slane %v2150, %v2156
        %v2159 = vunpack.c.l.s4 1966171168
        %v2160 = vunpack.c.0.s8 %v2159
        %v2161 = vlaneseq
        %v2162 = vshrl.u32 %v2161, 7
        %v2163 = vsub.s32 %v2160, %v2162
        %v2164 = vrot.slane %v1567, %v2163
        %v2165 = vcombine.low %v2157, %v2164
        %v2167 = vunpack.c.l.s4 1966171168
        %v2168 = vunpack.c.0.s8 %v2167
        %v2169 = vlaneseq
        %v2170 = vshrl.u32 %v2169, 7
        %v2171 = vsub.s32 %v2168, %v2170
        %v2172 = vrot.slane %v2165, %v2171
        %v2173 = vcombine.low %v1696, %v1836
        %v2174 = vcombine.high %v1696, %v1836
        %v2175 = vcombine.high %v1571, %v1571
        %v2177 = vunpack.c.l.s4 1966171168
        %v2178 = vunpack.c.0.s8 %v2177
        %v2179 = vlaneseq
        %v2180 = vshrl.u32 %v2179, 7
        %v2181 = vsub.s32 %v2178, %v2180
        %v2182 = vrot.slane %v2173, %v2181
        %v2184 = vunpack.c.l.s4 1966171168
        %v2185 = vunpack.c.0.s8 %v2184
        %v2186 = vlaneseq
        %v2187 = vshrl.u32 %v2186, 7
        %v2188 = vsub.s32 %v2185, %v2187
        %v2189 = vrot.slane %v2174, %v2188
        %v2191 = vunpack.c.l.s4 1966171168
        %v2192 = vunpack.c.0.s8 %v2191
        %v2193 = vlaneseq
        %v2194 = vshrl.u32 %v2193, 7
        %v2195 = vsub.s32 %v2192, %v2194
        %v2196 = vrot.slane %v1571, %v2195
        %v2198 = vunpack.c.l.s4 1966171168
        %v2199 = vunpack.c.0.s8 %v2198
        %v2200 = vlaneseq
        %v2201 = vshrl.u32 %v2200, 7
        %v2202 = vsub.s32 %v2199, %v2201
        %v2203 = vrot.slane %v2175, %v2202
        %v2204 = vcombine.low %v2182, %v2196
        %v2205 = vcombine.high %v2182, %v2196
        %v2206 = vcombine.low %v2189, %v2203
        %v2207 = vcombine.high %v2189, %v2203
        %v2209 = vunpack.c.l.s4 1966171168
        %v2210 = vunpack.c.0.s8 %v2209
        %v2211 = vlaneseq
        %v2212 = vshrl.u32 %v2211, 7
        %v2213 = vsub.s32 %v2210, %v2212
        %v2214 = vrot.slane %v2204, %v2213
        %v2216 = vunpack.c.l.s4 1966171168
        %v2217 = vunpack.c.0.s8 %v2216
        %v2218 = vlaneseq
        %v2219 = vshrl.u32 %v2218, 7
        %v2220 = vsub.s32 %v2217, %v2219
        %v2221 = vrot.slane %v2206, %v2220
        %v2223 = vunpack.c.l.s4 1966171168
        %v2224 = vunpack.c.0.s8 %v2223
        %v2225 = vlaneseq
        %v2226 = vshrl.u32 %v2225, 7
        %v2227 = vsub.s32 %v2224, %v2226
        %v2228 = vrot.slane %v2205, %v2227
        %v2230 = vunpack.c.l.s4 1966171168
        %v2231 = vunpack.c.0.s8 %v2230
        %v2232 = vlaneseq
        %v2233 = vshrl.u32 %v2232, 7
        %v2234 = vsub.s32 %v2231, %v2233
        %v2235 = vrot.slane %v2207, %v2234
        %v2236 = vcombine.high %v2214, %v2214
        %v2237 = vcombine.high %v2221, %v2221
        %v2238 = vcombine.high %v2228, %v2228
        %v2239 = vcombine.high %v2235, %v2235
        %v2240 = vcombine.low %v1698, %v1838
        %v2242 = vunpack.c.l.s4 1966171168
        %v2243 = vunpack.c.0.s8 %v2242
        %v2244 = vlaneseq
        %v2245 = vshrl.u32 %v2244, 7
        %v2246 = vsub.s32 %v2243, %v2245
        %v2247 = vrot.slane %v2240, %v2246
        %v2249 = vunpack.c.l.s4 1966171168
        %v2250 = vunpack.c.0.s8 %v2249
        %v2251 = vlaneseq
        %v2252 = vshrl.u32 %v2251, 7
        %v2253 = vsub.s32 %v2250, %v2252
        %v2254 = vrot.slane %v1570, %v2253
        %v2255 = vcombine.low %v2247, %v2254
        %v2257 = vunpack.c.l.s4 1966171168
        %v2258 = vunpack.c.0.s8 %v2257
        %v2259 = vlaneseq
        %v2260 = vshrl.u32 %v2259, 7
        %v2261 = vsub.s32 %v2258, %v2260
        %v2262 = vrot.slane %v2255, %v2261
        %v2263 = vcombine.low %v1700, %v1840
        %v2264 = vcombine.high %v1700, %v1840
        %v2265 = vcombine.high %v1574, %v1574
        %v2267 = vunpack.c.l.s4 1966171168
        %v2268 = vunpack.c.0.s8 %v2267
        %v2269 = vlaneseq
        %v2270 = vshrl.u32 %v2269, 7
        %v2271 = vsub.s32 %v2268, %v2270
        %v2272 = vrot.slane %v2263, %v2271
        %v2274 = vunpack.c.l.s4 1966171168
        %v2275 = vunpack.c.0.s8 %v2274
        %v2276 = vlaneseq
        %v2277 = vshrl.u32 %v2276, 7
        %v2278 = vsub.s32 %v2275, %v2277
        %v2279 = vrot.slane %v2264, %v2278
        %v2281 = vunpack.c.l.s4 1966171168
        %v2282 = vunpack.c.0.s8 %v2281
        %v2283 = vlaneseq
        %v2284 = vshrl.u32 %v2283, 7
        %v2285 = vsub.s32 %v2282, %v2284
        %v2286 = vrot.slane %v1574, %v2285
        %v2288 = vunpack.c.l.s4 1966171168
        %v2289 = vunpack.c.0.s8 %v2288
        %v2290 = vlaneseq
        %v2291 = vshrl.u32 %v2290, 7
        %v2292 = vsub.s32 %v2289, %v2291
        %v2293 = vrot.slane %v2265, %v2292
        %v2294 = vcombine.low %v2272, %v2286
        %v2295 = vcombine.high %v2272, %v2286
        %v2296 = vcombine.low %v2279, %v2293
        %v2297 = vcombine.high %v2279, %v2293
        %v2299 = vunpack.c.l.s4 1966171168
        %v2300 = vunpack.c.0.s8 %v2299
        %v2301 = vlaneseq
        %v2302 = vshrl.u32 %v2301, 7
        %v2303 = vsub.s32 %v2300, %v2302
        %v2304 = vrot.slane %v2294, %v2303
        %v2306 = vunpack.c.l.s4 1966171168
        %v2307 = vunpack.c.0.s8 %v2306
        %v2308 = vlaneseq
        %v2309 = vshrl.u32 %v2308, 7
        %v2310 = vsub.s32 %v2307, %v2309
        %v2311 = vrot.slane %v2296, %v2310
        %v2313 = vunpack.c.l.s4 1966171168
        %v2314 = vunpack.c.0.s8 %v2313
        %v2315 = vlaneseq
        %v2316 = vshrl.u32 %v2315, 7
        %v2317 = vsub.s32 %v2314, %v2316
        %v2318 = vrot.slane %v2295, %v2317
        %v2320 = vunpack.c.l.s4 1966171168
        %v2321 = vunpack.c.0.s8 %v2320
        %v2322 = vlaneseq
        %v2323 = vshrl.u32 %v2322, 7
        %v2324 = vsub.s32 %v2321, %v2323
        %v2325 = vrot.slane %v2297, %v2324
        %v2326 = vcombine.high %v2304, %v2304
        %v2327 = vcombine.high %v2311, %v2311
        %v2328 = vcombine.high %v2318, %v2318
        %v2329 = vcombine.high %v2325, %v2325
        %v2330 = vcombine.low %v1702, %v1842
        %v2332 = vunpack.c.l.s4 1966171168
        %v2333 = vunpack.c.0.s8 %v2332
        %v2334 = vlaneseq
        %v2335 = vshrl.u32 %v2334, 7
        %v2336 = vsub.s32 %v2333, %v2335
        %v2337 = vrot.slane %v2330, %v2336
        %v2339 = vunpack.c.l.s4 1966171168
        %v2340 = vunpack.c.0.s8 %v2339
        %v2341 = vlaneseq
        %v2342 = vshrl.u32 %v2341, 7
        %v2343 = vsub.s32 %v2340, %v2342
        %v2344 = vrot.slane %v1573, %v2343
        %v2345 = vcombine.low %v2337, %v2344
        %v2347 = vunpack.c.l.s4 1966171168
        %v2348 = vunpack.c.0.s8 %v2347
        %v2349 = vlaneseq
        %v2350 = vshrl.u32 %v2349, 7
        %v2351 = vsub.s32 %v2348, %v2350
        %v2352 = vrot.slane %v2345, %v2351
        %v2353 = vcombine.low %v1704, %v1844
        %v2354 = vcombine.high %v1704, %v1844
        %v2355 = vcombine.high %v1577, %v1577
        %v2357 = vunpack.c.l.s4 1966171168
        %v2358 = vunpack.c.0.s8 %v2357
        %v2359 = vlaneseq
        %v2360 = vshrl.u32 %v2359, 7
        %v2361 = vsub.s32 %v2358, %v2360
        %v2362 = vrot.slane %v2353, %v2361
        %v2364 = vunpack.c.l.s4 1966171168
        %v2365 = vunpack.c.0.s8 %v2364
        %v2366 = vlaneseq
        %v2367 = vshrl.u32 %v2366, 7
        %v2368 = vsub.s32 %v2365, %v2367
        %v2369 = vrot.slane %v2354, %v2368
        %v2371 = vunpack.c.l.s4 1966171168
        %v2372 = vunpack.c.0.s8 %v2371
        %v2373 = vlaneseq
        %v2374 = vshrl.u32 %v2373, 7
        %v2375 = vsub.s32 %v2372, %v2374
        %v2376 = vrot.slane %v1577, %v2375
        %v2378 = vunpack.c.l.s4 1966171168
        %v2379 = vunpack.c.0.s8 %v2378
        %v2380 = vlaneseq
        %v2381 = vshrl.u32 %v2380, 7
        %v2382 = vsub.s32 %v2379, %v2381
        %v2383 = vrot.slane %v2355, %v2382
        %v2384 = vcombine.low %v2362, %v2376
        %v2385 = vcombine.high %v2362, %v2376
        %v2386 = vcombine.low %v2369, %v2383
        %v2387 = vcombine.high %v2369, %v2383
        %v2389 = vunpack.c.l.s4 1966171168
        %v2390 = vunpack.c.0.s8 %v2389
        %v2391 = vlaneseq
        %v2392 = vshrl.u32 %v2391, 7
        %v2393 = vsub.s32 %v2390, %v2392
        %v2394 = vrot.slane %v2384, %v2393
        %v2396 = vunpack.c.l.s4 1966171168
        %v2397 = vunpack.c.0.s8 %v2396
        %v2398 = vlaneseq
        %v2399 = vshrl.u32 %v2398, 7
        %v2400 = vsub.s32 %v2397, %v2399
        %v2401 = vrot.slane %v2386, %v2400
        %v2403 = vunpack.c.l.s4 1966171168
        %v2404 = vunpack.c.0.s8 %v2403
        %v2405 = vlaneseq
        %v2406 = vshrl.u32 %v2405, 7
        %v2407 = vsub.s32 %v2404, %v2406
        %v2408 = vrot.slane %v2385, %v2407
        %v2410 = vunpack.c.l.s4 1966171168
        %v2411 = vunpack.c.0.s8 %v2410
        %v2412 = vlaneseq
        %v2413 = vshrl.u32 %v2412, 7
        %v2414 = vsub.s32 %v2411, %v2413
        %v2415 = vrot.slane %v2387, %v2414
        %v2416 = vcombine.high %v2394, %v2394
        %v2417 = vcombine.high %v2401, %v2401
        %v2418 = vcombine.high %v2408, %v2408
        %v2419 = vcombine.high %v2415, %v2415
        %v2420 = vcombine.low %v1706, %v1846
        %v2422 = vunpack.c.l.s4 1966171168
        %v2423 = vunpack.c.0.s8 %v2422
        %v2424 = vlaneseq
        %v2425 = vshrl.u32 %v2424, 7
        %v2426 = vsub.s32 %v2423, %v2425
        %v2427 = vrot.slane %v2420, %v2426
        %v2429 = vunpack.c.l.s4 1966171168
        %v2430 = vunpack.c.0.s8 %v2429
        %v2431 = vlaneseq
        %v2432 = vshrl.u32 %v2431, 7
        %v2433 = vsub.s32 %v2430, %v2432
        %v2434 = vrot.slane %v1576, %v2433
        %v2435 = vcombine.low %v2427, %v2434
        %v2437 = vunpack.c.l.s4 1966171168
        %v2438 = vunpack.c.0.s8 %v2437
        %v2439 = vlaneseq
        %v2440 = vshrl.u32 %v2439, 7
        %v2441 = vsub.s32 %v2438, %v2440
        %v2442 = vrot.slane %v2435, %v2441
        %v2443 = vcombine.low %v1708, %v1848
        %v2444 = vcombine.high %v1708, %v1848
        %v2445 = vcombine.high %v1580, %v1580
        %v2447 = vunpack.c.l.s4 1966171168
        %v2448 = vunpack.c.0.s8 %v2447
        %v2449 = vlaneseq
        %v2450 = vshrl.u32 %v2449, 7
        %v2451 = vsub.s32 %v2448, %v2450
        %v2452 = vrot.slane %v2443, %v2451
        %v2454 = vunpack.c.l.s4 1966171168
        %v2455 = vunpack.c.0.s8 %v2454
        %v2456 = vlaneseq
        %v2457 = vshrl.u32 %v2456, 7
        %v2458 = vsub.s32 %v2455, %v2457
        %v2459 = vrot.slane %v2444, %v2458
        %v2461 = vunpack.c.l.s4 1966171168
        %v2462 = vunpack.c.0.s8 %v2461
        %v2463 = vlaneseq
        %v2464 = vshrl.u32 %v2463, 7
        %v2465 = vsub.s32 %v2462, %v2464
        %v2466 = vrot.slane %v1580, %v2465
        %v2468 = vunpack.c.l.s4 1966171168
        %v2469 = vunpack.c.0.s8 %v2468
        %v2470 = vlaneseq
        %v2471 = vshrl.u32 %v2470, 7
        %v2472 = vsub.s32 %v2469, %v2471
        %v2473 = vrot.slane %v2445, %v2472
        %v2474 = vcombine.low %v2452, %v2466
        %v2475 = vcombine.high %v2452, %v2466
        %v2476 = vcombine.low %v2459, %v2473
        %v2477 = vcombine.high %v2459, %v2473
        %v2479 = vunpack.c.l.s4 1966171168
        %v2480 = vunpack.c.0.s8 %v2479
        %v2481 = vlaneseq
        %v2482 = vshrl.u32 %v2481, 7
        %v2483 = vsub.s32 %v2480, %v2482
        %v2484 = vrot.slane %v2474, %v2483
        %v2486 = vunpack.c.l.s4 1966171168
        %v2487 = vunpack.c.0.s8 %v2486
        %v2488 = vlaneseq
        %v2489 = vshrl.u32 %v2488, 7
        %v2490 = vsub.s32 %v2487, %v2489
        %v2491 = vrot.slane %v2476, %v2490
        %v2493 = vunpack.c.l.s4 1966171168
        %v2494 = vunpack.c.0.s8 %v2493
        %v2495 = vlaneseq
        %v2496 = vshrl.u32 %v2495, 7
        %v2497 = vsub.s32 %v2494, %v2496
        %v2498 = vrot.slane %v2475, %v2497
        %v2500 = vunpack.c.l.s4 1966171168
        %v2501 = vunpack.c.0.s8 %v2500
        %v2502 = vlaneseq
        %v2503 = vshrl.u32 %v2502, 7
        %v2504 = vsub.s32 %v2501, %v2503
        %v2505 = vrot.slane %v2477, %v2504
        %v2506 = vcombine.high %v2484, %v2484
        %v2507 = vcombine.high %v2491, %v2491
        %v2508 = vcombine.high %v2498, %v2498
        %v2509 = vcombine.high %v2505, %v2505
        %v2510 = vcombine.low %v1710, %v1850
        %v2512 = vunpack.c.l.s4 1966171168
        %v2513 = vunpack.c.0.s8 %v2512
        %v2514 = vlaneseq
        %v2515 = vshrl.u32 %v2514, 7
        %v2516 = vsub.s32 %v2513, %v2515
        %v2517 = vrot.slane %v2510, %v2516
        %v2519 = vunpack.c.l.s4 1966171168
        %v2520 = vunpack.c.0.s8 %v2519
        %v2521 = vlaneseq
        %v2522 = vshrl.u32 %v2521, 7
        %v2523 = vsub.s32 %v2520, %v2522
        %v2524 = vrot.slane %v1579, %v2523
        %v2525 = vcombine.low %v2517, %v2524
        %v2527 = vunpack.c.l.s4 1966171168
        %v2528 = vunpack.c.0.s8 %v2527
        %v2529 = vlaneseq
        %v2530 = vshrl.u32 %v2529, 7
        %v2531 = vsub.s32 %v2528, %v2530
        %v2532 = vrot.slane %v2525, %v2531
        %v2533 = vcombine.low %v1712, %v1852
        %v2534 = vcombine.high %v1712, %v1852
        %v2535 = vcombine.high %v1583, %v1583
        %v2537 = vunpack.c.l.s4 1966171168
        %v2538 = vunpack.c.0.s8 %v2537
        %v2539 = vlaneseq
        %v2540 = vshrl.u32 %v2539, 7
        %v2541 = vsub.s32 %v2538, %v2540
        %v2542 = vrot.slane %v2533, %v2541
        %v2544 = vunpack.c.l.s4 1966171168
        %v2545 = vunpack.c.0.s8 %v2544
        %v2546 = vlaneseq
        %v2547 = vshrl.u32 %v2546, 7
        %v2548 = vsub.s32 %v2545, %v2547
        %v2549 = vrot.slane %v2534, %v2548
        %v2551 = vunpack.c.l.s4 1966171168
        %v2552 = vunpack.c.0.s8 %v2551
        %v2553 = vlaneseq
        %v2554 = vshrl.u32 %v2553, 7
        %v2555 = vsub.s32 %v2552, %v2554
        %v2556 = vrot.slane %v1583, %v2555
        %v2558 = vunpack.c.l.s4 1966171168
        %v2559 = vunpack.c.0.s8 %v2558
        %v2560 = vlaneseq
        %v2561 = vshrl.u32 %v2560, 7
        %v2562 = vsub.s32 %v2559, %v2561
        %v2563 = vrot.slane %v2535, %v2562
        %v2564 = vcombine.low %v2542, %v2556
        %v2565 = vcombine.high %v2542, %v2556
        %v2566 = vcombine.low %v2549, %v2563
        %v2567 = vcombine.high %v2549, %v2563
        %v2569 = vunpack.c.l.s4 1966171168
        %v2570 = vunpack.c.0.s8 %v2569
        %v2571 = vlaneseq
        %v2572 = vshrl.u32 %v2571, 7
        %v2573 = vsub.s32 %v2570, %v2572
        %v2574 = vrot.slane %v2564, %v2573
        %v2576 = vunpack.c.l.s4 1966171168
        %v2577 = vunpack.c.0.s8 %v2576
        %v2578 = vlaneseq
        %v2579 = vshrl.u32 %v2578, 7
        %v2580 = vsub.s32 %v2577, %v2579
        %v2581 = vrot.slane %v2566, %v2580
        %v2583 = vunpack.c.l.s4 1966171168
        %v2584 = vunpack.c.0.s8 %v2583
        %v2585 = vlaneseq
        %v2586 = vshrl.u32 %v2585, 7
        %v2587 = vsub.s32 %v2584, %v2586
        %v2588 = vrot.slane %v2565, %v2587
        %v2590 = vunpack.c.l.s4 1966171168
        %v2591 = vunpack.c.0.s8 %v2590
        %v2592 = vlaneseq
        %v2593 = vshrl.u32 %v2592, 7
        %v2594 = vsub.s32 %v2591, %v2593
        %v2595 = vrot.slane %v2567, %v2594
        %v2596 = vcombine.high %v2574, %v2574
        %v2597 = vcombine.high %v2581, %v2581
        %v2598 = vcombine.high %v2588, %v2588
        %v2599 = vcombine.high %v2595, %v2595
        %v2600 = vcombine.low %v1714, %v1854
        %v2602 = vunpack.c.l.s4 1966171168
        %v2603 = vunpack.c.0.s8 %v2602
        %v2604 = vlaneseq
        %v2605 = vshrl.u32 %v2604, 7
        %v2606 = vsub.s32 %v2603, %v2605
        %v2607 = vrot.slane %v2600, %v2606
        %v2609 = vunpack.c.l.s4 1966171168
        %v2610 = vunpack.c.0.s8 %v2609
        %v2611 = vlaneseq
        %v2612 = vshrl.u32 %v2611, 7
        %v2613 = vsub.s32 %v2610, %v2612
        %v2614 = vrot.slane %v1582, %v2613
        %v2615 = vcombine.low %v2607, %v2614
        %v2617 = vunpack.c.l.s4 1966171168
        %v2618 = vunpack.c.0.s8 %v2617
        %v2619 = vlaneseq
        %v2620 = vshrl.u32 %v2619, 7
        %v2621 = vsub.s32 %v2618, %v2620
        %v2622 = vrot.slane %v2615, %v2621
        %v2623 = vcombine.low %v1716, %v1856
        %v2624 = vcombine.high %v1716, %v1856
        %v2625 = vcombine.high %v1586, %v1586
        %v2627 = vunpack.c.l.s4 1966171168
        %v2628 = vunpack.c.0.s8 %v2627
        %v2629 = vlaneseq
        %v2630 = vshrl.u32 %v2629, 7
        %v2631 = vsub.s32 %v2628, %v2630
        %v2632 = vrot.slane %v2623, %v2631
        %v2634 = vunpack.c.l.s4 1966171168
        %v2635 = vunpack.c.0.s8 %v2634
        %v2636 = vlaneseq
        %v2637 = vshrl.u32 %v2636, 7
        %v2638 = vsub.s32 %v2635, %v2637
        %v2639 = vrot.slane %v2624, %v2638
        %v2641 = vunpack.c.l.s4 1966171168
        %v2642 = vunpack.c.0.s8 %v2641
        %v2643 = vlaneseq
        %v2644 = vshrl.u32 %v2643, 7
        %v2645 = vsub.s32 %v2642, %v2644
        %v2646 = vrot.slane %v1586, %v2645
        %v2648 = vunpack.c.l.s4 1966171168
        %v2649 = vunpack.c.0.s8 %v2648
        %v2650 = vlaneseq
        %v2651 = vshrl.u32 %v2650, 7
        %v2652 = vsub.s32 %v2649, %v2651
        %v2653 = vrot.slane %v2625, %v2652
        %v2654 = vcombine.low %v2632, %v2646
        %v2655 = vcombine.high %v2632, %v2646
        %v2656 = vcombine.low %v2639, %v2653
        %v2657 = vcombine.high %v2639, %v2653
        %v2659 = vunpack.c.l.s4 1966171168
        %v2660 = vunpack.c.0.s8 %v2659
        %v2661 = vlaneseq
        %v2662 = vshrl.u32 %v2661, 7
        %v2663 = vsub.s32 %v2660, %v2662
        %v2664 = vrot.slane %v2654, %v2663
        %v2666 = vunpack.c.l.s4 1966171168
        %v2667 = vunpack.c.0.s8 %v2666
        %v2668 = vlaneseq
        %v2669 = vshrl.u32 %v2668, 7
        %v2670 = vsub.s32 %v2667, %v2669
        %v2671 = vrot.slane %v2656, %v2670
        %v2673 = vunpack.c.l.s4 1966171168
        %v2674 = vunpack.c.0.s8 %v2673
        %v2675 = vlaneseq
        %v2676 = vshrl.u32 %v2675, 7
        %v2677 = vsub.s32 %v2674, %v2676
        %v2678 = vrot.slane %v2655, %v2677
        %v2680 = vunpack.c.l.s4 1966171168
        %v2681 = vunpack.c.0.s8 %v2680
        %v2682 = vlaneseq
        %v2683 = vshrl.u32 %v2682, 7
        %v2684 = vsub.s32 %v2681, %v2683
        %v2685 = vrot.slane %v2657, %v2684
        %v2686 = vcombine.high %v2664, %v2664
        %v2687 = vcombine.high %v2671, %v2671
        %v2688 = vcombine.high %v2678, %v2678
        %v2689 = vcombine.high %v2685, %v2685
        %v2690 = vcombine.low %v1718, %v1858
        %v2692 = vunpack.c.l.s4 1966171168
        %v2693 = vunpack.c.0.s8 %v2692
        %v2694 = vlaneseq
        %v2695 = vshrl.u32 %v2694, 7
        %v2696 = vsub.s32 %v2693, %v2695
        %v2697 = vrot.slane %v2690, %v2696
        %v2699 = vunpack.c.l.s4 1966171168
        %v2700 = vunpack.c.0.s8 %v2699
        %v2701 = vlaneseq
        %v2702 = vshrl.u32 %v2701, 7
        %v2703 = vsub.s32 %v2700, %v2702
        %v2704 = vrot.slane %v1585, %v2703
        %v2705 = vcombine.low %v2697, %v2704
        %v2707 = vunpack.c.l.s4 1966171168
        %v2708 = vunpack.c.0.s8 %v2707
        %v2709 = vlaneseq
        %v2710 = vshrl.u32 %v2709, 7
        %v2711 = vsub.s32 %v2708, %v2710
        %v2712 = vrot.slane %v2705, %v2711
        %v2713 = vcombine.low %v1720, %v1860
        %v2714 = vcombine.high %v1720, %v1860
        %v2715 = vcombine.high %v1589, %v1589
        %v2717 = vunpack.c.l.s4 1966171168
        %v2718 = vunpack.c.0.s8 %v2717
        %v2719 = vlaneseq
        %v2720 = vshrl.u32 %v2719, 7
        %v2721 = vsub.s32 %v2718, %v2720
        %v2722 = vrot.slane %v2713, %v2721
        %v2724 = vunpack.c.l.s4 1966171168
        %v2725 = vunpack.c.0.s8 %v2724
        %v2726 = vlaneseq
        %v2727 = vshrl.u32 %v2726, 7
        %v2728 = vsub.s32 %v2725, %v2727
        %v2729 = vrot.slane %v2714, %v2728
        %v2731 = vunpack.c.l.s4 1966171168
        %v2732 = vunpack.c.0.s8 %v2731
        %v2733 = vlaneseq
        %v2734 = vshrl.u32 %v2733, 7
        %v2735 = vsub.s32 %v2732, %v2734
        %v2736 = vrot.slane %v1589, %v2735
        %v2738 = vunpack.c.l.s4 1966171168
        %v2739 = vunpack.c.0.s8 %v2738
        %v2740 = vlaneseq
        %v2741 = vshrl.u32 %v2740, 7
        %v2742 = vsub.s32 %v2739, %v2741
        %v2743 = vrot.slane %v2715, %v2742
        %v2744 = vcombine.low %v2722, %v2736
        %v2745 = vcombine.high %v2722, %v2736
        %v2746 = vcombine.low %v2729, %v2743
        %v2747 = vcombine.high %v2729, %v2743
        %v2749 = vunpack.c.l.s4 1966171168
        %v2750 = vunpack.c.0.s8 %v2749
        %v2751 = vlaneseq
        %v2752 = vshrl.u32 %v2751, 7
        %v2753 = vsub.s32 %v2750, %v2752
        %v2754 = vrot.slane %v2744, %v2753
        %v2756 = vunpack.c.l.s4 1966171168
        %v2757 = vunpack.c.0.s8 %v2756
        %v2758 = vlaneseq
        %v2759 = vshrl.u32 %v2758, 7
        %v2760 = vsub.s32 %v2757, %v2759
        %v2761 = vrot.slane %v2746, %v2760
        %v2763 = vunpack.c.l.s4 1966171168
        %v2764 = vunpack.c.0.s8 %v2763
        %v2765 = vlaneseq
        %v2766 = vshrl.u32 %v2765, 7
        %v2767 = vsub.s32 %v2764, %v2766
        %v2768 = vrot.slane %v2745, %v2767
        %v2770 = vunpack.c.l.s4 1966171168
        %v2771 = vunpack.c.0.s8 %v2770
        %v2772 = vlaneseq
        %v2773 = vshrl.u32 %v2772, 7
        %v2774 = vsub.s32 %v2771, %v2773
        %v2775 = vrot.slane %v2747, %v2774
        %v2776 = vcombine.high %v2754, %v2754
        %v2777 = vcombine.high %v2761, %v2761
        %v2778 = vcombine.high %v2768, %v2768
        %v2779 = vcombine.high %v2775, %v2775
        %v2780 = vcombine.low %v1722, %v1862
        %v2782 = vunpack.c.l.s4 1966171168
        %v2783 = vunpack.c.0.s8 %v2782
        %v2784 = vlaneseq
        %v2785 = vshrl.u32 %v2784, 7
        %v2786 = vsub.s32 %v2783, %v2785
        %v2787 = vrot.slane %v2780, %v2786
        %v2789 = vunpack.c.l.s4 1966171168
        %v2790 = vunpack.c.0.s8 %v2789
        %v2791 = vlaneseq
        %v2792 = vshrl.u32 %v2791, 7
        %v2793 = vsub.s32 %v2790, %v2792
        %v2794 = vrot.slane %v1588, %v2793
        %v2795 = vcombine.low %v2787, %v2794
        %v2797 = vunpack.c.l.s4 1966171168
        %v2798 = vunpack.c.0.s8 %v2797
        %v2799 = vlaneseq
        %v2800 = vshrl.u32 %v2799, 7
        %v2801 = vsub.s32 %v2798, %v2800
        %v2802 = vrot.slane %v2795, %v2801
        %v2803 = vld [vmem:[%s1] sm:$0xf]
        %v2804 = vld [vmem:[%s1 + $0x4] sm:$0xf]
        %v2805 = vld [vmem:[%s1 + $0x8] sm:$0xf]
        %v2806 = vld [vmem:[%s1 + $0xc] sm:$0xf]
        %v2807 = vld [vmem:[%s1 + $0x10] sm:$0xf]
        %v2808 = vld [vmem:[%s1 + $0x14] sm:$0xf]
        %v2809 = vld [vmem:[%s1 + $0x18] sm:$0xf]
        %v2810 = vld [vmem:[%s1 + $0x1c] sm:$0xf]
        %v2811 = vld [vmem:[%s1 + $0x20] sm:$0xf]
        %v2812 = vld [vmem:[%s1 + $0x24] sm:$0xf]
        %v2813 = vld [vmem:[%s1 + $0x28] sm:$0xf]
        %v2814 = vld [vmem:[%s1 + $0x2c] sm:$0xf]
        %v2815 = vld [vmem:[%s1 + $0x30] sm:$0xf]
        %v2816 = vld [vmem:[%s1 + $0x34] sm:$0xf]
        %v2817 = vld [vmem:[%s1 + $0x38] sm:$0xf]
        %v2818 = vld [vmem:[%s1 + $0x3c] sm:$0xf]
        %v2819 = vld [vmem:[%s1 + $0x40] sm:$0xf]
        %v2820 = vld [vmem:[%s1 + $0x44] sm:$0xf]
        %v2821 = vld [vmem:[%s1 + $0x48] sm:$0xf]
        %v2822 = vld [vmem:[%s1 + $0x4c] sm:$0xf]
        %v2823 = vld [vmem:[%s1 + $0x50] sm:$0xf]
        %v2824 = vld [vmem:[%s1 + $0x54] sm:$0xf]
        %v2825 = vld [vmem:[%s1 + $0x58] sm:$0xf]
        %v2826 = vld [vmem:[%s1 + $0x5c] sm:$0xf]
        %v2827 = vld [vmem:[%s1 + $0x60] sm:$0xf]
        %v2828 = vld [vmem:[%s1 + $0x64] sm:$0xf]
        %v2829 = vld [vmem:[%s1 + $0x68] sm:$0xf]
        %v2830 = vld [vmem:[%s1 + $0x6c] sm:$0xf]
        %v2831 = vld [vmem:[%s1 + $0x70] sm:$0xf]
        %v2832 = vld [vmem:[%s1 + $0x74] sm:$0xf]
        %v2833 = vld [vmem:[%s1 + $0x78] sm:$0xf]
        %v2834 = vld [vmem:[%s1 + $0x7c] sm:$0xf]
        %v2835 = vld [vmem:[%s1 + $0x80] sm:$0xf]
        %v2836 = vld [vmem:[%s1 + $0x84] sm:$0xf]
        %v2837 = vld [vmem:[%s1 + $0x88] sm:$0xf]
        %v2838 = vld [vmem:[%s1 + $0x8c] sm:$0xf]
        %v2839 = vld [vmem:[%s2] sm:$0x1]
        %v2841 = vlaneseq
        %v2842 = vshrl.u32 %v2841, 7
        %v2843 = vsub.s32 0, %v2842
        %v2844 = vrot.slane %v2839, %v2843
        %v2846 = vcombine.low %v1944, %v1958
        %v2847 = vcombine.low %v1966, %v1968
        %v2848 = vcombine.low %v1951, %v1965
        %v2849 = vcombine.low %v1967, %v1969
        %v2851 = vunpack.c.l.s4 1966171168
        %v2852 = vunpack.c.0.s8 %v2851
        %v2853 = vlaneseq
        %v2854 = vshrl.u32 %v2853, 7
        %v2855 = vsub.s32 %v2852, %v2854
        %v2856 = vrot.slane %v2846, %v2855
        %v2858 = vunpack.c.l.s4 1966171168
        %v2859 = vunpack.c.0.s8 %v2858
        %v2860 = vlaneseq
        %v2861 = vshrl.u32 %v2860, 7
        %v2862 = vsub.s32 %v2859, %v2861
        %v2863 = vrot.slane %v2847, %v2862
        %v2865 = vunpack.c.l.s4 1966171168
        %v2866 = vunpack.c.0.s8 %v2865
        %v2867 = vlaneseq
        %v2868 = vshrl.u32 %v2867, 7
        %v2869 = vsub.s32 %v2866, %v2868
        %v2870 = vrot.slane %v2848, %v2869
        %v2872 = vunpack.c.l.s4 1966171168
        %v2873 = vunpack.c.0.s8 %v2872
        %v2874 = vlaneseq
        %v2875 = vshrl.u32 %v2874, 7
        %v2876 = vsub.s32 %v2873, %v2875
        %v2877 = vrot.slane %v2849, %v2876
        %v2878 = vcombine.low %v2856, %v2863
        %v2879 = vcombine.high %v2856, %v2863
        %v2880 = vcombine.low %v2870, %v2877
        %v2881 = vcombine.high %v2870, %v2877
        %v2883 = vunpack.c.l.s4 1966171168
        %v2884 = vunpack.c.0.s8 %v2883
        %v2885 = vlaneseq
        %v2886 = vshrl.u32 %v2885, 7
        %v2887 = vsub.s32 %v2884, %v2886
        %v2888 = vrot.slane %v2878, %v2887
        %v2890 = vunpack.c.l.s4 1966171168
        %v2891 = vunpack.c.0.s8 %v2890
        %v2892 = vlaneseq
        %v2893 = vshrl.u32 %v2892, 7
        %v2894 = vsub.s32 %v2891, %v2893
        %v2895 = vrot.slane %v2879, %v2894
        %v2897 = vunpack.c.l.s4 1966171168
        %v2898 = vunpack.c.0.s8 %v2897
        %v2899 = vlaneseq
        %v2900 = vshrl.u32 %v2899, 7
        %v2901 = vsub.s32 %v2898, %v2900
        %v2902 = vrot.slane %v2880, %v2901
        %v2904 = vunpack.c.l.s4 1966171168
        %v2905 = vunpack.c.0.s8 %v2904
        %v2906 = vlaneseq
        %v2907 = vshrl.u32 %v2906, 7
        %v2908 = vsub.s32 %v2905, %v2907
        %v2909 = vrot.slane %v2881, %v2908
        %v2910 = vcombine.low %v2888, %v2902
        %v2911 = vcombine.high %v2888, %v2902
        %v2912 = vcombine.low %v2895, %v2909
        %v2913 = vcombine.low %v1992, %v2034
        %v2914 = vcombine.low %v2048, %v2056
        %v2915 = vcombine.low %v2058, %v2041
        %v2916 = vcombine.low %v2055, %v2057
        %v2918 = vunpack.c.l.s4 1966171168
        %v2919 = vunpack.c.0.s8 %v2918
        %v2920 = vlaneseq
        %v2921 = vshrl.u32 %v2920, 7
        %v2922 = vsub.s32 %v2919, %v2921
        %v2923 = vrot.slane %v2913, %v2922
        %v2925 = vunpack.c.l.s4 1966171168
        %v2926 = vunpack.c.0.s8 %v2925
        %v2927 = vlaneseq
        %v2928 = vshrl.u32 %v2927, 7
        %v2929 = vsub.s32 %v2926, %v2928
        %v2930 = vrot.slane %v2914, %v2929
        %v2932 = vunpack.c.l.s4 1966171168
        %v2933 = vunpack.c.0.s8 %v2932
        %v2934 = vlaneseq
        %v2935 = vshrl.u32 %v2934, 7
        %v2936 = vsub.s32 %v2933, %v2935
        %v2937 = vrot.slane %v2915, %v2936
        %v2939 = vunpack.c.l.s4 1966171168
        %v2940 = vunpack.c.0.s8 %v2939
        %v2941 = vlaneseq
        %v2942 = vshrl.u32 %v2941, 7
        %v2943 = vsub.s32 %v2940, %v2942
        %v2944 = vrot.slane %v2916, %v2943
        %v2945 = vcombine.low %v2923, %v2930
        %v2946 = vcombine.high %v2923, %v2930
        %v2947 = vcombine.low %v2937, %v2944
        %v2948 = vcombine.high %v2937, %v2944
        %v2950 = vunpack.c.l.s4 1966171168
        %v2951 = vunpack.c.0.s8 %v2950
        %v2952 = vlaneseq
        %v2953 = vshrl.u32 %v2952, 7
        %v2954 = vsub.s32 %v2951, %v2953
        %v2955 = vrot.slane %v2945, %v2954
        %v2957 = vunpack.c.l.s4 1966171168
        %v2958 = vunpack.c.0.s8 %v2957
        %v2959 = vlaneseq
        %v2960 = vshrl.u32 %v2959, 7
        %v2961 = vsub.s32 %v2958, %v2960
        %v2962 = vrot.slane %v2946, %v2961
        %v2964 = vunpack.c.l.s4 1966171168
        %v2965 = vunpack.c.0.s8 %v2964
        %v2966 = vlaneseq
        %v2967 = vshrl.u32 %v2966, 7
        %v2968 = vsub.s32 %v2965, %v2967
        %v2969 = vrot.slane %v2947, %v2968
        %v2971 = vunpack.c.l.s4 1966171168
        %v2972 = vunpack.c.0.s8 %v2971
        %v2973 = vlaneseq
        %v2974 = vshrl.u32 %v2973, 7
        %v2975 = vsub.s32 %v2972, %v2974
        %v2976 = vrot.slane %v2948, %v2975
        %v2977 = vcombine.low %v2955, %v2969
        %v2978 = vcombine.high %v2955, %v2969
        %v2979 = vcombine.low %v2962, %v2976
        %v2980 = vcombine.low %v2059, %v2082
        %v2981 = vcombine.low %v2124, %v2138
        %v2982 = vcombine.low %v2146, %v2148
        %v2983 = vcombine.low %v2131, %v2145
        %v2985 = vunpack.c.l.s4 1966171168
        %v2986 = vunpack.c.0.s8 %v2985
        %v2987 = vlaneseq
        %v2988 = vshrl.u32 %v2987, 7
        %v2989 = vsub.s32 %v2986, %v2988
        %v2990 = vrot.slane %v2980, %v2989
        %v2992 = vunpack.c.l.s4 1966171168
        %v2993 = vunpack.c.0.s8 %v2992
        %v2994 = vlaneseq
        %v2995 = vshrl.u32 %v2994, 7
        %v2996 = vsub.s32 %v2993, %v2995
        %v2997 = vrot.slane %v2981, %v2996
        %v2999 = vunpack.c.l.s4 1966171168
        %v3000 = vunpack.c.0.s8 %v2999
        %v3001 = vlaneseq
        %v3002 = vshrl.u32 %v3001, 7
        %v3003 = vsub.s32 %v3000, %v3002
        %v3004 = vrot.slane %v2982, %v3003
        %v3006 = vunpack.c.l.s4 1966171168
        %v3007 = vunpack.c.0.s8 %v3006
        %v3008 = vlaneseq
        %v3009 = vshrl.u32 %v3008, 7
        %v3010 = vsub.s32 %v3007, %v3009
        %v3011 = vrot.slane %v2983, %v3010
        %v3012 = vcombine.low %v2990, %v2997
        %v3013 = vcombine.high %v2990, %v2997
        %v3014 = vcombine.low %v3004, %v3011
        %v3015 = vcombine.high %v3004, %v3011
        %v3017 = vunpack.c.l.s4 1966171168
        %v3018 = vunpack.c.0.s8 %v3017
        %v3019 = vlaneseq
        %v3020 = vshrl.u32 %v3019, 7
        %v3021 = vsub.s32 %v3018, %v3020
        %v3022 = vrot.slane %v3012, %v3021
        %v3024 = vunpack.c.l.s4 1966171168
        %v3025 = vunpack.c.0.s8 %v3024
        %v3026 = vlaneseq
        %v3027 = vshrl.u32 %v3026, 7
        %v3028 = vsub.s32 %v3025, %v3027
        %v3029 = vrot.slane %v3013, %v3028
        %v3031 = vunpack.c.l.s4 1966171168
        %v3032 = vunpack.c.0.s8 %v3031
        %v3033 = vlaneseq
        %v3034 = vshrl.u32 %v3033, 7
        %v3035 = vsub.s32 %v3032, %v3034
        %v3036 = vrot.slane %v3014, %v3035
        %v3038 = vunpack.c.l.s4 1966171168
        %v3039 = vunpack.c.0.s8 %v3038
        %v3040 = vlaneseq
        %v3041 = vshrl.u32 %v3040, 7
        %v3042 = vsub.s32 %v3039, %v3041
        %v3043 = vrot.slane %v3015, %v3042
        %v3044 = vcombine.low %v3022, %v3036
        %v3045 = vcombine.high %v3022, %v3036
        %v3046 = vcombine.low %v3029, %v3043
        %v3047 = vcombine.low %v2147, %v2149
        %v3048 = vcombine.low %v2172, %v2214
        %v3049 = vcombine.low %v2228, %v2236
        %v3050 = vcombine.low %v2238, %v2221
        %v3052 = vunpack.c.l.s4 1966171168
        %v3053 = vunpack.c.0.s8 %v3052
        %v3054 = vlaneseq
        %v3055 = vshrl.u32 %v3054, 7
        %v3056 = vsub.s32 %v3053, %v3055
        %v3057 = vrot.slane %v3047, %v3056
        %v3059 = vunpack.c.l.s4 1966171168
        %v3060 = vunpack.c.0.s8 %v3059
        %v3061 = vlaneseq
        %v3062 = vshrl.u32 %v3061, 7
        %v3063 = vsub.s32 %v3060, %v3062
        %v3064 = vrot.slane %v3048, %v3063
        %v3066 = vunpack.c.l.s4 1966171168
        %v3067 = vunpack.c.0.s8 %v3066
        %v3068 = vlaneseq
        %v3069 = vshrl.u32 %v3068, 7
        %v3070 = vsub.s32 %v3067, %v3069
        %v3071 = vrot.slane %v3049, %v3070
        %v3073 = vunpack.c.l.s4 1966171168
        %v3074 = vunpack.c.0.s8 %v3073
        %v3075 = vlaneseq
        %v3076 = vshrl.u32 %v3075, 7
        %v3077 = vsub.s32 %v3074, %v3076
        %v3078 = vrot.slane %v3050, %v3077
        %v3079 = vcombine.low %v3057, %v3064
        %v3080 = vcombine.high %v3057, %v3064
        %v3081 = vcombine.low %v3071, %v3078
        %v3082 = vcombine.high %v3071, %v3078
        %v3084 = vunpack.c.l.s4 1966171168
        %v3085 = vunpack.c.0.s8 %v3084
        %v3086 = vlaneseq
        %v3087 = vshrl.u32 %v3086, 7
        %v3088 = vsub.s32 %v3085, %v3087
        %v3089 = vrot.slane %v3079, %v3088
        %v3091 = vunpack.c.l.s4 1966171168
        %v3092 = vunpack.c.0.s8 %v3091
        %v3093 = vlaneseq
        %v3094 = vshrl.u32 %v3093, 7
        %v3095 = vsub.s32 %v3092, %v3094
        %v3096 = vrot.slane %v3080, %v3095
        %v3098 = vunpack.c.l.s4 1966171168
        %v3099 = vunpack.c.0.s8 %v3098
        %v3100 = vlaneseq
        %v3101 = vshrl.u32 %v3100, 7
        %v3102 = vsub.s32 %v3099, %v3101
        %v3103 = vrot.slane %v3081, %v3102
        %v3105 = vunpack.c.l.s4 1966171168
        %v3106 = vunpack.c.0.s8 %v3105
        %v3107 = vlaneseq
        %v3108 = vshrl.u32 %v3107, 7
        %v3109 = vsub.s32 %v3106, %v3108
        %v3110 = vrot.slane %v3082, %v3109
        %v3111 = vcombine.low %v3089, %v3103
        %v3112 = vcombine.high %v3089, %v3103
        %v3113 = vcombine.low %v3096, %v3110
        %v3114 = vcombine.low %v2235, %v2237
        %v3115 = vcombine.low %v2239, %v2262
        %v3116 = vcombine.low %v2304, %v2318
        %v3117 = vcombine.low %v2326, %v2328
        %v3119 = vunpack.c.l.s4 1966171168
        %v3120 = vunpack.c.0.s8 %v3119
        %v3121 = vlaneseq
        %v3122 = vshrl.u32 %v3121, 7
        %v3123 = vsub.s32 %v3120, %v3122
        %v3124 = vrot.slane %v3114, %v3123
        %v3126 = vunpack.c.l.s4 1966171168
        %v3127 = vunpack.c.0.s8 %v3126
        %v3128 = vlaneseq
        %v3129 = vshrl.u32 %v3128, 7
        %v3130 = vsub.s32 %v3127, %v3129
        %v3131 = vrot.slane %v3115, %v3130
        %v3133 = vunpack.c.l.s4 1966171168
        %v3134 = vunpack.c.0.s8 %v3133
        %v3135 = vlaneseq
        %v3136 = vshrl.u32 %v3135, 7
        %v3137 = vsub.s32 %v3134, %v3136
        %v3138 = vrot.slane %v3116, %v3137
        %v3140 = vunpack.c.l.s4 1966171168
        %v3141 = vunpack.c.0.s8 %v3140
        %v3142 = vlaneseq
        %v3143 = vshrl.u32 %v3142, 7
        %v3144 = vsub.s32 %v3141, %v3143
        %v3145 = vrot.slane %v3117, %v3144
        %v3146 = vcombine.low %v3124, %v3131
        %v3147 = vcombine.high %v3124, %v3131
        %v3148 = vcombine.low %v3138, %v3145
        %v3149 = vcombine.high %v3138, %v3145
        %v3151 = vunpack.c.l.s4 1966171168
        %v3152 = vunpack.c.0.s8 %v3151
        %v3153 = vlaneseq
        %v3154 = vshrl.u32 %v3153, 7
        %v3155 = vsub.s32 %v3152, %v3154
        %v3156 = vrot.slane %v3146, %v3155
        %v3158 = vunpack.c.l.s4 1966171168
        %v3159 = vunpack.c.0.s8 %v3158
        %v3160 = vlaneseq
        %v3161 = vshrl.u32 %v3160, 7
        %v3162 = vsub.s32 %v3159, %v3161
        %v3163 = vrot.slane %v3147, %v3162
        %v3165 = vunpack.c.l.s4 1966171168
        %v3166 = vunpack.c.0.s8 %v3165
        %v3167 = vlaneseq
        %v3168 = vshrl.u32 %v3167, 7
        %v3169 = vsub.s32 %v3166, %v3168
        %v3170 = vrot.slane %v3148, %v3169
        %v3172 = vunpack.c.l.s4 1966171168
        %v3173 = vunpack.c.0.s8 %v3172
        %v3174 = vlaneseq
        %v3175 = vshrl.u32 %v3174, 7
        %v3176 = vsub.s32 %v3173, %v3175
        %v3177 = vrot.slane %v3149, %v3176
        %v3178 = vcombine.low %v3156, %v3170
        %v3179 = vcombine.high %v3156, %v3170
        %v3180 = vcombine.low %v3163, %v3177
        %v3181 = vcombine.low %v2311, %v2325
        %v3182 = vcombine.low %v2327, %v2329
        %v3183 = vcombine.low %v2352, %v2394
        %v3184 = vcombine.low %v2408, %v2416
        %v3186 = vunpack.c.l.s4 1966171168
        %v3187 = vunpack.c.0.s8 %v3186
        %v3188 = vlaneseq
        %v3189 = vshrl.u32 %v3188, 7
        %v3190 = vsub.s32 %v3187, %v3189
        %v3191 = vrot.slane %v3181, %v3190
        %v3193 = vunpack.c.l.s4 1966171168
        %v3194 = vunpack.c.0.s8 %v3193
        %v3195 = vlaneseq
        %v3196 = vshrl.u32 %v3195, 7
        %v3197 = vsub.s32 %v3194, %v3196
        %v3198 = vrot.slane %v3182, %v3197
        %v3200 = vunpack.c.l.s4 1966171168
        %v3201 = vunpack.c.0.s8 %v3200
        %v3202 = vlaneseq
        %v3203 = vshrl.u32 %v3202, 7
        %v3204 = vsub.s32 %v3201, %v3203
        %v3205 = vrot.slane %v3183, %v3204
        %v3207 = vunpack.c.l.s4 1966171168
        %v3208 = vunpack.c.0.s8 %v3207
        %v3209 = vlaneseq
        %v3210 = vshrl.u32 %v3209, 7
        %v3211 = vsub.s32 %v3208, %v3210
        %v3212 = vrot.slane %v3184, %v3211
        %v3213 = vcombine.low %v3191, %v3198
        %v3214 = vcombine.high %v3191, %v3198
        %v3215 = vcombine.low %v3205, %v3212
        %v3216 = vcombine.high %v3205, %v3212
        %v3218 = vunpack.c.l.s4 1966171168
        %v3219 = vunpack.c.0.s8 %v3218
        %v3220 = vlaneseq
        %v3221 = vshrl.u32 %v3220, 7
        %v3222 = vsub.s32 %v3219, %v3221
        %v3223 = vrot.slane %v3213, %v3222
        %v3225 = vunpack.c.l.s4 1966171168
        %v3226 = vunpack.c.0.s8 %v3225
        %v3227 = vlaneseq
        %v3228 = vshrl.u32 %v3227, 7
        %v3229 = vsub.s32 %v3226, %v3228
        %v3230 = vrot.slane %v3214, %v3229
        %v3232 = vunpack.c.l.s4 1966171168
        %v3233 = vunpack.c.0.s8 %v3232
        %v3234 = vlaneseq
        %v3235 = vshrl.u32 %v3234, 7
        %v3236 = vsub.s32 %v3233, %v3235
        %v3237 = vrot.slane %v3215, %v3236
        %v3239 = vunpack.c.l.s4 1966171168
        %v3240 = vunpack.c.0.s8 %v3239
        %v3241 = vlaneseq
        %v3242 = vshrl.u32 %v3241, 7
        %v3243 = vsub.s32 %v3240, %v3242
        %v3244 = vrot.slane %v3216, %v3243
        %v3245 = vcombine.low %v3223, %v3237
        %v3246 = vcombine.high %v3223, %v3237
        %v3247 = vcombine.low %v3230, %v3244
        %v3248 = vcombine.low %v2418, %v2401
        %v3249 = vcombine.low %v2415, %v2417
        %v3250 = vcombine.low %v2419, %v2442
        %v3251 = vcombine.low %v2484, %v2498
        %v3253 = vunpack.c.l.s4 1966171168
        %v3254 = vunpack.c.0.s8 %v3253
        %v3255 = vlaneseq
        %v3256 = vshrl.u32 %v3255, 7
        %v3257 = vsub.s32 %v3254, %v3256
        %v3258 = vrot.slane %v3248, %v3257
        %v3260 = vunpack.c.l.s4 1966171168
        %v3261 = vunpack.c.0.s8 %v3260
        %v3262 = vlaneseq
        %v3263 = vshrl.u32 %v3262, 7
        %v3264 = vsub.s32 %v3261, %v3263
        %v3265 = vrot.slane %v3249, %v3264
        %v3267 = vunpack.c.l.s4 1966171168
        %v3268 = vunpack.c.0.s8 %v3267
        %v3269 = vlaneseq
        %v3270 = vshrl.u32 %v3269, 7
        %v3271 = vsub.s32 %v3268, %v3270
        %v3272 = vrot.slane %v3250, %v3271
        %v3274 = vunpack.c.l.s4 1966171168
        %v3275 = vunpack.c.0.s8 %v3274
        %v3276 = vlaneseq
        %v3277 = vshrl.u32 %v3276, 7
        %v3278 = vsub.s32 %v3275, %v3277
        %v3279 = vrot.slane %v3251, %v3278
        %v3280 = vcombine.low %v3258, %v3265
        %v3281 = vcombine.high %v3258, %v3265
        %v3282 = vcombine.low %v3272, %v3279
        %v3283 = vcombine.high %v3272, %v3279
        %v3285 = vunpack.c.l.s4 1966171168
        %v3286 = vunpack.c.0.s8 %v3285
        %v3287 = vlaneseq
        %v3288 = vshrl.u32 %v3287, 7
        %v3289 = vsub.s32 %v3286, %v3288
        %v3290 = vrot.slane %v3280, %v3289
        %v3292 = vunpack.c.l.s4 1966171168
        %v3293 = vunpack.c.0.s8 %v3292
        %v3294 = vlaneseq
        %v3295 = vshrl.u32 %v3294, 7
        %v3296 = vsub.s32 %v3293, %v3295
        %v3297 = vrot.slane %v3281, %v3296
        %v3299 = vunpack.c.l.s4 1966171168
        %v3300 = vunpack.c.0.s8 %v3299
        %v3301 = vlaneseq
        %v3302 = vshrl.u32 %v3301, 7
        %v3303 = vsub.s32 %v3300, %v3302
        %v3304 = vrot.slane %v3282, %v3303
        %v3306 = vunpack.c.l.s4 1966171168
        %v3307 = vunpack.c.0.s8 %v3306
        %v3308 = vlaneseq
        %v3309 = vshrl.u32 %v3308, 7
        %v3310 = vsub.s32 %v3307, %v3309
        %v3311 = vrot.slane %v3283, %v3310
        %v3312 = vcombine.low %v3290, %v3304
        %v3313 = vcombine.high %v3290, %v3304
        %v3314 = vcombine.low %v3297, %v3311
        %v3315 = vcombine.low %v2506, %v2508
        %v3316 = vcombine.low %v2491, %v2505
        %v3317 = vcombine.low %v2507, %v2509
        %v3318 = vcombine.low %v2532, %v2574
        %v3320 = vunpack.c.l.s4 1966171168
        %v3321 = vunpack.c.0.s8 %v3320
        %v3322 = vlaneseq
        %v3323 = vshrl.u32 %v3322, 7
        %v3324 = vsub.s32 %v3321, %v3323
        %v3325 = vrot.slane %v3315, %v3324
        %v3327 = vunpack.c.l.s4 1966171168
        %v3328 = vunpack.c.0.s8 %v3327
        %v3329 = vlaneseq
        %v3330 = vshrl.u32 %v3329, 7
        %v3331 = vsub.s32 %v3328, %v3330
        %v3332 = vrot.slane %v3316, %v3331
        %v3334 = vunpack.c.l.s4 1966171168
        %v3335 = vunpack.c.0.s8 %v3334
        %v3336 = vlaneseq
        %v3337 = vshrl.u32 %v3336, 7
        %v3338 = vsub.s32 %v3335, %v3337
        %v3339 = vrot.slane %v3317, %v3338
        %v3341 = vunpack.c.l.s4 1966171168
        %v3342 = vunpack.c.0.s8 %v3341
        %v3343 = vlaneseq
        %v3344 = vshrl.u32 %v3343, 7
        %v3345 = vsub.s32 %v3342, %v3344
        %v3346 = vrot.slane %v3318, %v3345
        %v3347 = vcombine.low %v3325, %v3332
        %v3348 = vcombine.high %v3325, %v3332
        %v3349 = vcombine.low %v3339, %v3346
        %v3350 = vcombine.high %v3339, %v3346
        %v3352 = vunpack.c.l.s4 1966171168
        %v3353 = vunpack.c.0.s8 %v3352
        %v3354 = vlaneseq
        %v3355 = vshrl.u32 %v3354, 7
        %v3356 = vsub.s32 %v3353, %v3355
        %v3357 = vrot.slane %v3347, %v3356
        %v3359 = vunpack.c.l.s4 1966171168
        %v3360 = vunpack.c.0.s8 %v3359
        %v3361 = vlaneseq
        %v3362 = vshrl.u32 %v3361, 7
        %v3363 = vsub.s32 %v3360, %v3362
        %v3364 = vrot.slane %v3348, %v3363
        %v3366 = vunpack.c.l.s4 1966171168
        %v3367 = vunpack.c.0.s8 %v3366
        %v3368 = vlaneseq
        %v3369 = vshrl.u32 %v3368, 7
        %v3370 = vsub.s32 %v3367, %v3369
        %v3371 = vrot.slane %v3349, %v3370
        %v3373 = vunpack.c.l.s4 1966171168
        %v3374 = vunpack.c.0.s8 %v3373
        %v3375 = vlaneseq
        %v3376 = vshrl.u32 %v3375, 7
        %v3377 = vsub.s32 %v3374, %v3376
        %v3378 = vrot.slane %v3350, %v3377
        %v3379 = vcombine.low %v3357, %v3371
        %v3380 = vcombine.high %v3357, %v3371
        %v3381 = vcombine.low %v3364, %v3378
        %v3382 = vcombine.low %v2588, %v2596
        %v3383 = vcombine.low %v2598, %v2581
        %v3384 = vcombine.low %v2595, %v2597
        %v3385 = vcombine.low %v2599, %v2622
        %v3387 = vunpack.c.l.s4 1966171168
        %v3388 = vunpack.c.0.s8 %v3387
        %v3389 = vlaneseq
        %v3390 = vshrl.u32 %v3389, 7
        %v3391 = vsub.s32 %v3388, %v3390
        %v3392 = vrot.slane %v3382, %v3391
        %v3394 = vunpack.c.l.s4 1966171168
        %v3395 = vunpack.c.0.s8 %v3394
        %v3396 = vlaneseq
        %v3397 = vshrl.u32 %v3396, 7
        %v3398 = vsub.s32 %v3395, %v3397
        %v3399 = vrot.slane %v3383, %v3398
        %v3401 = vunpack.c.l.s4 1966171168
        %v3402 = vunpack.c.0.s8 %v3401
        %v3403 = vlaneseq
        %v3404 = vshrl.u32 %v3403, 7
        %v3405 = vsub.s32 %v3402, %v3404
        %v3406 = vrot.slane %v3384, %v3405
        %v3408 = vunpack.c.l.s4 1966171168
        %v3409 = vunpack.c.0.s8 %v3408
        %v3410 = vlaneseq
        %v3411 = vshrl.u32 %v3410, 7
        %v3412 = vsub.s32 %v3409, %v3411
        %v3413 = vrot.slane %v3385, %v3412
        %v3414 = vcombine.low %v3392, %v3399
        %v3415 = vcombine.high %v3392, %v3399
        %v3416 = vcombine.low %v3406, %v3413
        %v3417 = vcombine.high %v3406, %v3413
        %v3419 = vunpack.c.l.s4 1966171168
        %v3420 = vunpack.c.0.s8 %v3419
        %v3421 = vlaneseq
        %v3422 = vshrl.u32 %v3421, 7
        %v3423 = vsub.s32 %v3420, %v3422
        %v3424 = vrot.slane %v3414, %v3423
        %v3426 = vunpack.c.l.s4 1966171168
        %v3427 = vunpack.c.0.s8 %v3426
        %v3428 = vlaneseq
        %v3429 = vshrl.u32 %v3428, 7
        %v3430 = vsub.s32 %v3427, %v3429
        %v3431 = vrot.slane %v3415, %v3430
        %v3433 = vunpack.c.l.s4 1966171168
        %v3434 = vunpack.c.0.s8 %v3433
        %v3435 = vlaneseq
        %v3436 = vshrl.u32 %v3435, 7
        %v3437 = vsub.s32 %v3434, %v3436
        %v3438 = vrot.slane %v3416, %v3437
        %v3440 = vunpack.c.l.s4 1966171168
        %v3441 = vunpack.c.0.s8 %v3440
        %v3442 = vlaneseq
        %v3443 = vshrl.u32 %v3442, 7
        %v3444 = vsub.s32 %v3441, %v3443
        %v3445 = vrot.slane %v3417, %v3444
        %v3446 = vcombine.low %v3424, %v3438
        %v3447 = vcombine.high %v3424, %v3438
        %v3448 = vcombine.low %v3431, %v3445
        %v3449 = vcombine.low %v2664, %v2678
        %v3450 = vcombine.low %v2686, %v2688
        %v3451 = vcombine.low %v2671, %v2685
        %v3452 = vcombine.low %v2687, %v2689
        %v3454 = vunpack.c.l.s4 1966171168
        %v3455 = vunpack.c.0.s8 %v3454
        %v3456 = vlaneseq
        %v3457 = vshrl.u32 %v3456, 7
        %v3458 = vsub.s32 %v3455, %v3457
        %v3459 = vrot.slane %v3449, %v3458
        %v3461 = vunpack.c.l.s4 1966171168
        %v3462 = vunpack.c.0.s8 %v3461
        %v3463 = vlaneseq
        %v3464 = vshrl.u32 %v3463, 7
        %v3465 = vsub.s32 %v3462, %v3464
        %v3466 = vrot.slane %v3450, %v3465
        %v3468 = vunpack.c.l.s4 1966171168
        %v3469 = vunpack.c.0.s8 %v3468
        %v3470 = vlaneseq
        %v3471 = vshrl.u32 %v3470, 7
        %v3472 = vsub.s32 %v3469, %v3471
        %v3473 = vrot.slane %v3451, %v3472
        %v3475 = vunpack.c.l.s4 1966171168
        %v3476 = vunpack.c.0.s8 %v3475
        %v3477 = vlaneseq
        %v3478 = vshrl.u32 %v3477, 7
        %v3479 = vsub.s32 %v3476, %v3478
        %v3480 = vrot.slane %v3452, %v3479
        %v3481 = vcombine.low %v3459, %v3466
        %v3482 = vcombine.high %v3459, %v3466
        %v3483 = vcombine.low %v3473, %v3480
        %v3484 = vcombine.high %v3473, %v3480
        %v3486 = vunpack.c.l.s4 1966171168
        %v3487 = vunpack.c.0.s8 %v3486
        %v3488 = vlaneseq
        %v3489 = vshrl.u32 %v3488, 7
        %v3490 = vsub.s32 %v3487, %v3489
        %v3491 = vrot.slane %v3481, %v3490
        %v3493 = vunpack.c.l.s4 1966171168
        %v3494 = vunpack.c.0.s8 %v3493
        %v3495 = vlaneseq
        %v3496 = vshrl.u32 %v3495, 7
        %v3497 = vsub.s32 %v3494, %v3496
        %v3498 = vrot.slane %v3482, %v3497
        %v3500 = vunpack.c.l.s4 1966171168
        %v3501 = vunpack.c.0.s8 %v3500
        %v3502 = vlaneseq
        %v3503 = vshrl.u32 %v3502, 7
        %v3504 = vsub.s32 %v3501, %v3503
        %v3505 = vrot.slane %v3483, %v3504
        %v3507 = vunpack.c.l.s4 1966171168
        %v3508 = vunpack.c.0.s8 %v3507
        %v3509 = vlaneseq
        %v3510 = vshrl.u32 %v3509, 7
        %v3511 = vsub.s32 %v3508, %v3510
        %v3512 = vrot.slane %v3484, %v3511
        %v3513 = vcombine.low %v3491, %v3505
        %v3514 = vcombine.high %v3491, %v3505
        %v3515 = vcombine.low %v3498, %v3512
        %v3516 = vcombine.low %v2712, %v2754
        %v3517 = vcombine.low %v2768, %v2776
        %v3518 = vcombine.low %v2778, %v2761
        %v3519 = vcombine.low %v2775, %v2777
        %v3521 = vunpack.c.l.s4 1966171168
        %v3522 = vunpack.c.0.s8 %v3521
        %v3523 = vlaneseq
        %v3524 = vshrl.u32 %v3523, 7
        %v3525 = vsub.s32 %v3522, %v3524
        %v3526 = vrot.slane %v3516, %v3525
        %v3528 = vunpack.c.l.s4 1966171168
        %v3529 = vunpack.c.0.s8 %v3528
        %v3530 = vlaneseq
        %v3531 = vshrl.u32 %v3530, 7
        %v3532 = vsub.s32 %v3529, %v3531
        %v3533 = vrot.slane %v3517, %v3532
        %v3535 = vunpack.c.l.s4 1966171168
        %v3536 = vunpack.c.0.s8 %v3535
        %v3537 = vlaneseq
        %v3538 = vshrl.u32 %v3537, 7
        %v3539 = vsub.s32 %v3536, %v3538
        %v3540 = vrot.slane %v3518, %v3539
        %v3542 = vunpack.c.l.s4 1966171168
        %v3543 = vunpack.c.0.s8 %v3542
        %v3544 = vlaneseq
        %v3545 = vshrl.u32 %v3544, 7
        %v3546 = vsub.s32 %v3543, %v3545
        %v3547 = vrot.slane %v3519, %v3546
        %v3548 = vcombine.low %v3526, %v3533
        %v3549 = vcombine.high %v3526, %v3533
        %v3550 = vcombine.low %v3540, %v3547
        %v3551 = vcombine.high %v3540, %v3547
        %v3553 = vunpack.c.l.s4 1966171168
        %v3554 = vunpack.c.0.s8 %v3553
        %v3555 = vlaneseq
        %v3556 = vshrl.u32 %v3555, 7
        %v3557 = vsub.s32 %v3554, %v3556
        %v3558 = vrot.slane %v3548, %v3557
        %v3560 = vunpack.c.l.s4 1966171168
        %v3561 = vunpack.c.0.s8 %v3560
        %v3562 = vlaneseq
        %v3563 = vshrl.u32 %v3562, 7
        %v3564 = vsub.s32 %v3561, %v3563
        %v3565 = vrot.slane %v3549, %v3564
        %v3567 = vunpack.c.l.s4 1966171168
        %v3568 = vunpack.c.0.s8 %v3567
        %v3569 = vlaneseq
        %v3570 = vshrl.u32 %v3569, 7
        %v3571 = vsub.s32 %v3568, %v3570
        %v3572 = vrot.slane %v3550, %v3571
        %v3574 = vunpack.c.l.s4 1966171168
        %v3575 = vunpack.c.0.s8 %v3574
        %v3576 = vlaneseq
        %v3577 = vshrl.u32 %v3576, 7
        %v3578 = vsub.s32 %v3575, %v3577
        %v3579 = vrot.slane %v3551, %v3578
        %v3580 = vcombine.low %v3558, %v3572
        %v3581 = vcombine.high %v3558, %v3572
        %v3582 = vcombine.low %v3565, %v3579
        %v3583 = vcombine.low %v2779, %v2802
        %v3585 = vunpack.c.l.s4 1966171168
        %v3586 = vunpack.c.0.s8 %v3585
        %v3587 = vlaneseq
        %v3588 = vshrl.u32 %v3587, 7
        %v3589 = vsub.s32 %v3586, %v3588
        %v3590 = vrot.slane %v3583, %v3589
        %v3591 = vcombine.high %v3590, %v3590
        %v3593 = vunpack.c.l.s4 1966171168
        %v3594 = vunpack.c.0.s8 %v3593
        %v3595 = vlaneseq
        %v3596 = vshrl.u32 %v3595, 7
        %v3597 = vsub.s32 %v3594, %v3596
        %v3598 = vrot.slane %v3590, %v3597
        %v3600 = vunpack.c.l.s4 1966171168
        %v3601 = vunpack.c.0.s8 %v3600
        %v3602 = vlaneseq
        %v3603 = vshrl.u32 %v3602, 7
        %v3604 = vsub.s32 %v3601, %v3603
        %v3605 = vrot.slane %v3591, %v3604
        %v3606 = vcombine.high %v3598, %v3598
        %v3667 = vunpack.c.l.b16 %v2803
        %v3668 = vunpack.c.l.b16 %v2804
        %v3669 = vunpack.c.l.b16 %v2805
        %v3670 = vunpack.c.l.b16 %v2806
        %v3671 = vunpack.c.l.b16 %v2807
        %v3672 = vunpack.c.l.b16 %v2808
        %v3673 = vunpack.c.l.b16 %v2809
        %v3674 = vunpack.c.l.b16 %v2810
        %v3675 = vunpack.c.l.b16 %v2811
        %v3676 = vunpack.c.l.b16 %v2812
        %v3677 = vunpack.c.l.b16 %v2813
        %v3678 = vunpack.c.l.b16 %v2814
        %v3679 = vunpack.c.l.b16 %v2815
        %v3680 = vunpack.c.l.b16 %v2816
        %v3681 = vunpack.c.l.b16 %v2817
        %v3682 = vunpack.c.l.b16 %v2818
        %v3683 = vunpack.c.l.b16 %v2819
        %v3684 = vunpack.c.l.b16 %v2820
        %v3685 = vunpack.c.l.b16 %v2821
        %v3686 = vunpack.c.l.b16 %v2822
        %v3687 = vunpack.c.l.b16 %v2823
        %v3688 = vunpack.c.l.b16 %v2824
        %v3689 = vunpack.c.l.b16 %v2825
        %v3690 = vunpack.c.l.b16 %v2826
        %v3691 = vunpack.c.l.b16 %v2827
        %v3692 = vunpack.c.l.b16 %v2828
        %v3693 = vunpack.c.l.b16 %v2829
        %v3694 = vunpack.c.l.b16 %v2830
        %v3695 = vunpack.c.l.b16 %v2831
        %v3696 = vunpack.c.l.b16 %v2832
        %v3697 = vunpack.c.l.b16 %v2833
        %v3698 = vunpack.c.l.b16 %v2834
        %v3699 = vunpack.c.l.b16 %v2835
        %v3700 = vunpack.c.l.b16 %v2836
        %v3701 = vunpack.c.l.b16 %v2837
        %v3702 = vunpack.c.l.b16 %v2838
        %v3703 = vpack.c.b16 %v3668, %v3667
        %v3704 = vpack.c.b16 %v3670, %v3669
        %v3705 = vpack.c.b16 %v3672, %v3671
        %v3706 = vpack.c.b16 %v3674, %v3673
        %v3707 = vpack.c.b16 %v3676, %v3675
        %v3708 = vpack.c.b16 %v3678, %v3677
        %v3709 = vpack.c.b16 %v3680, %v3679
        %v3710 = vpack.c.b16 %v3682, %v3681
        %v3711 = vpack.c.b16 %v3684, %v3683
        %v3712 = vpack.c.b16 %v3686, %v3685
        %v3713 = vpack.c.b16 %v3688, %v3687
        %v3714 = vpack.c.b16 %v3690, %v3689
        %v3715 = vpack.c.b16 %v3692, %v3691
        %v3716 = vpack.c.b16 %v3694, %v3693
        %v3717 = vpack.c.b16 %v3696, %v3695
        %v3718 = vpack.c.b16 %v3698, %v3697
        %v3719 = vpack.c.b16 %v3700, %v3699
        %v3720 = vpack.c.b16 %v3702, %v3701
        %v3740 = vsel %vm1590, %v2911, 0
        %v3743 = vsel %vm1590, %v2978, 0
        %v3746 = vsel %vm1590, %v3045, 0
        %v3749 = vsel %vm1590, %v3112, 0
        %v3752 = vsel %vm1590, %v3179, 0
        %v3755 = vsel %vm1590, %v3246, 0
        %v3758 = vsel %vm1590, %v3313, 0
        %v3761 = vsel %vm1590, %v3380, 0
        %v3764 = vsel %vm1590, %v3447, 0
        %v3767 = vsel %vm1590, %v3514, 0
        %v3770 = vsel %vm1590, %v3581, 0
        %v3773 = vsel %vm1590, %v3606, 0
        %3775 = vmatprep.subr.bf16.mxu0 0
        %3776 = vmatpush1.bf16.msra.mxu0 %v3703
        %3777 = vmatprep.subr.bf16.mxu0 0
        %3778 = vmatpush1.bf16.msra.mxu0 %v3704
        %3779 = vmatprep.subr.bf16.mxu0 0
        %3780 = vmatpush1.bf16.msra.mxu0 %v3705
        %3781 = vmatprep.subr.bf16.mxu0 0
        %3782 = vmatpush1.bf16.msra.mxu0 %v3706
        %3783 = vmatprep.subr.bf16.mxu0 0
        %3784 = vmatpush1.bf16.msra.mxu0 %v3707
        %3785 = vmatprep.subr.bf16.mxu0 0
        %3786 = vmatpush1.bf16.msra.mxu0 %v3708
        %3787 = vmatprep.subr.bf16.mxu0 0
        %3788 = vmatpush1.bf16.msra.mxu0 %v3709
        %3789 = vmatprep.subr.bf16.mxu0 0
        %3790 = vmatpush1.bf16.msra.mxu0 %v3710
        %3791 = vmatprep.subr.bf16.mxu0 0
        %3792 = vmatpush1.bf16.msra.mxu0 %v3711
        %3793 = vmatprep.subr.bf16.mxu0 0
        %3794 = vmatpush1.bf16.msra.mxu0 %v3712
        %3795 = vmatprep.subr.bf16.mxu0 0
        %3796 = vmatpush1.bf16.msra.mxu0 %v3713
        %3797 = vmatprep.subr.bf16.mxu0 0
        %3798 = vmatpush1.bf16.msra.mxu0 %v3714
        %3799 = vmatprep.subr.bf16.mxu0 0
        %3800 = vmatpush1.bf16.msra.mxu0 %v3715
        %3801 = vmatprep.subr.bf16.mxu0 0
        %3802 = vmatpush1.bf16.msra.mxu0 %v3716
        %3803 = vmatprep.subr.bf16.mxu0 0
        %3804 = vmatpush1.bf16.msra.mxu0 %v3717
        %3805 = vmatprep.subr.bf16.mxu0 0
        %3806 = vmatpush1.bf16.msra.mxu0 %v3718
        %3807 = vmatprep.mubr.bf16.mxu0 %v2912
        %3808 = vmatmul.mubr.bf16.gmra.mrb[0].mxu0 %v2910
        %v3809 = vpop.f32.mrb[0].mxu0
        %v3810 = vadd.f32 %v2844, %v3809
        %v3811 = vpop.f32.mrb[0].mxu0
        %v3812 = vpop.f32.mrb[0].mxu0
        %v3813 = vadd.f32 %v2844, %v3812
        %v3814 = vpop.f32.mrb[0].mxu0
        %3815 = vmatprep.mubr.bf16.mxu0 %v2979
        %3816 = vmatmul.mubr.bf16.gmra.mrb[0].mxu0 %v2977
        %v3817 = vpop.f32.mrb[0].mxu0
        %v3818 = vadd.f32 %v2844, %v3817
        %v3819 = vpop.f32.mrb[0].mxu0
        %v3820 = vpop.f32.mrb[0].mxu0
        %v3821 = vadd.f32 %v2844, %v3820
        %v3822 = vpop.f32.mrb[0].mxu0
        %3823 = vmatprep.mubr.bf16.mxu0 %v3046
        %3824 = vmatmul.mubr.bf16.gmra.mrb[0].mxu0 %v3044
        %v3825 = vpop.f32.mrb[0].mxu0
        %v3826 = vadd.f32 %v2844, %v3825
        %v3827 = vpop.f32.mrb[0].mxu0
        %v3828 = vpop.f32.mrb[0].mxu0
        %v3829 = vadd.f32 %v2844, %v3828
        %v3830 = vpop.f32.mrb[0].mxu0
        %3831 = vmatprep.mubr.bf16.mxu0 %v3113
        %3832 = vmatmul.mubr.bf16.gmra.mrb[0].mxu0 %v3111
        %v3833 = vpop.f32.mrb[0].mxu0
        %v3834 = vadd.f32 %v2844, %v3833
        %v3835 = vpop.f32.mrb[0].mxu0
        %v3836 = vpop.f32.mrb[0].mxu0
        %v3837 = vadd.f32 %v2844, %v3836
        %v3838 = vpop.f32.mrb[0].mxu0
        %3839 = vmatprep.mubr.bf16.mxu0 %v3180
        %3840 = vmatmul.mubr.bf16.gmra.mrb[0].mxu0 %v3178
        %v3841 = vpop.f32.mrb[0].mxu0
        %v3842 = vadd.f32 %v2844, %v3841
        %v3843 = vpop.f32.mrb[0].mxu0
        %v3844 = vpop.f32.mrb[0].mxu0
        %v3845 = vadd.f32 %v2844, %v3844
        %v3846 = vpop.f32.mrb[0].mxu0
        %3847 = vmatprep.mubr.bf16.mxu0 %v3247
        %3848 = vmatmul.mubr.bf16.gmra.mrb[0].mxu0 %v3245
        %v3849 = vpop.f32.mrb[0].mxu0
        %v3850 = vadd.f32 %v2844, %v3849
        %v3851 = vpop.f32.mrb[0].mxu0
        %v3852 = vpop.f32.mrb[0].mxu0
        %v3853 = vadd.f32 %v2844, %v3852
        %v3854 = vpop.f32.mrb[0].mxu0
        %3855 = vmatprep.mubr.bf16.mxu0 %v3314
        %3856 = vmatmul.mubr.bf16.gmra.mrb[0].mxu0 %v3312
        %v3857 = vpop.f32.mrb[0].mxu0
        %v3858 = vadd.f32 %v2844, %v3857
        %v3859 = vpop.f32.mrb[0].mxu0
        %v3860 = vpop.f32.mrb[0].mxu0
        %v3861 = vadd.f32 %v2844, %v3860
        %v3862 = vpop.f32.mrb[0].mxu0
        %3863 = vmatprep.mubr.bf16.mxu0 %v3381
        %3864 = vmatmul.mubr.bf16.gmra.mrb[0].mxu0 %v3379
        %v3865 = vpop.f32.mrb[0].mxu0
        %v3866 = vadd.f32 %v2844, %v3865
        %v3867 = vpop.f32.mrb[0].mxu0
        %v3868 = vpop.f32.mrb[0].mxu0
        %v3869 = vadd.f32 %v2844, %v3868
        %v3870 = vpop.f32.mrb[0].mxu0
        %3871 = vmatprep.mubr.bf16.mxu0 %v3448
        %3872 = vmatmul.mubr.bf16.gmra.mrb[0].mxu0 %v3446
        %v3873 = vpop.f32.mrb[0].mxu0
        %v3874 = vadd.f32 %v2844, %v3873
        %v3875 = vpop.f32.mrb[0].mxu0
        %v3876 = vpop.f32.mrb[0].mxu0
        %v3877 = vadd.f32 %v2844, %v3876
        %v3878 = vpop.f32.mrb[0].mxu0
        %3879 = vmatprep.mubr.bf16.mxu0 %v3515
        %3880 = vmatmul.mubr.bf16.gmra.mrb[0].mxu0 %v3513
        %v3881 = vpop.f32.mrb[0].mxu0
        %v3882 = vadd.f32 %v2844, %v3881
        %v3883 = vpop.f32.mrb[0].mxu0
        %v3884 = vpop.f32.mrb[0].mxu0
        %v3885 = vadd.f32 %v2844, %v3884
        %v3886 = vpop.f32.mrb[0].mxu0
        %3887 = vmatprep.mubr.bf16.mxu0 %v3582
        %3888 = vmatmul.mubr.bf16.gmra.mrb[0].mxu0 %v3580
        %v3889 = vpop.f32.mrb[0].mxu0
        %v3890 = vadd.f32 %v2844, %v3889
        %v3891 = vpop.f32.mrb[0].mxu0
        %v3892 = vpop.f32.mrb[0].mxu0
        %v3893 = vadd.f32 %v2844, %v3892
        %v3894 = vpop.f32.mrb[0].mxu0
        %3895 = vmatprep.mubr.bf16.mxu0 %v3605
        %3896 = vmatmul.mubr.bf16.gmra.mrb[0].mxu0 %v3598
        %v3897 = vpop.f32.mrb[0].mxu0
        %v3898 = vadd.f32 %v2844, %v3897
        %v3899 = vpop.f32.mrb[0].mxu0
        %v3900 = vpop.f32.mrb[0].mxu0
        %v3901 = vpop.f32.mrb[0].mxu0
        %3902 = vdwg.mxu0
        %3903 = vmatprep.subr.bf16.mxu0 0
        %3904 = vmatpush1.bf16.msra.mxu0 %v3719
        %3905 = vmatprep.subr.bf16.mxu0 0
        %3906 = vmatpush1.bf16.msra.mxu0 %v3720
        %3907 = vmatprep.subr.bf16.mxu0 0
        %3908 = vmatpush1.bf16.msra.mxu0 0
        %3909 = vmatprep.subr.bf16.mxu0 0
        %3910 = vmatpush1.bf16.msra.mxu0 0
        %3911 = vmatprep.subr.bf16.mxu0 0
        %3912 = vmatpush1.bf16.msra.mxu0 0
        %3913 = vmatprep.subr.bf16.mxu0 0
        %3914 = vmatpush1.bf16.msra.mxu0 0
        %3915 = vmatprep.subr.bf16.mxu0 0
        %3916 = vmatpush1.bf16.msra.mxu0 0
        %3917 = vmatprep.subr.bf16.mxu0 0
        %3918 = vmatpush1.bf16.msra.mxu0 0
        %3919 = vmatprep.subr.bf16.mxu0 0
        %3920 = vmatpush1.bf16.msra.mxu0 0
        %3921 = vmatprep.subr.bf16.mxu0 0
        %3922 = vmatpush1.bf16.msra.mxu0 0
        %3923 = vmatprep.subr.bf16.mxu0 0
        %3924 = vmatpush1.bf16.msra.mxu0 0
        %3925 = vmatprep.subr.bf16.mxu0 0
        %3926 = vmatpush1.bf16.msra.mxu0 0
        %3927 = vmatprep.subr.bf16.mxu0 0
        %3928 = vmatpush1.bf16.msra.mxu0 0
        %3929 = vmatprep.subr.bf16.mxu0 0
        %3930 = vmatpush1.bf16.msra.mxu0 0
        %3931 = vmatprep.subr.bf16.mxu0 0
        %3932 = vmatpush1.bf16.msra.mxu0 0
        %3933 = vmatprep.subr.bf16.mxu0 0
        %3934 = vmatpush1.bf16.msra.mxu0 0
        %3935 = vmatprep.mubr.bf16.mxu0 0
        %3936 = vmatmul.mubr.bf16.gmra.mrb[0].mxu0 %v3740
        %v3937 = vpop.f32.mrb[0].mxu0
        %v3938 = vadd.f32 %v3810, %v3937
        %v3939 = vpop.f32.mrb[0].mxu0
        %v3940 = vpop.f32.mrb[0].mxu0
        %v3941 = vadd.f32 %v3813, %v3940
        %v3942 = vpop.f32.mrb[0].mxu0
        %3943 = vmatprep.mubr.bf16.mxu0 0
        %3944 = vmatmul.mubr.bf16.gmra.mrb[0].mxu0 %v3743
        %v3945 = vpop.f32.mrb[0].mxu0
        %v3946 = vadd.f32 %v3818, %v3945
        %v3947 = vpop.f32.mrb[0].mxu0
        %v3948 = vpop.f32.mrb[0].mxu0
        %v3949 = vadd.f32 %v3821, %v3948
        %v3950 = vpop.f32.mrb[0].mxu0
        %3951 = vmatprep.mubr.bf16.mxu0 0
        %3952 = vmatmul.mubr.bf16.gmra.mrb[0].mxu0 %v3746
        %v3953 = vpop.f32.mrb[0].mxu0
        %v3954 = vadd.f32 %v3826, %v3953
        %v3955 = vpop.f32.mrb[0].mxu0
        %v3956 = vpop.f32.mrb[0].mxu0
        %v3957 = vadd.f32 %v3829, %v3956
        %v3958 = vpop.f32.mrb[0].mxu0
        %3959 = vmatprep.mubr.bf16.mxu0 0
        %3960 = vmatmul.mubr.bf16.gmra.mrb[0].mxu0 %v3749
        %v3961 = vpop.f32.mrb[0].mxu0
        %v3962 = vadd.f32 %v3834, %v3961
        %v3963 = vpop.f32.mrb[0].mxu0
        %v3964 = vpop.f32.mrb[0].mxu0
        %v3965 = vadd.f32 %v3837, %v3964
        %v3966 = vpop.f32.mrb[0].mxu0
        %3967 = vmatprep.mubr.bf16.mxu0 0
        %3968 = vmatmul.mubr.bf16.gmra.mrb[0].mxu0 %v3752
        %v3969 = vpop.f32.mrb[0].mxu0
        %v3970 = vadd.f32 %v3842, %v3969
        %v3971 = vpop.f32.mrb[0].mxu0
        %v3972 = vpop.f32.mrb[0].mxu0
        %v3973 = vadd.f32 %v3845, %v3972
        %v3974 = vpop.f32.mrb[0].mxu0
        %3975 = vmatprep.mubr.bf16.mxu0 0
        %3976 = vmatmul.mubr.bf16.gmra.mrb[0].mxu0 %v3755
        %v3977 = vpop.f32.mrb[0].mxu0
        %v3978 = vadd.f32 %v3850, %v3977
        %v3979 = vpop.f32.mrb[0].mxu0
        %v3980 = vpop.f32.mrb[0].mxu0
        %v3981 = vadd.f32 %v3853, %v3980
        %v3982 = vpop.f32.mrb[0].mxu0
        %3983 = vmatprep.mubr.bf16.mxu0 0
        %3984 = vmatmul.mubr.bf16.gmra.mrb[0].mxu0 %v3758
        %v3985 = vpop.f32.mrb[0].mxu0
        %v3986 = vadd.f32 %v3858, %v3985
        %v3987 = vpop.f32.mrb[0].mxu0
        %v3988 = vpop.f32.mrb[0].mxu0
        %v3989 = vadd.f32 %v3861, %v3988
        %v3990 = vpop.f32.mrb[0].mxu0
        %3991 = vmatprep.mubr.bf16.mxu0 0
        %3992 = vmatmul.mubr.bf16.gmra.mrb[0].mxu0 %v3761
        %v3993 = vpop.f32.mrb[0].mxu0
        %v3994 = vadd.f32 %v3866, %v3993
        %v3995 = vpop.f32.mrb[0].mxu0
        %v3996 = vpop.f32.mrb[0].mxu0
        %v3997 = vadd.f32 %v3869, %v3996
        %v3998 = vpop.f32.mrb[0].mxu0
        %3999 = vmatprep.mubr.bf16.mxu0 0
        %4000 = vmatmul.mubr.bf16.gmra.mrb[0].mxu0 %v3764
        %v4001 = vpop.f32.mrb[0].mxu0
        %v4002 = vadd.f32 %v3874, %v4001
        %v4003 = vpop.f32.mrb[0].mxu0
        %v4004 = vpop.f32.mrb[0].mxu0
        %v4005 = vadd.f32 %v3877, %v4004
        %v4006 = vpop.f32.mrb[0].mxu0
        %4007 = vmatprep.mubr.bf16.mxu0 0
        %4008 = vmatmul.mubr.bf16.gmra.mrb[0].mxu0 %v3767
        %v4009 = vpop.f32.mrb[0].mxu0
        %v4010 = vadd.f32 %v3882, %v4009
        %v4011 = vpop.f32.mrb[0].mxu0
        %v4012 = vpop.f32.mrb[0].mxu0
        %v4013 = vadd.f32 %v3885, %v4012
        %v4014 = vpop.f32.mrb[0].mxu0
        %4015 = vmatprep.mubr.bf16.mxu0 0
        %4016 = vmatmul.mubr.bf16.gmra.mrb[0].mxu0 %v3770
        %v4017 = vpop.f32.mrb[0].mxu0
        %v4018 = vadd.f32 %v3890, %v4017
        %v4019 = vpop.f32.mrb[0].mxu0
        %v4020 = vpop.f32.mrb[0].mxu0
        %v4021 = vadd.f32 %v3893, %v4020
        %v4022 = vpop.f32.mrb[0].mxu0
        %4023 = vmatprep.mubr.bf16.mxu0 0
        %4024 = vmatmul.mubr.bf16.gmra.mrb[0].mxu0 %v3773
        %v4025 = vpop.f32.mrb[0].mxu0
        %v4026 = vadd.f32 %v3898, %v4025
        %v4027 = vpop.f32.mrb[0].mxu0
        %v4028 = vpop.f32.mrb[0].mxu0
        %v4029 = vpop.f32.mrb[0].mxu0
        %4030 = vdwg.mxu0
        %v4031 = vmax.f32 %v3938, 0.0
        %v4032 = vmax.f32 %v3941, 0.0
        %v4033 = vmax.f32 %v3946, 0.0
        %v4034 = vmax.f32 %v3949, 0.0
        %v4035 = vmax.f32 %v3954, 0.0
        %v4036 = vmax.f32 %v3957, 0.0
        %v4037 = vmax.f32 %v3962, 0.0
        %v4038 = vmax.f32 %v3965, 0.0
        %v4039 = vmax.f32 %v3970, 0.0
        %v4040 = vmax.f32 %v3973, 0.0
        %v4041 = vmax.f32 %v3978, 0.0
        %v4042 = vmax.f32 %v3981, 0.0
        %v4043 = vmax.f32 %v3986, 0.0
        %v4044 = vmax.f32 %v3989, 0.0
        %v4045 = vmax.f32 %v3994, 0.0
        %v4046 = vmax.f32 %v3997, 0.0
        %v4047 = vmax.f32 %v4002, 0.0
        %v4048 = vmax.f32 %v4005, 0.0
        %v4049 = vmax.f32 %v4010, 0.0
        %v4050 = vmax.f32 %v4013, 0.0
        %v4051 = vmax.f32 %v4018, 0.0
        %v4052 = vmax.f32 %v4021, 0.0
        %v4053 = vmax.f32 %v4026, 0.0
        %v4077 = vcombine.high %v4031, %v4031
        %v4079 = vunpack.c.l.s4 1983009808
        %v4080 = vunpack.c.0.s8 %v4079
        %v4081 = vlaneseq
        %v4082 = vshrl.u32 %v4081, 7
        %v4083 = vsub.s32 %v4080, %v4082
        %v4084 = vrot.slane %v4031, %v4083
        %v4086 = vunpack.c.l.s4 1983009808
        %v4087 = vunpack.c.0.s8 %v4086
        %v4088 = vlaneseq
        %v4089 = vshrl.u32 %v4088, 7
        %v4090 = vsub.s32 %v4087, %v4089
        %v4091 = vrot.slane %v4077, %v4090
        %v4092 = vcombine.high %v4084, %v4084
        %v4093 = vcombine.high %v4091, %v4091
        %v4094 = vcombine.high %v4032, %v4032
        %v4096 = vunpack.c.l.s4 1983009808
        %v4097 = vunpack.c.0.s8 %v4096
        %v4098 = vlaneseq
        %v4099 = vshrl.u32 %v4098, 7
        %v4100 = vsub.s32 %v4097, %v4099
        %v4101 = vrot.slane %v4032, %v4100
        %v4103 = vunpack.c.l.s4 1983009808
        %v4104 = vunpack.c.0.s8 %v4103
        %v4105 = vlaneseq
        %v4106 = vshrl.u32 %v4105, 7
        %v4107 = vsub.s32 %v4104, %v4106
        %v4108 = vrot.slane %v4094, %v4107
        %v4109 = vcombine.high %v4101, %v4101
        %v4110 = vcombine.high %v4108, %v4108
        %v4111 = vcombine.high %v4033, %v4033
        %v4113 = vunpack.c.l.s4 1983009808
        %v4114 = vunpack.c.0.s8 %v4113
        %v4115 = vlaneseq
        %v4116 = vshrl.u32 %v4115, 7
        %v4117 = vsub.s32 %v4114, %v4116
        %v4118 = vrot.slane %v4033, %v4117
        %v4120 = vunpack.c.l.s4 1983009808
        %v4121 = vunpack.c.0.s8 %v4120
        %v4122 = vlaneseq
        %v4123 = vshrl.u32 %v4122, 7
        %v4124 = vsub.s32 %v4121, %v4123
        %v4125 = vrot.slane %v4111, %v4124
        %v4126 = vcombine.high %v4118, %v4118
        %v4127 = vcombine.high %v4125, %v4125
        %v4128 = vcombine.high %v4034, %v4034
        %v4130 = vunpack.c.l.s4 1983009808
        %v4131 = vunpack.c.0.s8 %v4130
        %v4132 = vlaneseq
        %v4133 = vshrl.u32 %v4132, 7
        %v4134 = vsub.s32 %v4131, %v4133
        %v4135 = vrot.slane %v4034, %v4134
        %v4137 = vunpack.c.l.s4 1983009808
        %v4138 = vunpack.c.0.s8 %v4137
        %v4139 = vlaneseq
        %v4140 = vshrl.u32 %v4139, 7
        %v4141 = vsub.s32 %v4138, %v4140
        %v4142 = vrot.slane %v4128, %v4141
        %v4143 = vcombine.high %v4135, %v4135
        %v4144 = vcombine.high %v4142, %v4142
        %v4145 = vcombine.high %v4035, %v4035
        %v4147 = vunpack.c.l.s4 1983009808
        %v4148 = vunpack.c.0.s8 %v4147
        %v4149 = vlaneseq
        %v4150 = vshrl.u32 %v4149, 7
        %v4151 = vsub.s32 %v4148, %v4150
        %v4152 = vrot.slane %v4035, %v4151
        %v4154 = vunpack.c.l.s4 1983009808
        %v4155 = vunpack.c.0.s8 %v4154
        %v4156 = vlaneseq
        %v4157 = vshrl.u32 %v4156, 7
        %v4158 = vsub.s32 %v4155, %v4157
        %v4159 = vrot.slane %v4145, %v4158
        %v4160 = vcombine.high %v4152, %v4152
        %v4161 = vcombine.high %v4159, %v4159
        %v4162 = vcombine.high %v4036, %v4036
        %v4164 = vunpack.c.l.s4 1983009808
        %v4165 = vunpack.c.0.s8 %v4164
        %v4166 = vlaneseq
        %v4167 = vshrl.u32 %v4166, 7
        %v4168 = vsub.s32 %v4165, %v4167
        %v4169 = vrot.slane %v4036, %v4168
        %v4171 = vunpack.c.l.s4 1983009808
        %v4172 = vunpack.c.0.s8 %v4171
        %v4173 = vlaneseq
        %v4174 = vshrl.u32 %v4173, 7
        %v4175 = vsub.s32 %v4172, %v4174
        %v4176 = vrot.slane %v4162, %v4175
        %v4177 = vcombine.high %v4169, %v4169
        %v4178 = vcombine.high %v4176, %v4176
        %v4179 = vcombine.high %v4037, %v4037
        %v4181 = vunpack.c.l.s4 1983009808
        %v4182 = vunpack.c.0.s8 %v4181
        %v4183 = vlaneseq
        %v4184 = vshrl.u32 %v4183, 7
        %v4185 = vsub.s32 %v4182, %v4184
        %v4186 = vrot.slane %v4037, %v4185
        %v4188 = vunpack.c.l.s4 1983009808
        %v4189 = vunpack.c.0.s8 %v4188
        %v4190 = vlaneseq
        %v4191 = vshrl.u32 %v4190, 7
        %v4192 = vsub.s32 %v4189, %v4191
        %v4193 = vrot.slane %v4179, %v4192
        %v4194 = vcombine.high %v4186, %v4186
        %v4195 = vcombine.high %v4193, %v4193
        %v4196 = vcombine.high %v4038, %v4038
        %v4198 = vunpack.c.l.s4 1983009808
        %v4199 = vunpack.c.0.s8 %v4198
        %v4200 = vlaneseq
        %v4201 = vshrl.u32 %v4200, 7
        %v4202 = vsub.s32 %v4199, %v4201
        %v4203 = vrot.slane %v4038, %v4202
        %v4205 = vunpack.c.l.s4 1983009808
        %v4206 = vunpack.c.0.s8 %v4205
        %v4207 = vlaneseq
        %v4208 = vshrl.u32 %v4207, 7
        %v4209 = vsub.s32 %v4206, %v4208
        %v4210 = vrot.slane %v4196, %v4209
        %v4211 = vcombine.high %v4203, %v4203
        %v4212 = vcombine.high %v4210, %v4210
        %v4213 = vcombine.high %v4039, %v4039
        %v4215 = vunpack.c.l.s4 1983009808
        %v4216 = vunpack.c.0.s8 %v4215
        %v4217 = vlaneseq
        %v4218 = vshrl.u32 %v4217, 7
        %v4219 = vsub.s32 %v4216, %v4218
        %v4220 = vrot.slane %v4039, %v4219
        %v4222 = vunpack.c.l.s4 1983009808
        %v4223 = vunpack.c.0.s8 %v4222
        %v4224 = vlaneseq
        %v4225 = vshrl.u32 %v4224, 7
        %v4226 = vsub.s32 %v4223, %v4225
        %v4227 = vrot.slane %v4213, %v4226
        %v4228 = vcombine.high %v4220, %v4220
        %v4229 = vcombine.high %v4227, %v4227
        %v4230 = vcombine.high %v4040, %v4040
        %v4232 = vunpack.c.l.s4 1983009808
        %v4233 = vunpack.c.0.s8 %v4232
        %v4234 = vlaneseq
        %v4235 = vshrl.u32 %v4234, 7
        %v4236 = vsub.s32 %v4233, %v4235
        %v4237 = vrot.slane %v4040, %v4236
        %v4239 = vunpack.c.l.s4 1983009808
        %v4240 = vunpack.c.0.s8 %v4239
        %v4241 = vlaneseq
        %v4242 = vshrl.u32 %v4241, 7
        %v4243 = vsub.s32 %v4240, %v4242
        %v4244 = vrot.slane %v4230, %v4243
        %v4245 = vcombine.high %v4237, %v4237
        %v4246 = vcombine.high %v4244, %v4244
        %v4247 = vcombine.high %v4041, %v4041
        %v4249 = vunpack.c.l.s4 1983009808
        %v4250 = vunpack.c.0.s8 %v4249
        %v4251 = vlaneseq
        %v4252 = vshrl.u32 %v4251, 7
        %v4253 = vsub.s32 %v4250, %v4252
        %v4254 = vrot.slane %v4041, %v4253
        %v4256 = vunpack.c.l.s4 1983009808
        %v4257 = vunpack.c.0.s8 %v4256
        %v4258 = vlaneseq
        %v4259 = vshrl.u32 %v4258, 7
        %v4260 = vsub.s32 %v4257, %v4259
        %v4261 = vrot.slane %v4247, %v4260
        %v4262 = vcombine.high %v4254, %v4254
        %v4263 = vcombine.high %v4261, %v4261
        %v4264 = vcombine.high %v4042, %v4042
        %v4266 = vunpack.c.l.s4 1983009808
        %v4267 = vunpack.c.0.s8 %v4266
        %v4268 = vlaneseq
        %v4269 = vshrl.u32 %v4268, 7
        %v4270 = vsub.s32 %v4267, %v4269
        %v4271 = vrot.slane %v4042, %v4270
        %v4273 = vunpack.c.l.s4 1983009808
        %v4274 = vunpack.c.0.s8 %v4273
        %v4275 = vlaneseq
        %v4276 = vshrl.u32 %v4275, 7
        %v4277 = vsub.s32 %v4274, %v4276
        %v4278 = vrot.slane %v4264, %v4277
        %v4279 = vcombine.high %v4271, %v4271
        %v4280 = vcombine.high %v4278, %v4278
        %v4281 = vcombine.high %v4043, %v4043
        %v4283 = vunpack.c.l.s4 1983009808
        %v4284 = vunpack.c.0.s8 %v4283
        %v4285 = vlaneseq
        %v4286 = vshrl.u32 %v4285, 7
        %v4287 = vsub.s32 %v4284, %v4286
        %v4288 = vrot.slane %v4043, %v4287
        %v4290 = vunpack.c.l.s4 1983009808
        %v4291 = vunpack.c.0.s8 %v4290
        %v4292 = vlaneseq
        %v4293 = vshrl.u32 %v4292, 7
        %v4294 = vsub.s32 %v4291, %v4293
        %v4295 = vrot.slane %v4281, %v4294
        %v4296 = vcombine.high %v4288, %v4288
        %v4297 = vcombine.high %v4295, %v4295
        %v4298 = vcombine.high %v4044, %v4044
        %v4300 = vunpack.c.l.s4 1983009808
        %v4301 = vunpack.c.0.s8 %v4300
        %v4302 = vlaneseq
        %v4303 = vshrl.u32 %v4302, 7
        %v4304 = vsub.s32 %v4301, %v4303
        %v4305 = vrot.slane %v4044, %v4304
        %v4307 = vunpack.c.l.s4 1983009808
        %v4308 = vunpack.c.0.s8 %v4307
        %v4309 = vlaneseq
        %v4310 = vshrl.u32 %v4309, 7
        %v4311 = vsub.s32 %v4308, %v4310
        %v4312 = vrot.slane %v4298, %v4311
        %v4313 = vcombine.high %v4305, %v4305
        %v4314 = vcombine.high %v4312, %v4312
        %v4315 = vcombine.high %v4045, %v4045
        %v4317 = vunpack.c.l.s4 1983009808
        %v4318 = vunpack.c.0.s8 %v4317
        %v4319 = vlaneseq
        %v4320 = vshrl.u32 %v4319, 7
        %v4321 = vsub.s32 %v4318, %v4320
        %v4322 = vrot.slane %v4045, %v4321
        %v4324 = vunpack.c.l.s4 1983009808
        %v4325 = vunpack.c.0.s8 %v4324
        %v4326 = vlaneseq
        %v4327 = vshrl.u32 %v4326, 7
        %v4328 = vsub.s32 %v4325, %v4327
        %v4329 = vrot.slane %v4315, %v4328
        %v4330 = vcombine.high %v4322, %v4322
        %v4331 = vcombine.high %v4329, %v4329
        %v4332 = vcombine.high %v4046, %v4046
        %v4334 = vunpack.c.l.s4 1983009808
        %v4335 = vunpack.c.0.s8 %v4334
        %v4336 = vlaneseq
        %v4337 = vshrl.u32 %v4336, 7
        %v4338 = vsub.s32 %v4335, %v4337
        %v4339 = vrot.slane %v4046, %v4338
        %v4341 = vunpack.c.l.s4 1983009808
        %v4342 = vunpack.c.0.s8 %v4341
        %v4343 = vlaneseq
        %v4344 = vshrl.u32 %v4343, 7
        %v4345 = vsub.s32 %v4342, %v4344
        %v4346 = vrot.slane %v4332, %v4345
        %v4347 = vcombine.high %v4339, %v4339
        %v4348 = vcombine.high %v4346, %v4346
        %v4349 = vcombine.high %v4047, %v4047
        %v4351 = vunpack.c.l.s4 1983009808
        %v4352 = vunpack.c.0.s8 %v4351
        %v4353 = vlaneseq
        %v4354 = vshrl.u32 %v4353, 7
        %v4355 = vsub.s32 %v4352, %v4354
        %v4356 = vrot.slane %v4047, %v4355
        %v4358 = vunpack.c.l.s4 1983009808
        %v4359 = vunpack.c.0.s8 %v4358
        %v4360 = vlaneseq
        %v4361 = vshrl.u32 %v4360, 7
        %v4362 = vsub.s32 %v4359, %v4361
        %v4363 = vrot.slane %v4349, %v4362
        %v4364 = vcombine.high %v4356, %v4356
        %v4365 = vcombine.high %v4363, %v4363
        %v4366 = vcombine.high %v4048, %v4048
        %v4368 = vunpack.c.l.s4 1983009808
        %v4369 = vunpack.c.0.s8 %v4368
        %v4370 = vlaneseq
        %v4371 = vshrl.u32 %v4370, 7
        %v4372 = vsub.s32 %v4369, %v4371
        %v4373 = vrot.slane %v4048, %v4372
        %v4375 = vunpack.c.l.s4 1983009808
        %v4376 = vunpack.c.0.s8 %v4375
        %v4377 = vlaneseq
        %v4378 = vshrl.u32 %v4377, 7
        %v4379 = vsub.s32 %v4376, %v4378
        %v4380 = vrot.slane %v4366, %v4379
        %v4381 = vcombine.high %v4373, %v4373
        %v4382 = vcombine.high %v4380, %v4380
        %v4383 = vcombine.high %v4049, %v4049
        %v4385 = vunpack.c.l.s4 1983009808
        %v4386 = vunpack.c.0.s8 %v4385
        %v4387 = vlaneseq
        %v4388 = vshrl.u32 %v4387, 7
        %v4389 = vsub.s32 %v4386, %v4388
        %v4390 = vrot.slane %v4049, %v4389
        %v4392 = vunpack.c.l.s4 1983009808
        %v4393 = vunpack.c.0.s8 %v4392
        %v4394 = vlaneseq
        %v4395 = vshrl.u32 %v4394, 7
        %v4396 = vsub.s32 %v4393, %v4395
        %v4397 = vrot.slane %v4383, %v4396
        %v4398 = vcombine.high %v4390, %v4390
        %v4399 = vcombine.high %v4397, %v4397
        %v4400 = vcombine.high %v4050, %v4050
        %v4402 = vunpack.c.l.s4 1983009808
        %v4403 = vunpack.c.0.s8 %v4402
        %v4404 = vlaneseq
        %v4405 = vshrl.u32 %v4404, 7
        %v4406 = vsub.s32 %v4403, %v4405
        %v4407 = vrot.slane %v4050, %v4406
        %v4409 = vunpack.c.l.s4 1983009808
        %v4410 = vunpack.c.0.s8 %v4409
        %v4411 = vlaneseq
        %v4412 = vshrl.u32 %v4411, 7
        %v4413 = vsub.s32 %v4410, %v4412
        %v4414 = vrot.slane %v4400, %v4413
        %v4415 = vcombine.high %v4407, %v4407
        %v4416 = vcombine.high %v4414, %v4414
        %v4417 = vcombine.high %v4051, %v4051
        %v4419 = vunpack.c.l.s4 1983009808
        %v4420 = vunpack.c.0.s8 %v4419
        %v4421 = vlaneseq
        %v4422 = vshrl.u32 %v4421, 7
        %v4423 = vsub.s32 %v4420, %v4422
        %v4424 = vrot.slane %v4051, %v4423
        %v4426 = vunpack.c.l.s4 1983009808
        %v4427 = vunpack.c.0.s8 %v4426
        %v4428 = vlaneseq
        %v4429 = vshrl.u32 %v4428, 7
        %v4430 = vsub.s32 %v4427, %v4429
        %v4431 = vrot.slane %v4417, %v4430
        %v4432 = vcombine.high %v4424, %v4424
        %v4433 = vcombine.high %v4431, %v4431
        %v4434 = vcombine.high %v4052, %v4052
        %v4436 = vunpack.c.l.s4 1983009808
        %v4437 = vunpack.c.0.s8 %v4436
        %v4438 = vlaneseq
        %v4439 = vshrl.u32 %v4438, 7
        %v4440 = vsub.s32 %v4437, %v4439
        %v4441 = vrot.slane %v4052, %v4440
        %v4443 = vunpack.c.l.s4 1983009808
        %v4444 = vunpack.c.0.s8 %v4443
        %v4445 = vlaneseq
        %v4446 = vshrl.u32 %v4445, 7
        %v4447 = vsub.s32 %v4444, %v4446
        %v4448 = vrot.slane %v4434, %v4447
        %v4449 = vcombine.high %v4441, %v4441
        %v4450 = vcombine.high %v4448, %v4448
        %v4452 = vunpack.c.l.s4 1983009808
        %v4453 = vunpack.c.0.s8 %v4452
        %v4454 = vlaneseq
        %v4455 = vshrl.u32 %v4454, 7
        %v4456 = vsub.s32 %v4453, %v4455
        %v4457 = vrot.slane %v4053, %v4456
        %v4458 = vcombine.high %v4457, %v4457
        %v4459 = vlaneseq
        %v4460 = vshrl.u32 %v4459, 7
        %v4461 = vadd.s32 %v4460, 8
        %v4462 = vadd.s32 %v4460, 16
        %vm4463 = vcmp.gt.s32.totalorder %v4460, 0
        %vm4464 = vcmp.gt.s32.totalorder %v4461, 0
        %vm4465 = vcmp.gt.s32.totalorder %v4462, 0
        %vm4466 = vcmp.lt.s32.totalorder %v4460, 17
        %vm4467 = vcmp.lt.s32.totalorder %v4461, 17
        %vm4468 = vcmp.lt.s32.totalorder %v4462, 17
        %vm4469 = vmand %vm4463, %vm4466
        %vm4470 = vmand %vm4464, %vm4467
        %vm4471 = vmand %vm4465, %vm4468
        %p4472 = scmp.gt.s32.totalorder %s235, 0
        %s4473 = scalar_select %p4472, 1, 0
        %v4474 = vstv %s4473
        %vm4475 = vcmp.eq.s32.totalorder %v4474, 1
        %vm4476 = vmand %vm4469, %vm4475
        %vm4477 = vmand %vm4470, %vm4475
        %vm4478 = vmand %vm4471, %vm4475
        %vm4479 = vmand %vm4469, 1
        %vm4480 = vmand %vm4470, 1
        %vm4481 = vmand %vm4471, 1
        %p4482 = scmp.lt.s32.totalorder %s235, 1
        %s4483 = scalar_select %p4482, 1, 0
        %v4484 = vstv %s4483
        %vm4485 = vcmp.eq.s32.totalorder %v4484, 1
        %vm4486 = vmand %vm4476, 1
        %vm4487 = vmand %vm4477, 1
        %vm4488 = vmand %vm4478, 1
        %vm4489 = vmand %vm4479, %vm4485
        %vm4490 = vmand %vm4480, %vm4485
        %vm4491 = vmand %vm4481, %vm4485
        %v4492 = vsel %vm4486, 1, 0
        %v4493 = vsel %vm4487, 1, 0
        %v4494 = vsel %vm4488, 1, 0
        %v4495 = vsel %vm4479, 1, 0
        %v4496 = vsel %vm4480, 1, 0
        %v4497 = vsel %vm4481, 1, 0
        %v4498 = vsel %vm4489, 1, 0
        %v4499 = vsel %vm4490, 1, 0
        %v4500 = vsel %vm4491, 1, 0
        %vm4501 = vcmp.eq.s32.totalorder %v4492, 1
        %vm4502 = vcmp.eq.s32.totalorder %v4493, 1
        %vm4503 = vcmp.eq.s32.totalorder %v4494, 1
        %vm4504 = vcmp.eq.s32.totalorder %v4495, 1
        %vm4505 = vcmp.eq.s32.totalorder %v4496, 1
        %vm4506 = vcmp.eq.s32.totalorder %v4497, 1
        %vm4507 = vcmp.eq.s32.totalorder %v4498, 1
        %vm4508 = vcmp.eq.s32.totalorder %v4499, 1
        %vm4509 = vcmp.eq.s32.totalorder %v4500, 1
        %v4510 = vcombine.low %v4084, %v4092
        %v4511 = vcombine.low %v4091, %v4093
        %v4513 = vunpack.c.l.s4 1983009808
        %v4514 = vunpack.c.0.s8 %v4513
        %v4515 = vlaneseq
        %v4516 = vshrl.u32 %v4515, 7
        %v4517 = vsub.s32 %v4514, %v4516
        %v4518 = vrot.slane %v4510, %v4517
        %v4520 = vunpack.c.l.s4 1983009808
        %v4521 = vunpack.c.0.s8 %v4520
        %v4522 = vlaneseq
        %v4523 = vshrl.u32 %v4522, 7
        %v4524 = vsub.s32 %v4521, %v4523
        %v4525 = vrot.slane %v4511, %v4524
        %v4526 = vcombine.low %v4518, %v4525
        %v4527 = vcombine.low %v4101, %v4109
        %v4528 = vcombine.low %v4108, %v4110
        %v4530 = vunpack.c.l.s4 1983009808
        %v4531 = vunpack.c.0.s8 %v4530
        %v4532 = vlaneseq
        %v4533 = vshrl.u32 %v4532, 7
        %v4534 = vsub.s32 %v4531, %v4533
        %v4535 = vrot.slane %v4527, %v4534
        %v4537 = vunpack.c.l.s4 1983009808
        %v4538 = vunpack.c.0.s8 %v4537
        %v4539 = vlaneseq
        %v4540 = vshrl.u32 %v4539, 7
        %v4541 = vsub.s32 %v4538, %v4540
        %v4542 = vrot.slane %v4528, %v4541
        %v4543 = vcombine.low %v4535, %v4542
        %v4545 = vunpack.c.l.s4 1983009808
        %v4546 = vunpack.c.0.s8 %v4545
        %v4547 = vlaneseq
        %v4548 = vshrl.u32 %v4547, 7
        %v4549 = vsub.s32 %v4546, %v4548
        %v4550 = vrot.slane %v4118, %v4549
        %v4551 = vcombine.low %v4126, %v4125
        %v4552 = vcombine.low %v4127, %v4135
        %v4554 = vunpack.c.l.s4 1983009808
        %v4555 = vunpack.c.0.s8 %v4554
        %v4556 = vlaneseq
        %v4557 = vshrl.u32 %v4556, 7
        %v4558 = vsub.s32 %v4555, %v4557
        %v4559 = vrot.slane %v4551, %v4558
        %v4561 = vunpack.c.l.s4 1983009808
        %v4562 = vunpack.c.0.s8 %v4561
        %v4563 = vlaneseq
        %v4564 = vshrl.u32 %v4563, 7
        %v4565 = vsub.s32 %v4562, %v4564
        %v4566 = vrot.slane %v4552, %v4565
        %v4567 = vcombine.low %v4559, %v4566
        %v4568 = vcombine.low %v4143, %v4142
        %v4569 = vcombine.low %v4144, %v4152
        %v4571 = vunpack.c.l.s4 1983009808
        %v4572 = vunpack.c.0.s8 %v4571
        %v4573 = vlaneseq
        %v4574 = vshrl.u32 %v4573, 7
        %v4575 = vsub.s32 %v4572, %v4574
        %v4576 = vrot.slane %v4568, %v4575
        %v4578 = vunpack.c.l.s4 1983009808
        %v4579 = vunpack.c.0.s8 %v4578
        %v4580 = vlaneseq
        %v4581 = vshrl.u32 %v4580, 7
        %v4582 = vsub.s32 %v4579, %v4581
        %v4583 = vrot.slane %v4569, %v4582
        %v4584 = vcombine.low %v4576, %v4583
        %v4586 = vunpack.c.l.s4 1983009808
        %v4587 = vunpack.c.0.s8 %v4586
        %v4588 = vlaneseq
        %v4589 = vshrl.u32 %v4588, 7
        %v4590 = vsub.s32 %v4587, %v4589
        %v4591 = vrot.slane %v4160, %v4590
        %v4592 = vcombine.low %v4159, %v4161
        %v4593 = vcombine.low %v4169, %v4177
        %v4595 = vunpack.c.l.s4 1983009808
        %v4596 = vunpack.c.0.s8 %v4595
        %v4597 = vlaneseq
        %v4598 = vshrl.u32 %v4597, 7
        %v4599 = vsub.s32 %v4596, %v4598
        %v4600 = vrot.slane %v4592, %v4599
        %v4602 = vunpack.c.l.s4 1983009808
        %v4603 = vunpack.c.0.s8 %v4602
        %v4604 = vlaneseq
        %v4605 = vshrl.u32 %v4604, 7
        %v4606 = vsub.s32 %v4603, %v4605
        %v4607 = vrot.slane %v4593, %v4606
        %v4608 = vcombine.low %v4600, %v4607
        %v4609 = vcombine.low %v4176, %v4178
        %v4610 = vcombine.low %v4186, %v4194
        %v4612 = vunpack.c.l.s4 1983009808
        %v4613 = vunpack.c.0.s8 %v4612
        %v4614 = vlaneseq
        %v4615 = vshrl.u32 %v4614, 7
        %v4616 = vsub.s32 %v4613, %v4615
        %v4617 = vrot.slane %v4609, %v4616
        %v4619 = vunpack.c.l.s4 1983009808
        %v4620 = vunpack.c.0.s8 %v4619
        %v4621 = vlaneseq
        %v4622 = vshrl.u32 %v4621, 7
        %v4623 = vsub.s32 %v4620, %v4622
        %v4624 = vrot.slane %v4610, %v4623
        %v4625 = vcombine.low %v4617, %v4624
        %v4627 = vunpack.c.l.s4 1983009808
        %v4628 = vunpack.c.0.s8 %v4627
        %v4629 = vlaneseq
        %v4630 = vshrl.u32 %v4629, 7
        %v4631 = vsub.s32 %v4628, %v4630
        %v4632 = vrot.slane %v4193, %v4631
        %v4633 = vcombine.low %v4195, %v4203
        %v4634 = vcombine.low %v4211, %v4210
        %v4636 = vunpack.c.l.s4 1983009808
        %v4637 = vunpack.c.0.s8 %v4636
        %v4638 = vlaneseq
        %v4639 = vshrl.u32 %v4638, 7
        %v4640 = vsub.s32 %v4637, %v4639
        %v4641 = vrot.slane %v4633, %v4640
        %v4643 = vunpack.c.l.s4 1983009808
        %v4644 = vunpack.c.0.s8 %v4643
        %v4645 = vlaneseq
        %v4646 = vshrl.u32 %v4645, 7
        %v4647 = vsub.s32 %v4644, %v4646
        %v4648 = vrot.slane %v4634, %v4647
        %v4649 = vcombine.low %v4641, %v4648
        %v4650 = vcombine.low %v4212, %v4220
        %v4651 = vcombine.low %v4228, %v4227
        %v4653 = vunpack.c.l.s4 1983009808
        %v4654 = vunpack.c.0.s8 %v4653
        %v4655 = vlaneseq
        %v4656 = vshrl.u32 %v4655, 7
        %v4657 = vsub.s32 %v4654, %v4656
        %v4658 = vrot.slane %v4650, %v4657
        %v4660 = vunpack.c.l.s4 1983009808
        %v4661 = vunpack.c.0.s8 %v4660
        %v4662 = vlaneseq
        %v4663 = vshrl.u32 %v4662, 7
        %v4664 = vsub.s32 %v4661, %v4663
        %v4665 = vrot.slane %v4651, %v4664
        %v4666 = vcombine.low %v4658, %v4665
        %v4668 = vunpack.c.l.s4 1983009808
        %v4669 = vunpack.c.0.s8 %v4668
        %v4670 = vlaneseq
        %v4671 = vshrl.u32 %v4670, 7
        %v4672 = vsub.s32 %v4669, %v4671
        %v4673 = vrot.slane %v4229, %v4672
        %v4674 = vcombine.low %v4237, %v4245
        %v4675 = vcombine.low %v4244, %v4246
        %v4677 = vunpack.c.l.s4 1983009808
        %v4678 = vunpack.c.0.s8 %v4677
        %v4679 = vlaneseq
        %v4680 = vshrl.u32 %v4679, 7
        %v4681 = vsub.s32 %v4678, %v4680
        %v4682 = vrot.slane %v4674, %v4681
        %v4684 = vunpack.c.l.s4 1983009808
        %v4685 = vunpack.c.0.s8 %v4684
        %v4686 = vlaneseq
        %v4687 = vshrl.u32 %v4686, 7
        %v4688 = vsub.s32 %v4685, %v4687
        %v4689 = vrot.slane %v4675, %v4688
        %v4690 = vcombine.low %v4682, %v4689
        %v4691 = vcombine.low %v4254, %v4262
        %v4692 = vcombine.low %v4261, %v4263
        %v4694 = vunpack.c.l.s4 1983009808
        %v4695 = vunpack.c.0.s8 %v4694
        %v4696 = vlaneseq
        %v4697 = vshrl.u32 %v4696, 7
        %v4698 = vsub.s32 %v4695, %v4697
        %v4699 = vrot.slane %v4691, %v4698
        %v4701 = vunpack.c.l.s4 1983009808
        %v4702 = vunpack.c.0.s8 %v4701
        %v4703 = vlaneseq
        %v4704 = vshrl.u32 %v4703, 7
        %v4705 = vsub.s32 %v4702, %v4704
        %v4706 = vrot.slane %v4692, %v4705
        %v4707 = vcombine.low %v4699, %v4706
        %v4709 = vunpack.c.l.s4 1983009808
        %v4710 = vunpack.c.0.s8 %v4709
        %v4711 = vlaneseq
        %v4712 = vshrl.u32 %v4711, 7
        %v4713 = vsub.s32 %v4710, %v4712
        %v4714 = vrot.slane %v4271, %v4713
        %v4715 = vcombine.low %v4279, %v4278
        %v4716 = vcombine.low %v4280, %v4288
        %v4718 = vunpack.c.l.s4 1983009808
        %v4719 = vunpack.c.0.s8 %v4718
        %v4720 = vlaneseq
        %v4721 = vshrl.u32 %v4720, 7
        %v4722 = vsub.s32 %v4719, %v4721
        %v4723 = vrot.slane %v4715, %v4722
        %v4725 = vunpack.c.l.s4 1983009808
        %v4726 = vunpack.c.0.s8 %v4725
        %v4727 = vlaneseq
        %v4728 = vshrl.u32 %v4727, 7
        %v4729 = vsub.s32 %v4726, %v4728
        %v4730 = vrot.slane %v4716, %v4729
        %v4731 = vcombine.low %v4723, %v4730
        %v4732 = vcombine.low %v4296, %v4295
        %v4733 = vcombine.low %v4297, %v4305
        %v4735 = vunpack.c.l.s4 1983009808
        %v4736 = vunpack.c.0.s8 %v4735
        %v4737 = vlaneseq
        %v4738 = vshrl.u32 %v4737, 7
        %v4739 = vsub.s32 %v4736, %v4738
        %v4740 = vrot.slane %v4732, %v4739
        %v4742 = vunpack.c.l.s4 1983009808
        %v4743 = vunpack.c.0.s8 %v4742
        %v4744 = vlaneseq
        %v4745 = vshrl.u32 %v4744, 7
        %v4746 = vsub.s32 %v4743, %v4745
        %v4747 = vrot.slane %v4733, %v4746
        %v4748 = vcombine.low %v4740, %v4747
        %v4750 = vunpack.c.l.s4 1983009808
        %v4751 = vunpack.c.0.s8 %v4750
        %v4752 = vlaneseq
        %v4753 = vshrl.u32 %v4752, 7
        %v4754 = vsub.s32 %v4751, %v4753
        %v4755 = vrot.slane %v4313, %v4754
        %v4756 = vcombine.low %v4312, %v4314
        %v4757 = vcombine.low %v4322, %v4330
        %v4759 = vunpack.c.l.s4 1983009808
        %v4760 = vunpack.c.0.s8 %v4759
        %v4761 = vlaneseq
        %v4762 = vshrl.u32 %v4761, 7
        %v4763 = vsub.s32 %v4760, %v4762
        %v4764 = vrot.slane %v4756, %v4763
        %v4766 = vunpack.c.l.s4 1983009808
        %v4767 = vunpack.c.0.s8 %v4766
        %v4768 = vlaneseq
        %v4769 = vshrl.u32 %v4768, 7
        %v4770 = vsub.s32 %v4767, %v4769
        %v4771 = vrot.slane %v4757, %v4770
        %v4772 = vcombine.low %v4764, %v4771
        %v4773 = vcombine.low %v4329, %v4331
        %v4774 = vcombine.low %v4339, %v4347
        %v4776 = vunpack.c.l.s4 1983009808
        %v4777 = vunpack.c.0.s8 %v4776
        %v4778 = vlaneseq
        %v4779 = vshrl.u32 %v4778, 7
        %v4780 = vsub.s32 %v4777, %v4779
        %v4781 = vrot.slane %v4773, %v4780
        %v4783 = vunpack.c.l.s4 1983009808
        %v4784 = vunpack.c.0.s8 %v4783
        %v4785 = vlaneseq
        %v4786 = vshrl.u32 %v4785, 7
        %v4787 = vsub.s32 %v4784, %v4786
        %v4788 = vrot.slane %v4774, %v4787
        %v4789 = vcombine.low %v4781, %v4788
        %v4791 = vunpack.c.l.s4 1983009808
        %v4792 = vunpack.c.0.s8 %v4791
        %v4793 = vlaneseq
        %v4794 = vshrl.u32 %v4793, 7
        %v4795 = vsub.s32 %v4792, %v4794
        %v4796 = vrot.slane %v4346, %v4795
        %v4797 = vcombine.low %v4348, %v4356
        %v4798 = vcombine.low %v4364, %v4363
        %v4800 = vunpack.c.l.s4 1983009808
        %v4801 = vunpack.c.0.s8 %v4800
        %v4802 = vlaneseq
        %v4803 = vshrl.u32 %v4802, 7
        %v4804 = vsub.s32 %v4801, %v4803
        %v4805 = vrot.slane %v4797, %v4804
        %v4807 = vunpack.c.l.s4 1983009808
        %v4808 = vunpack.c.0.s8 %v4807
        %v4809 = vlaneseq
        %v4810 = vshrl.u32 %v4809, 7
        %v4811 = vsub.s32 %v4808, %v4810
        %v4812 = vrot.slane %v4798, %v4811
        %v4813 = vcombine.low %v4805, %v4812
        %v4814 = vcombine.low %v4365, %v4373
        %v4815 = vcombine.low %v4381, %v4380
        %v4817 = vunpack.c.l.s4 1983009808
        %v4818 = vunpack.c.0.s8 %v4817
        %v4819 = vlaneseq
        %v4820 = vshrl.u32 %v4819, 7
        %v4821 = vsub.s32 %v4818, %v4820
        %v4822 = vrot.slane %v4814, %v4821
        %v4824 = vunpack.c.l.s4 1983009808
        %v4825 = vunpack.c.0.s8 %v4824
        %v4826 = vlaneseq
        %v4827 = vshrl.u32 %v4826, 7
        %v4828 = vsub.s32 %v4825, %v4827
        %v4829 = vrot.slane %v4815, %v4828
        %v4830 = vcombine.low %v4822, %v4829
        %v4832 = vunpack.c.l.s4 1983009808
        %v4833 = vunpack.c.0.s8 %v4832
        %v4834 = vlaneseq
        %v4835 = vshrl.u32 %v4834, 7
        %v4836 = vsub.s32 %v4833, %v4835
        %v4837 = vrot.slane %v4382, %v4836
        %v4838 = vcombine.low %v4390, %v4398
        %v4839 = vcombine.low %v4397, %v4399
        %v4841 = vunpack.c.l.s4 1983009808
        %v4842 = vunpack.c.0.s8 %v4841
        %v4843 = vlaneseq
        %v4844 = vshrl.u32 %v4843, 7
        %v4845 = vsub.s32 %v4842, %v4844
        %v4846 = vrot.slane %v4838, %v4845
        %v4848 = vunpack.c.l.s4 1983009808
        %v4849 = vunpack.c.0.s8 %v4848
        %v4850 = vlaneseq
        %v4851 = vshrl.u32 %v4850, 7
        %v4852 = vsub.s32 %v4849, %v4851
        %v4853 = vrot.slane %v4839, %v4852
        %v4854 = vcombine.low %v4846, %v4853
        %v4855 = vcombine.low %v4407, %v4415
        %v4856 = vcombine.low %v4414, %v4416
        %v4858 = vunpack.c.l.s4 1983009808
        %v4859 = vunpack.c.0.s8 %v4858
        %v4860 = vlaneseq
        %v4861 = vshrl.u32 %v4860, 7
        %v4862 = vsub.s32 %v4859, %v4861
        %v4863 = vrot.slane %v4855, %v4862
        %v4865 = vunpack.c.l.s4 1983009808
        %v4866 = vunpack.c.0.s8 %v4865
        %v4867 = vlaneseq
        %v4868 = vshrl.u32 %v4867, 7
        %v4869 = vsub.s32 %v4866, %v4868
        %v4870 = vrot.slane %v4856, %v4869
        %v4871 = vcombine.low %v4863, %v4870
        %v4873 = vunpack.c.l.s4 1983009808
        %v4874 = vunpack.c.0.s8 %v4873
        %v4875 = vlaneseq
        %v4876 = vshrl.u32 %v4875, 7
        %v4877 = vsub.s32 %v4874, %v4876
        %v4878 = vrot.slane %v4424, %v4877
        %v4879 = vcombine.low %v4432, %v4431
        %v4880 = vcombine.low %v4433, %v4441
        %v4882 = vunpack.c.l.s4 1983009808
        %v4883 = vunpack.c.0.s8 %v4882
        %v4884 = vlaneseq
        %v4885 = vshrl.u32 %v4884, 7
        %v4886 = vsub.s32 %v4883, %v4885
        %v4887 = vrot.slane %v4879, %v4886
        %v4889 = vunpack.c.l.s4 1983009808
        %v4890 = vunpack.c.0.s8 %v4889
        %v4891 = vlaneseq
        %v4892 = vshrl.u32 %v4891, 7
        %v4893 = vsub.s32 %v4890, %v4892
        %v4894 = vrot.slane %v4880, %v4893
        %v4895 = vcombine.low %v4887, %v4894
        %v4896 = vcombine.low %v4449, %v4448
        %v4897 = vcombine.low %v4450, %v4457
        %v4899 = vunpack.c.l.s4 1983009808
        %v4900 = vunpack.c.0.s8 %v4899
        %v4901 = vlaneseq
        %v4902 = vshrl.u32 %v4901, 7
        %v4903 = vsub.s32 %v4900, %v4902
        %v4904 = vrot.slane %v4896, %v4903
        %v4906 = vunpack.c.l.s4 1983009808
        %v4907 = vunpack.c.0.s8 %v4906
        %v4908 = vlaneseq
        %v4909 = vshrl.u32 %v4908, 7
        %v4910 = vsub.s32 %v4907, %v4909
        %v4911 = vrot.slane %v4897, %v4910
        %v4912 = vcombine.low %v4904, %v4911
        %v4914 = vunpack.c.l.s4 1983009808
        %v4915 = vunpack.c.0.s8 %v4914
        %v4916 = vlaneseq
        %v4917 = vshrl.u32 %v4916, 7
        %v4918 = vsub.s32 %v4915, %v4917
        %v4919 = vrot.slane %v4458, %v4918
        %v4950 = vsel %vm4501, %v4526, 0.0
        %v4951 = vsel %vm4502, %v4543, 0.0
        %v4952 = vsel %vm4503, %v4550, 0.0
        %v4953 = vsel %vm4504, %v4567, 0.0
        %v4954 = vsel %vm4505, %v4584, 0.0
        %v4955 = vsel %vm4506, %v4591, 0.0
        %v4956 = vsel %vm4504, %v4608, 0.0
        %v4957 = vsel %vm4505, %v4625, 0.0
        %v4958 = vsel %vm4506, %v4632, 0.0
        %v4959 = vsel %vm4504, %v4649, 0.0
        %v4960 = vsel %vm4505, %v4666, 0.0
        %v4961 = vsel %vm4506, %v4673, 0.0
        %v4962 = vsel %vm4504, %v4690, 0.0
        %v4963 = vsel %vm4505, %v4707, 0.0
        %v4964 = vsel %vm4506, %v4714, 0.0
        %v4965 = vsel %vm4504, %v4731, 0.0
        %v4966 = vsel %vm4505, %v4748, 0.0
        %v4967 = vsel %vm4506, %v4755, 0.0
        %v4968 = vsel %vm4504, %v4772, 0.0
        %v4969 = vsel %vm4505, %v4789, 0.0
        %v4970 = vsel %vm4506, %v4796, 0.0
        %v4971 = vsel %vm4504, %v4813, 0.0
        %v4972 = vsel %vm4505, %v4830, 0.0
        %v4973 = vsel %vm4506, %v4837, 0.0
        %v4974 = vsel %vm4504, %v4854, 0.0
        %v4975 = vsel %vm4505, %v4871, 0.0
        %v4976 = vsel %vm4506, %v4878, 0.0
        %v4977 = vsel %vm4507, %v4895, 0.0
        %v4978 = vsel %vm4508, %v4912, 0.0
        %v4979 = vsel %vm4509, %v4919, 0.0
        %v4980 = vpack.c.bf16 %v4951, %v4950
        %v4981 = vpack.c.bf16 %v4952, %v4952
        %v4982 = vpack.c.bf16 %v4954, %v4953
        %v4983 = vpack.c.bf16 %v4955, %v4955
        %v4984 = vpack.c.bf16 %v4957, %v4956
        %v4985 = vpack.c.bf16 %v4958, %v4958
        %v4986 = vpack.c.bf16 %v4960, %v4959
        %v4987 = vpack.c.bf16 %v4961, %v4961
        %v4988 = vpack.c.bf16 %v4963, %v4962
        %v4989 = vpack.c.bf16 %v4964, %v4964
        %v4990 = vpack.c.bf16 %v4966, %v4965
        %v4991 = vpack.c.bf16 %v4967, %v4967
        %v4992 = vpack.c.bf16 %v4969, %v4968
        %v4993 = vpack.c.bf16 %v4970, %v4970
        %v4994 = vpack.c.bf16 %v4972, %v4971
        %v4995 = vpack.c.bf16 %v4973, %v4973
        %v4996 = vpack.c.bf16 %v4975, %v4974
        %v4997 = vpack.c.bf16 %v4976, %v4976
        %v4998 = vpack.c.bf16 %v4978, %v4977
        %v4999 = vpack.c.bf16 %v4979, %v4979
        %v5020 = vunpack.c.l.b16 %v4980
        %v5021 = vunpack.c.h.b16 %v4980
        %v5022 = vunpack.c.l.b16 %v4981
        %v5023 = vunpack.c.l.b16 %v4982
        %v5024 = vunpack.c.h.b16 %v4982
        %v5025 = vunpack.c.l.b16 %v4983
        %v5026 = vunpack.c.l.b16 %v4984
        %v5027 = vunpack.c.h.b16 %v4984
        %v5028 = vunpack.c.l.b16 %v4985
        %v5029 = vunpack.c.l.b16 %v4986
        %v5030 = vunpack.c.h.b16 %v4986
        %v5031 = vunpack.c.l.b16 %v4987
        %v5032 = vunpack.c.l.b16 %v4988
        %v5033 = vunpack.c.h.b16 %v4988
        %v5034 = vunpack.c.l.b16 %v4989
        %v5035 = vunpack.c.l.b16 %v4990
        %v5036 = vunpack.c.h.b16 %v4990
        %v5037 = vunpack.c.l.b16 %v4991
        %v5038 = vunpack.c.l.b16 %v4992
        %v5039 = vunpack.c.h.b16 %v4992
        %v5040 = vunpack.c.l.b16 %v4993
        %v5041 = vunpack.c.l.b16 %v4994
        %v5042 = vunpack.c.h.b16 %v4994
        %v5043 = vunpack.c.l.b16 %v4995
        %v5044 = vunpack.c.l.b16 %v4996
        %v5045 = vunpack.c.h.b16 %v4996
        %v5046 = vunpack.c.l.b16 %v4997
        %v5047 = vunpack.c.l.b16 %v4998
        %v5048 = vunpack.c.h.b16 %v4998
        %v5049 = vunpack.c.l.b16 %v4999
        %v5050 = vpack.c.b16 %v5020, %v5020
        %v5051 = vpack.c.b16 %v5021, %v5021
        %v5052 = vpack.c.b16 %v5022, %v5022
        %v5053 = vpack.c.b16 %v5023, %v5023
        %v5054 = vpack.c.b16 %v5024, %v5024
        %v5055 = vpack.c.b16 %v5025, %v5025
        %v5056 = vpack.c.b16 %v5026, %v5026
        %v5057 = vpack.c.b16 %v5027, %v5027
        %v5058 = vpack.c.b16 %v5028, %v5028
        %v5059 = vpack.c.b16 %v5029, %v5029
        %v5060 = vpack.c.b16 %v5030, %v5030
        %v5061 = vpack.c.b16 %v5031, %v5031
        %v5062 = vpack.c.b16 %v5032, %v5032
        %v5063 = vpack.c.b16 %v5033, %v5033
        %v5064 = vpack.c.b16 %v5034, %v5034
        %v5065 = vpack.c.b16 %v5035, %v5035
        %v5066 = vpack.c.b16 %v5036, %v5036
        %v5067 = vpack.c.b16 %v5037, %v5037
        %v5068 = vpack.c.b16 %v5038, %v5038
        %v5069 = vpack.c.b16 %v5039, %v5039
        %v5070 = vpack.c.b16 %v5040, %v5040
        %v5071 = vpack.c.b16 %v5041, %v5041
        %v5072 = vpack.c.b16 %v5042, %v5042
        %v5073 = vpack.c.b16 %v5043, %v5043
        %v5074 = vpack.c.b16 %v5044, %v5044
        %v5075 = vpack.c.b16 %v5045, %v5045
        %v5076 = vpack.c.b16 %v5046, %v5046
        %v5077 = vpack.c.b16 %v5047, %v5047
        %v5078 = vpack.c.b16 %v5048, %v5048
        %v5079 = vpack.c.b16 %v5049, %v5049
        %vm5110 = vcmask 257024
        %5111 = vst.msk [vmem:[#allocation2] sm:$0xf] %vm5110, %v5050
        %5112 = vst.msk [vmem:[#allocation2 + $0x4] sm:$0xf] %vm5110, %v5051
        %vm5113 = vcmask 253952
        %5114 = vst.msk [vmem:[#allocation2 + $0x8] sm:$0x1] %vm5113, %v5052
        %5115 = vst.msk [vmem:[#allocation2 + $0xc] sm:$0xf] %vm5110, %v5053
        %5116 = vst.msk [vmem:[#allocation2 + $0x10] sm:$0xf] %vm5110, %v5054
        %5117 = vst.msk [vmem:[#allocation2 + $0x14] sm:$0x1] %vm5113, %v5055
        %5118 = vst.msk [vmem:[#allocation2 + $0x18] sm:$0xf] %vm5110, %v5056
        %5119 = vst.msk [vmem:[#allocation2 + $0x1c] sm:$0xf] %vm5110, %v5057
        %5120 = vst.msk [vmem:[#allocation2 + $0x20] sm:$0x1] %vm5113, %v5058
        %5121 = vst.msk [vmem:[#allocation2 + $0x24] sm:$0xf] %vm5110, %v5059
        %5122 = vst.msk [vmem:[#allocation2 + $0x28] sm:$0xf] %vm5110, %v5060
        %5123 = vst.msk [vmem:[#allocation2 + $0x2c] sm:$0x1] %vm5113, %v5061
        %5124 = vst.msk [vmem:[#allocation2 + $0x30] sm:$0xf] %vm5110, %v5062
        %5125 = vst.msk [vmem:[#allocation2 + $0x34] sm:$0xf] %vm5110, %v5063
        %5126 = vst.msk [vmem:[#allocation2 + $0x38] sm:$0x1] %vm5113, %v5064
        %5127 = vst.msk [vmem:[#allocation2 + $0x3c] sm:$0xf] %vm5110, %v5065
        %5128 = vst.msk [vmem:[#allocation2 + $0x40] sm:$0xf] %vm5110, %v5066
        %5129 = vst.msk [vmem:[#allocation2 + $0x44] sm:$0x1] %vm5113, %v5067
        %5130 = vst.msk [vmem:[#allocation2 + $0x48] sm:$0xf] %vm5110, %v5068
        %5131 = vst.msk [vmem:[#allocation2 + $0x4c] sm:$0xf] %vm5110, %v5069
        %5132 = vst.msk [vmem:[#allocation2 + $0x50] sm:$0x1] %vm5113, %v5070
        %5133 = vst.msk [vmem:[#allocation2 + $0x54] sm:$0xf] %vm5110, %v5071
        %5134 = vst.msk [vmem:[#allocation2 + $0x58] sm:$0xf] %vm5110, %v5072
        %5135 = vst.msk [vmem:[#allocation2 + $0x5c] sm:$0x1] %vm5113, %v5073
        %5136 = vst.msk [vmem:[#allocation2 + $0x60] sm:$0xf] %vm5110, %v5074
        %5137 = vst.msk [vmem:[#allocation2 + $0x64] sm:$0xf] %vm5110, %v5075
        %5138 = vst.msk [vmem:[#allocation2 + $0x68] sm:$0x1] %vm5113, %v5076
        %5139 = vst.msk [vmem:[#allocation2 + $0x6c] sm:$0xf] %vm5110, %v5077
        %5140 = vst.msk [vmem:[#allocation2 + $0x70] sm:$0xf] %vm5110, %v5078
        %5141 = vst.msk [vmem:[#allocation2 + $0x74] sm:$0x1] %vm5113, %v5079
        %v5142 = vld [vmem:[#allocation2] sm:$0xf]
        %v5143 = vld [vmem:[#allocation2 + $0x4] sm:$0xf]
        %v5144 = vld [vmem:[#allocation2 + $0xc] sm:$0xf]
        %v5145 = vld [vmem:[#allocation2 + $0x10] sm:$0xf]
        %v5146 = vld [vmem:[#allocation2 + $0x18] sm:$0xf]
        %v5147 = vld [vmem:[#allocation2 + $0x1c] sm:$0xf]
        %v5148 = vld [vmem:[#allocation2 + $0x24] sm:$0xf]
        %v5149 = vld [vmem:[#allocation2 + $0x28] sm:$0xf]
        %v5150 = vld [vmem:[#allocation2 + $0x30] sm:$0xf]
        %v5151 = vld [vmem:[#allocation2 + $0x34] sm:$0xf]
        %v5152 = vld [vmem:[#allocation2 + $0x3c] sm:$0xf]
        %v5153 = vld [vmem:[#allocation2 + $0x40] sm:$0xf]
        %v5154 = vld [vmem:[#allocation2 + $0x48] sm:$0xf]
        %v5155 = vld [vmem:[#allocation2 + $0x4c] sm:$0xf]
        %v5156 = vld [vmem:[#allocation2 + $0x54] sm:$0xf]
        %v5157 = vld [vmem:[#allocation2 + $0x58] sm:$0xf]
        %v5158 = vld [vmem:[#allocation2 + $0x8] sm:$0x1]
        %v5159 = vld [vmem:[#allocation2 + $0x14] sm:$0x1]
        %v5160 = vld [vmem:[#allocation2 + $0x20] sm:$0x1]
        %v5161 = vld [vmem:[#allocation2 + $0x2c] sm:$0x1]
        %v5162 = vld [vmem:[#allocation2 + $0x38] sm:$0x1]
        %v5163 = vld [vmem:[#allocation2 + $0x44] sm:$0x1]
        %v5164 = vld [vmem:[#allocation2 + $0x50] sm:$0x1]
        %v5165 = vld [vmem:[#allocation2 + $0x5c] sm:$0x1]
        %v5166 = vld [vmem:[#allocation2] sm:$0xe]
        %v5167 = vld [vmem:[#allocation2 + $0xc] sm:$0xe]
        %v5168 = vld [vmem:[#allocation2 + $0x18] sm:$0xe]
        %v5169 = vld [vmem:[#allocation2 + $0x24] sm:$0xe]
        %v5170 = vld [vmem:[#allocation2 + $0x30] sm:$0xe]
        %v5171 = vld [vmem:[#allocation2 + $0x3c] sm:$0xe]
        %v5172 = vld [vmem:[#allocation2 + $0x48] sm:$0xe]
        %v5173 = vld [vmem:[#allocation2 + $0x54] sm:$0xe]
        %s5174 = scalar_lea.vmem [#allocation2], 12
        %v5175 = vld [vmem:[%s5174] sm:$0xf]
        %v5176 = vld [vmem:[%s5174 + $0x4] sm:$0xf]
        %v5177 = vld [vmem:[%s5174 + $0xc] sm:$0xf]
        %v5178 = vld [vmem:[%s5174 + $0x10] sm:$0xf]
        %v5179 = vld [vmem:[%s5174 + $0x18] sm:$0xf]
        %v5180 = vld [vmem:[%s5174 + $0x1c] sm:$0xf]
        %v5181 = vld [vmem:[%s5174 + $0x24] sm:$0xf]
        %v5182 = vld [vmem:[%s5174 + $0x28] sm:$0xf]
        %v5183 = vld [vmem:[%s5174 + $0x30] sm:$0xf]
        %v5184 = vld [vmem:[%s5174 + $0x34] sm:$0xf]
        %v5185 = vld [vmem:[%s5174 + $0x3c] sm:$0xf]
        %v5186 = vld [vmem:[%s5174 + $0x40] sm:$0xf]
        %v5187 = vld [vmem:[%s5174 + $0x48] sm:$0xf]
        %v5188 = vld [vmem:[%s5174 + $0x4c] sm:$0xf]
        %v5189 = vld [vmem:[%s5174 + $0x54] sm:$0xf]
        %v5190 = vld [vmem:[%s5174 + $0x58] sm:$0xf]
        %v5191 = vld [vmem:[%s5174 + $0x8] sm:$0x1]
        %v5192 = vld [vmem:[%s5174 + $0x14] sm:$0x1]
        %v5193 = vld [vmem:[%s5174 + $0x20] sm:$0x1]
        %v5194 = vld [vmem:[%s5174 + $0x2c] sm:$0x1]
        %v5195 = vld [vmem:[%s5174 + $0x38] sm:$0x1]
        %v5196 = vld [vmem:[%s5174 + $0x44] sm:$0x1]
        %v5197 = vld [vmem:[%s5174 + $0x50] sm:$0x1]
        %v5198 = vld [vmem:[%s5174 + $0x5c] sm:$0x1]
        %v5199 = vld [vmem:[%s5174] sm:$0xe]
        %v5200 = vld [vmem:[%s5174 + $0xc] sm:$0xe]
        %v5201 = vld [vmem:[%s5174 + $0x18] sm:$0xe]
        %v5202 = vld [vmem:[%s5174 + $0x24] sm:$0xe]
        %v5203 = vld [vmem:[%s5174 + $0x30] sm:$0xe]
        %v5204 = vld [vmem:[%s5174 + $0x3c] sm:$0xe]
        %v5205 = vld [vmem:[%s5174 + $0x48] sm:$0xe]
        %v5206 = vld [vmem:[%s5174 + $0x54] sm:$0xe]
        %s5207 = scalar_lea.vmem [#allocation2], 24
        %v5208 = vld [vmem:[%s5207] sm:$0xf]
        %v5209 = vld [vmem:[%s5207 + $0x4] sm:$0xf]
        %v5210 = vld [vmem:[%s5207 + $0xc] sm:$0xf]
        %v5211 = vld [vmem:[%s5207 + $0x10] sm:$0xf]
        %v5212 = vld [vmem:[%s5207 + $0x18] sm:$0xf]
        %v5213 = vld [vmem:[%s5207 + $0x1c] sm:$0xf]
        %v5214 = vld [vmem:[%s5207 + $0x24] sm:$0xf]
        %v5215 = vld [vmem:[%s5207 + $0x28] sm:$0xf]
        %v5216 = vld [vmem:[%s5207 + $0x30] sm:$0xf]
        %v5217 = vld [vmem:[%s5207 + $0x34] sm:$0xf]
        %v5218 = vld [vmem:[%s5207 + $0x3c] sm:$0xf]
        %v5219 = vld [vmem:[%s5207 + $0x40] sm:$0xf]
        %v5220 = vld [vmem:[%s5207 + $0x48] sm:$0xf]
        %v5221 = vld [vmem:[%s5207 + $0x4c] sm:$0xf]
        %v5222 = vld [vmem:[%s5207 + $0x54] sm:$0xf]
        %v5223 = vld [vmem:[%s5207 + $0x58] sm:$0xf]
        %v5224 = vld [vmem:[%s5207 + $0x8] sm:$0x1]
        %v5225 = vld [vmem:[%s5207 + $0x14] sm:$0x1]
        %v5226 = vld [vmem:[%s5207 + $0x20] sm:$0x1]
        %v5227 = vld [vmem:[%s5207 + $0x2c] sm:$0x1]
        %v5228 = vld [vmem:[%s5207 + $0x38] sm:$0x1]
        %v5229 = vld [vmem:[%s5207 + $0x44] sm:$0x1]
        %v5230 = vld [vmem:[%s5207 + $0x50] sm:$0x1]
        %v5231 = vld [vmem:[%s5207 + $0x5c] sm:$0x1]
        %v5232 = vld [vmem:[%s5207] sm:$0xe]
        %v5233 = vld [vmem:[%s5207 + $0xc] sm:$0xe]
        %v5234 = vld [vmem:[%s5207 + $0x18] sm:$0xe]
        %v5235 = vld [vmem:[%s5207 + $0x24] sm:$0xe]
        %v5236 = vld [vmem:[%s5207 + $0x30] sm:$0xe]
        %v5237 = vld [vmem:[%s5207 + $0x3c] sm:$0xe]
        %v5238 = vld [vmem:[%s5207 + $0x48] sm:$0xe]
        %v5239 = vld [vmem:[%s5207 + $0x54] sm:$0xe]
        %v5256 = vunpack.c.l.b16 %v5142
        %v5257 = vunpack.c.l.b16 %v5143
        %v5258 = vunpack.c.l.b16 %v5144
        %v5259 = vunpack.c.l.b16 %v5145
        %v5260 = vunpack.c.l.b16 %v5146
        %v5261 = vunpack.c.l.b16 %v5147
        %v5262 = vunpack.c.l.b16 %v5148
        %v5263 = vunpack.c.l.b16 %v5149
        %v5264 = vunpack.c.l.b16 %v5150
        %v5265 = vunpack.c.l.b16 %v5151
        %v5266 = vunpack.c.l.b16 %v5152
        %v5267 = vunpack.c.l.b16 %v5153
        %v5268 = vunpack.c.l.b16 %v5154
        %v5269 = vunpack.c.l.b16 %v5155
        %v5270 = vunpack.c.l.b16 %v5156
        %v5271 = vunpack.c.l.b16 %v5157
        %v5272 = vpack.c.b16 %v5257, %v5256
        %v5273 = vpack.c.b16 %v5259, %v5258
        %v5274 = vpack.c.b16 %v5261, %v5260
        %v5275 = vpack.c.b16 %v5263, %v5262
        %v5276 = vpack.c.b16 %v5265, %v5264
        %v5277 = vpack.c.b16 %v5267, %v5266
        %v5278 = vpack.c.b16 %v5269, %v5268
        %v5279 = vpack.c.b16 %v5271, %v5270
        %v5288 = vunpack.c.l.b16 %v5158
        %v5289 = vunpack.c.l.b16 %v5159
        %v5290 = vunpack.c.l.b16 %v5160
        %v5291 = vunpack.c.l.b16 %v5161
        %v5292 = vunpack.c.l.b16 %v5162
        %v5293 = vunpack.c.l.b16 %v5163
        %v5294 = vunpack.c.l.b16 %v5164
        %v5295 = vunpack.c.l.b16 %v5165
        %v5296 = vpack.c.b16 %v5288, %v5288
        %v5297 = vpack.c.b16 %v5289, %v5289
        %v5298 = vpack.c.b16 %v5290, %v5290
        %v5299 = vpack.c.b16 %v5291, %v5291
        %v5300 = vpack.c.b16 %v5292, %v5292
        %v5301 = vpack.c.b16 %v5293, %v5293
        %v5302 = vpack.c.b16 %v5294, %v5294
        %v5303 = vpack.c.b16 %v5295, %v5295
        %v5305 = vshrl.u32 %v5272, 16
        %v5307 = vshll.u32 %v5272, 16
        %v5309 = vrot.slane %v5307, 1
        %v5310 = vor.u32 %v5305, %v5309
        %v5312 = vshll.u32 %v5296, 16
        %v5314 = vrot.slane %v5312, 1
        %v5315 = vsel %vm498, %v5310, %v5314
        %v5317 = vshrl.u32 %v5273, 16
        %v5319 = vshll.u32 %v5273, 16
        %v5321 = vrot.slane %v5319, 1
        %v5322 = vor.u32 %v5317, %v5321
        %v5324 = vshll.u32 %v5297, 16
        %v5326 = vrot.slane %v5324, 1
        %v5327 = vsel %vm498, %v5322, %v5326
        %v5329 = vshrl.u32 %v5274, 16
        %v5331 = vshll.u32 %v5274, 16
        %v5333 = vrot.slane %v5331, 1
        %v5334 = vor.u32 %v5329, %v5333
        %v5336 = vshll.u32 %v5298, 16
        %v5338 = vrot.slane %v5336, 1
        %v5339 = vsel %vm498, %v5334, %v5338
        %v5341 = vshrl.u32 %v5275, 16
        %v5343 = vshll.u32 %v5275, 16
        %v5345 = vrot.slane %v5343, 1
        %v5346 = vor.u32 %v5341, %v5345
        %v5348 = vshll.u32 %v5299, 16
        %v5350 = vrot.slane %v5348, 1
        %v5351 = vsel %vm498, %v5346, %v5350
        %v5353 = vshrl.u32 %v5276, 16
        %v5355 = vshll.u32 %v5276, 16
        %v5357 = vrot.slane %v5355, 1
        %v5358 = vor.u32 %v5353, %v5357
        %v5360 = vshll.u32 %v5300, 16
        %v5362 = vrot.slane %v5360, 1
        %v5363 = vsel %vm498, %v5358, %v5362
        %v5365 = vshrl.u32 %v5277, 16
        %v5367 = vshll.u32 %v5277, 16
        %v5369 = vrot.slane %v5367, 1
        %v5370 = vor.u32 %v5365, %v5369
        %v5372 = vshll.u32 %v5301, 16
        %v5374 = vrot.slane %v5372, 1
        %v5375 = vsel %vm498, %v5370, %v5374
        %v5377 = vshrl.u32 %v5278, 16
        %v5379 = vshll.u32 %v5278, 16
        %v5381 = vrot.slane %v5379, 1
        %v5382 = vor.u32 %v5377, %v5381
        %v5384 = vshll.u32 %v5302, 16
        %v5386 = vrot.slane %v5384, 1
        %v5387 = vsel %vm498, %v5382, %v5386
        %v5389 = vshrl.u32 %v5279, 16
        %v5391 = vshll.u32 %v5279, 16
        %v5393 = vrot.slane %v5391, 1
        %v5394 = vor.u32 %v5389, %v5393
        %v5396 = vshll.u32 %v5303, 16
        %v5398 = vrot.slane %v5396, 1
        %v5399 = vsel %vm498, %v5394, %v5398
        %5400 = vrot.lane.b32.xlu0 %v5315, 32
        %v5401 = vpop.permute.xlu0 %5400
        %5402 = vrot.lane.b32.xlu0 %v5327, 32
        %v5403 = vpop.permute.xlu0 %5402
        %5404 = vrot.lane.b32.xlu0 %v5339, 32
        %v5405 = vpop.permute.xlu0 %5404
        %5406 = vrot.lane.b32.xlu0 %v5351, 32
        %v5407 = vpop.permute.xlu0 %5406
        %5408 = vrot.lane.b32.xlu0 %v5363, 32
        %v5409 = vpop.permute.xlu0 %5408
        %5410 = vrot.lane.b32.xlu0 %v5375, 32
        %v5411 = vpop.permute.xlu0 %5410
        %5412 = vrot.lane.b32.xlu0 %v5387, 32
        %v5413 = vpop.permute.xlu0 %5412
        %5414 = vrot.lane.b32.xlu0 %v5399, 32
        %v5415 = vpop.permute.xlu0 %5414
        %v5424 = vunpack.c.l.b16 %v5166
        %v5425 = vunpack.c.l.b16 %v5167
        %v5426 = vunpack.c.l.b16 %v5168
        %v5427 = vunpack.c.l.b16 %v5169
        %v5428 = vunpack.c.l.b16 %v5170
        %v5429 = vunpack.c.l.b16 %v5171
        %v5430 = vunpack.c.l.b16 %v5172
        %v5431 = vunpack.c.l.b16 %v5173
        %v5432 = vpack.c.b16 %v5257, %v5424
        %v5433 = vpack.c.b16 %v5259, %v5425
        %v5434 = vpack.c.b16 %v5261, %v5426
        %v5435 = vpack.c.b16 %v5263, %v5427
        %v5436 = vpack.c.b16 %v5265, %v5428
        %v5437 = vpack.c.b16 %v5267, %v5429
        %v5438 = vpack.c.b16 %v5269, %v5430
        %v5439 = vpack.c.b16 %v5271, %v5431
        %v5440 = vrot.slane %v5432, 1
        %v5441 = vrot.slane %v5296, 1
        %v5442 = vsel %vm719, %v5440, %v5441
        %v5443 = vrot.slane %v5433, 1
        %v5444 = vrot.slane %v5297, 1
        %v5445 = vsel %vm719, %v5443, %v5444
        %v5446 = vrot.slane %v5434, 1
        %v5447 = vrot.slane %v5298, 1
        %v5448 = vsel %vm719, %v5446, %v5447
        %v5449 = vrot.slane %v5435, 1
        %v5450 = vrot.slane %v5299, 1
        %v5451 = vsel %vm719, %v5449, %v5450
        %v5452 = vrot.slane %v5436, 1
        %v5453 = vrot.slane %v5300, 1
        %v5454 = vsel %vm719, %v5452, %v5453
        %v5455 = vrot.slane %v5437, 1
        %v5456 = vrot.slane %v5301, 1
        %v5457 = vsel %vm719, %v5455, %v5456
        %v5458 = vrot.slane %v5438, 1
        %v5459 = vrot.slane %v5302, 1
        %v5460 = vsel %vm719, %v5458, %v5459
        %v5461 = vrot.slane %v5439, 1
        %v5462 = vrot.slane %v5303, 1
        %v5463 = vsel %vm719, %v5461, %v5462
        %5464 = vrot.lane.b32.xlu0 %v5442, 64
        %v5465 = vpop.permute.xlu0 %5464
        %5466 = vrot.lane.b32.xlu0 %v5445, 64
        %v5467 = vpop.permute.xlu0 %5466
        %5468 = vrot.lane.b32.xlu0 %v5448, 64
        %v5469 = vpop.permute.xlu0 %5468
        %5470 = vrot.lane.b32.xlu0 %v5451, 64
        %v5471 = vpop.permute.xlu0 %5470
        %5472 = vrot.lane.b32.xlu0 %v5454, 64
        %v5473 = vpop.permute.xlu0 %5472
        %5474 = vrot.lane.b32.xlu0 %v5457, 64
        %v5475 = vpop.permute.xlu0 %5474
        %5476 = vrot.lane.b32.xlu0 %v5460, 64
        %v5477 = vpop.permute.xlu0 %5476
        %5478 = vrot.lane.b32.xlu0 %v5463, 64
        %v5479 = vpop.permute.xlu0 %5478
        %v5496 = vunpack.c.l.b16 %v5175
        %v5497 = vunpack.c.l.b16 %v5176
        %v5498 = vunpack.c.l.b16 %v5177
        %v5499 = vunpack.c.l.b16 %v5178
        %v5500 = vunpack.c.l.b16 %v5179
        %v5501 = vunpack.c.l.b16 %v5180
        %v5502 = vunpack.c.l.b16 %v5181
        %v5503 = vunpack.c.l.b16 %v5182
        %v5504 = vunpack.c.l.b16 %v5183
        %v5505 = vunpack.c.l.b16 %v5184
        %v5506 = vunpack.c.l.b16 %v5185
        %v5507 = vunpack.c.l.b16 %v5186
        %v5508 = vunpack.c.l.b16 %v5187
        %v5509 = vunpack.c.l.b16 %v5188
        %v5510 = vunpack.c.l.b16 %v5189
        %v5511 = vunpack.c.l.b16 %v5190
        %v5512 = vpack.c.b16 %v5497, %v5496
        %v5513 = vpack.c.b16 %v5499, %v5498
        %v5514 = vpack.c.b16 %v5501, %v5500
        %v5515 = vpack.c.b16 %v5503, %v5502
        %v5516 = vpack.c.b16 %v5505, %v5504
        %v5517 = vpack.c.b16 %v5507, %v5506
        %v5518 = vpack.c.b16 %v5509, %v5508
        %v5519 = vpack.c.b16 %v5511, %v5510
        %5520 = vrot.lane.b32.xlu0 %v5512, 96
        %v5521 = vpop.permute.xlu0 %5520
        %5522 = vrot.lane.b32.xlu0 %v5513, 96
        %v5523 = vpop.permute.xlu0 %5522
        %5524 = vrot.lane.b32.xlu0 %v5514, 96
        %v5525 = vpop.permute.xlu0 %5524
        %5526 = vrot.lane.b32.xlu0 %v5515, 96
        %v5527 = vpop.permute.xlu0 %5526
        %5528 = vrot.lane.b32.xlu0 %v5516, 96
        %v5529 = vpop.permute.xlu0 %5528
        %5530 = vrot.lane.b32.xlu0 %v5517, 96
        %v5531 = vpop.permute.xlu0 %5530
        %5532 = vrot.lane.b32.xlu0 %v5518, 96
        %v5533 = vpop.permute.xlu0 %5532
        %5534 = vrot.lane.b32.xlu0 %v5519, 96
        %v5535 = vpop.permute.xlu0 %5534
        %v5544 = vunpack.c.l.b16 %v5191
        %v5545 = vunpack.c.l.b16 %v5192
        %v5546 = vunpack.c.l.b16 %v5193
        %v5547 = vunpack.c.l.b16 %v5194
        %v5548 = vunpack.c.l.b16 %v5195
        %v5549 = vunpack.c.l.b16 %v5196
        %v5550 = vunpack.c.l.b16 %v5197
        %v5551 = vunpack.c.l.b16 %v5198
        %v5552 = vpack.c.b16 %v5544, %v5544
        %v5553 = vpack.c.b16 %v5545, %v5545
        %v5554 = vpack.c.b16 %v5546, %v5546
        %v5555 = vpack.c.b16 %v5547, %v5547
        %v5556 = vpack.c.b16 %v5548, %v5548
        %v5557 = vpack.c.b16 %v5549, %v5549
        %v5558 = vpack.c.b16 %v5550, %v5550
        %v5559 = vpack.c.b16 %v5551, %v5551
        %v5561 = vshrl.u32 %v5512, 16
        %v5563 = vshll.u32 %v5512, 16
        %v5565 = vrot.slane %v5563, 1
        %v5566 = vor.u32 %v5561, %v5565
        %v5568 = vshll.u32 %v5552, 16
        %v5570 = vrot.slane %v5568, 1
        %v5571 = vsel %vm498, %v5566, %v5570
        %v5573 = vshrl.u32 %v5513, 16
        %v5575 = vshll.u32 %v5513, 16
        %v5577 = vrot.slane %v5575, 1
        %v5578 = vor.u32 %v5573, %v5577
        %v5580 = vshll.u32 %v5553, 16
        %v5582 = vrot.slane %v5580, 1
        %v5583 = vsel %vm498, %v5578, %v5582
        %v5585 = vshrl.u32 %v5514, 16
        %v5587 = vshll.u32 %v5514, 16
        %v5589 = vrot.slane %v5587, 1
        %v5590 = vor.u32 %v5585, %v5589
        %v5592 = vshll.u32 %v5554, 16
        %v5594 = vrot.slane %v5592, 1
        %v5595 = vsel %vm498, %v5590, %v5594
        %v5597 = vshrl.u32 %v5515, 16
        %v5599 = vshll.u32 %v5515, 16
        %v5601 = vrot.slane %v5599, 1
        %v5602 = vor.u32 %v5597, %v5601
        %v5604 = vshll.u32 %v5555, 16
        %v5606 = vrot.slane %v5604, 1
        %v5607 = vsel %vm498, %v5602, %v5606
        %v5609 = vshrl.u32 %v5516, 16
        %v5611 = vshll.u32 %v5516, 16
        %v5613 = vrot.slane %v5611, 1
        %v5614 = vor.u32 %v5609, %v5613
        %v5616 = vshll.u32 %v5556, 16
        %v5618 = vrot.slane %v5616, 1
        %v5619 = vsel %vm498, %v5614, %v5618
        %v5621 = vshrl.u32 %v5517, 16
        %v5623 = vshll.u32 %v5517, 16
        %v5625 = vrot.slane %v5623, 1
        %v5626 = vor.u32 %v5621, %v5625
        %v5628 = vshll.u32 %v5557, 16
        %v5630 = vrot.slane %v5628, 1
        %v5631 = vsel %vm498, %v5626, %v5630
        %v5633 = vshrl.u32 %v5518, 16
        %v5635 = vshll.u32 %v5518, 16
        %v5637 = vrot.slane %v5635, 1
        %v5638 = vor.u32 %v5633, %v5637
        %v5640 = vshll.u32 %v5558, 16
        %v5642 = vrot.slane %v5640, 1
        %v5643 = vsel %vm498, %v5638, %v5642
        %v5645 = vshrl.u32 %v5519, 16
        %v5647 = vshll.u32 %v5519, 16
        %v5649 = vrot.slane %v5647, 1
        %v5650 = vor.u32 %v5645, %v5649
        %v5652 = vshll.u32 %v5559, 16
        %v5654 = vrot.slane %v5652, 1
        %v5655 = vsel %vm498, %v5650, %v5654
        %v5664 = vunpack.c.l.b16 %v5199
        %v5665 = vunpack.c.l.b16 %v5200
        %v5666 = vunpack.c.l.b16 %v5201
        %v5667 = vunpack.c.l.b16 %v5202
        %v5668 = vunpack.c.l.b16 %v5203
        %v5669 = vunpack.c.l.b16 %v5204
        %v5670 = vunpack.c.l.b16 %v5205
        %v5671 = vunpack.c.l.b16 %v5206
        %v5672 = vpack.c.b16 %v5497, %v5664
        %v5673 = vpack.c.b16 %v5499, %v5665
        %v5674 = vpack.c.b16 %v5501, %v5666
        %v5675 = vpack.c.b16 %v5503, %v5667
        %v5676 = vpack.c.b16 %v5505, %v5668
        %v5677 = vpack.c.b16 %v5507, %v5669
        %v5678 = vpack.c.b16 %v5509, %v5670
        %v5679 = vpack.c.b16 %v5511, %v5671
        %v5680 = vrot.slane %v5672, 1
        %v5681 = vrot.slane %v5552, 1
        %v5682 = vsel %vm719, %v5680, %v5681
        %v5683 = vrot.slane %v5673, 1
        %v5684 = vrot.slane %v5553, 1
        %v5685 = vsel %vm719, %v5683, %v5684
        %v5686 = vrot.slane %v5674, 1
        %v5687 = vrot.slane %v5554, 1
        %v5688 = vsel %vm719, %v5686, %v5687
        %v5689 = vrot.slane %v5675, 1
        %v5690 = vrot.slane %v5555, 1
        %v5691 = vsel %vm719, %v5689, %v5690
        %v5692 = vrot.slane %v5676, 1
        %v5693 = vrot.slane %v5556, 1
        %v5694 = vsel %vm719, %v5692, %v5693
        %v5695 = vrot.slane %v5677, 1
        %v5696 = vrot.slane %v5557, 1
        %v5697 = vsel %vm719, %v5695, %v5696
        %v5698 = vrot.slane %v5678, 1
        %v5699 = vrot.slane %v5558, 1
        %v5700 = vsel %vm719, %v5698, %v5699
        %v5701 = vrot.slane %v5679, 1
        %v5702 = vrot.slane %v5559, 1
        %v5703 = vsel %vm719, %v5701, %v5702
        %5704 = vrot.lane.b32.xlu0 %v5682, 32
        %v5705 = vpop.permute.xlu0 %5704
        %5706 = vrot.lane.b32.xlu0 %v5685, 32
        %v5707 = vpop.permute.xlu0 %5706
        %5708 = vrot.lane.b32.xlu0 %v5688, 32
        %v5709 = vpop.permute.xlu0 %5708
        %5710 = vrot.lane.b32.xlu0 %v5691, 32
        %v5711 = vpop.permute.xlu0 %5710
        %5712 = vrot.lane.b32.xlu0 %v5694, 32
        %v5713 = vpop.permute.xlu0 %5712
        %5714 = vrot.lane.b32.xlu0 %v5697, 32
        %v5715 = vpop.permute.xlu0 %5714
        %5716 = vrot.lane.b32.xlu0 %v5700, 32
        %v5717 = vpop.permute.xlu0 %5716
        %5718 = vrot.lane.b32.xlu0 %v5703, 32
        %v5719 = vpop.permute.xlu0 %5718
        %v5736 = vunpack.c.l.b16 %v5208
        %v5737 = vunpack.c.l.b16 %v5209
        %v5738 = vunpack.c.l.b16 %v5210
        %v5739 = vunpack.c.l.b16 %v5211
        %v5740 = vunpack.c.l.b16 %v5212
        %v5741 = vunpack.c.l.b16 %v5213
        %v5742 = vunpack.c.l.b16 %v5214
        %v5743 = vunpack.c.l.b16 %v5215
        %v5744 = vunpack.c.l.b16 %v5216
        %v5745 = vunpack.c.l.b16 %v5217
        %v5746 = vunpack.c.l.b16 %v5218
        %v5747 = vunpack.c.l.b16 %v5219
        %v5748 = vunpack.c.l.b16 %v5220
        %v5749 = vunpack.c.l.b16 %v5221
        %v5750 = vunpack.c.l.b16 %v5222
        %v5751 = vunpack.c.l.b16 %v5223
        %v5752 = vpack.c.b16 %v5737, %v5736
        %v5753 = vpack.c.b16 %v5739, %v5738
        %v5754 = vpack.c.b16 %v5741, %v5740
        %v5755 = vpack.c.b16 %v5743, %v5742
        %v5756 = vpack.c.b16 %v5745, %v5744
        %v5757 = vpack.c.b16 %v5747, %v5746
        %v5758 = vpack.c.b16 %v5749, %v5748
        %v5759 = vpack.c.b16 %v5751, %v5750
        %5760 = vrot.lane.b32.xlu0 %v5752, 64
        %v5761 = vpop.permute.xlu0 %5760
        %5762 = vrot.lane.b32.xlu0 %v5753, 64
        %v5763 = vpop.permute.xlu0 %5762
        %5764 = vrot.lane.b32.xlu0 %v5754, 64
        %v5765 = vpop.permute.xlu0 %5764
        %5766 = vrot.lane.b32.xlu0 %v5755, 64
        %v5767 = vpop.permute.xlu0 %5766
        %5768 = vrot.lane.b32.xlu0 %v5756, 64
        %v5769 = vpop.permute.xlu0 %5768
        %5770 = vrot.lane.b32.xlu0 %v5757, 64
        %v5771 = vpop.permute.xlu0 %5770
        %5772 = vrot.lane.b32.xlu0 %v5758, 64
        %v5773 = vpop.permute.xlu0 %5772
        %5774 = vrot.lane.b32.xlu0 %v5759, 64
        %v5775 = vpop.permute.xlu0 %5774
        %v5784 = vunpack.c.l.b16 %v5224
        %v5785 = vunpack.c.l.b16 %v5225
        %v5786 = vunpack.c.l.b16 %v5226
        %v5787 = vunpack.c.l.b16 %v5227
        %v5788 = vunpack.c.l.b16 %v5228
        %v5789 = vunpack.c.l.b16 %v5229
        %v5790 = vunpack.c.l.b16 %v5230
        %v5791 = vunpack.c.l.b16 %v5231
        %v5792 = vpack.c.b16 %v5784, %v5784
        %v5793 = vpack.c.b16 %v5785, %v5785
        %v5794 = vpack.c.b16 %v5786, %v5786
        %v5795 = vpack.c.b16 %v5787, %v5787
        %v5796 = vpack.c.b16 %v5788, %v5788
        %v5797 = vpack.c.b16 %v5789, %v5789
        %v5798 = vpack.c.b16 %v5790, %v5790
        %v5799 = vpack.c.b16 %v5791, %v5791
        %v5801 = vshrl.u32 %v5752, 16
        %v5803 = vshll.u32 %v5752, 16
        %v5805 = vrot.slane %v5803, 1
        %v5806 = vor.u32 %v5801, %v5805
        %v5808 = vshll.u32 %v5792, 16
        %v5810 = vrot.slane %v5808, 1
        %v5811 = vsel %vm498, %v5806, %v5810
        %v5813 = vshrl.u32 %v5753, 16
        %v5815 = vshll.u32 %v5753, 16
        %v5817 = vrot.slane %v5815, 1
        %v5818 = vor.u32 %v5813, %v5817
        %v5820 = vshll.u32 %v5793, 16
        %v5822 = vrot.slane %v5820, 1
        %v5823 = vsel %vm498, %v5818, %v5822
        %v5825 = vshrl.u32 %v5754, 16
        %v5827 = vshll.u32 %v5754, 16
        %v5829 = vrot.slane %v5827, 1
        %v5830 = vor.u32 %v5825, %v5829
        %v5832 = vshll.u32 %v5794, 16
        %v5834 = vrot.slane %v5832, 1
        %v5835 = vsel %vm498, %v5830, %v5834
        %v5837 = vshrl.u32 %v5755, 16
        %v5839 = vshll.u32 %v5755, 16
        %v5841 = vrot.slane %v5839, 1
        %v5842 = vor.u32 %v5837, %v5841
        %v5844 = vshll.u32 %v5795, 16
        %v5846 = vrot.slane %v5844, 1
        %v5847 = vsel %vm498, %v5842, %v5846
        %v5849 = vshrl.u32 %v5756, 16
        %v5851 = vshll.u32 %v5756, 16
        %v5853 = vrot.slane %v5851, 1
        %v5854 = vor.u32 %v5849, %v5853
        %v5856 = vshll.u32 %v5796, 16
        %v5858 = vrot.slane %v5856, 1
        %v5859 = vsel %vm498, %v5854, %v5858
        %v5861 = vshrl.u32 %v5757, 16
        %v5863 = vshll.u32 %v5757, 16
        %v5865 = vrot.slane %v5863, 1
        %v5866 = vor.u32 %v5861, %v5865
        %v5868 = vshll.u32 %v5797, 16
        %v5870 = vrot.slane %v5868, 1
        %v5871 = vsel %vm498, %v5866, %v5870
        %v5873 = vshrl.u32 %v5758, 16
        %v5875 = vshll.u32 %v5758, 16
        %v5877 = vrot.slane %v5875, 1
        %v5878 = vor.u32 %v5873, %v5877
        %v5880 = vshll.u32 %v5798, 16
        %v5882 = vrot.slane %v5880, 1
        %v5883 = vsel %vm498, %v5878, %v5882
        %v5885 = vshrl.u32 %v5759, 16
        %v5887 = vshll.u32 %v5759, 16
        %v5889 = vrot.slane %v5887, 1
        %v5890 = vor.u32 %v5885, %v5889
        %v5892 = vshll.u32 %v5799, 16
        %v5894 = vrot.slane %v5892, 1
        %v5895 = vsel %vm498, %v5890, %v5894
        %5896 = vrot.lane.b32.xlu0 %v5811, 96
        %v5897 = vpop.permute.xlu0 %5896
        %5898 = vrot.lane.b32.xlu0 %v5823, 96
        %v5899 = vpop.permute.xlu0 %5898
        %5900 = vrot.lane.b32.xlu0 %v5835, 96
        %v5901 = vpop.permute.xlu0 %5900
        %5902 = vrot.lane.b32.xlu0 %v5847, 96
        %v5903 = vpop.permute.xlu0 %5902
        %5904 = vrot.lane.b32.xlu0 %v5859, 96
        %v5905 = vpop.permute.xlu0 %5904
        %5906 = vrot.lane.b32.xlu0 %v5871, 96
        %v5907 = vpop.permute.xlu0 %5906
        %5908 = vrot.lane.b32.xlu0 %v5883, 96
        %v5909 = vpop.permute.xlu0 %5908
        %5910 = vrot.lane.b32.xlu0 %v5895, 96
        %v5911 = vpop.permute.xlu0 %5910
        %v5920 = vunpack.c.l.b16 %v5232
        %v5921 = vunpack.c.l.b16 %v5233
        %v5922 = vunpack.c.l.b16 %v5234
        %v5923 = vunpack.c.l.b16 %v5235
        %v5924 = vunpack.c.l.b16 %v5236
        %v5925 = vunpack.c.l.b16 %v5237
        %v5926 = vunpack.c.l.b16 %v5238
        %v5927 = vunpack.c.l.b16 %v5239
        %v5928 = vpack.c.b16 %v5737, %v5920
        %v5929 = vpack.c.b16 %v5739, %v5921
        %v5930 = vpack.c.b16 %v5741, %v5922
        %v5931 = vpack.c.b16 %v5743, %v5923
        %v5932 = vpack.c.b16 %v5745, %v5924
        %v5933 = vpack.c.b16 %v5747, %v5925
        %v5934 = vpack.c.b16 %v5749, %v5926
        %v5935 = vpack.c.b16 %v5751, %v5927
        %v5936 = vrot.slane %v5928, 1
        %v5937 = vrot.slane %v5792, 1
        %v5938 = vsel %vm719, %v5936, %v5937
        %v5939 = vrot.slane %v5929, 1
        %v5940 = vrot.slane %v5793, 1
        %v5941 = vsel %vm719, %v5939, %v5940
        %v5942 = vrot.slane %v5930, 1
        %v5943 = vrot.slane %v5794, 1
        %v5944 = vsel %vm719, %v5942, %v5943
        %v5945 = vrot.slane %v5931, 1
        %v5946 = vrot.slane %v5795, 1
        %v5947 = vsel %vm719, %v5945, %v5946
        %v5948 = vrot.slane %v5932, 1
        %v5949 = vrot.slane %v5796, 1
        %v5950 = vsel %vm719, %v5948, %v5949
        %v5951 = vrot.slane %v5933, 1
        %v5952 = vrot.slane %v5797, 1
        %v5953 = vsel %vm719, %v5951, %v5952
        %v5954 = vrot.slane %v5934, 1
        %v5955 = vrot.slane %v5798, 1
        %v5956 = vsel %vm719, %v5954, %v5955
        %v5957 = vrot.slane %v5935, 1
        %v5958 = vrot.slane %v5799, 1
        %v5959 = vsel %vm719, %v5957, %v5958
        %v5961 = vsel %vm1590, %v5272, %v5401
        %v5963 = vsel %vm1590, %v5273, %v5403
        %v5965 = vsel %vm1590, %v5274, %v5405
        %v5967 = vsel %vm1590, %v5275, %v5407
        %v5969 = vsel %vm1590, %v5276, %v5409
        %v5971 = vsel %vm1590, %v5277, %v5411
        %v5973 = vsel %vm1590, %v5278, %v5413
        %v5975 = vsel %vm1590, %v5279, %v5415
        %v5977 = vsel %vm1641, %v5961, %v5465
        %v5979 = vsel %vm1641, %v5963, %v5467
        %v5981 = vsel %vm1641, %v5965, %v5469
        %v5983 = vsel %vm1641, %v5967, %v5471
        %v5985 = vsel %vm1641, %v5969, %v5473
        %v5987 = vsel %vm1641, %v5971, %v5475
        %v5989 = vsel %vm1641, %v5973, %v5477
        %v5991 = vsel %vm1641, %v5975, %v5479
        %v5993 = vsel %vm1682, %v5977, %v5521
        %v5996 = vsel %vm1682, %v5979, %v5523
        %v5999 = vsel %vm1682, %v5981, %v5525
        %v6002 = vsel %vm1682, %v5983, %v5527
        %v6005 = vsel %vm1682, %v5985, %v5529
        %v6008 = vsel %vm1682, %v5987, %v5531
        %v6011 = vsel %vm1682, %v5989, %v5533
        %v6014 = vsel %vm1682, %v5991, %v5535
        %v6018 = vsel %vm1590, %v5571, %v5705
        %v6021 = vsel %vm1590, %v5583, %v5707
        %v6024 = vsel %vm1590, %v5595, %v5709
        %v6027 = vsel %vm1590, %v5607, %v5711
        %v6030 = vsel %vm1590, %v5619, %v5713
        %v6033 = vsel %vm1590, %v5631, %v5715
        %v6036 = vsel %vm1590, %v5643, %v5717
        %v6039 = vsel %vm1590, %v5655, %v5719
        %v6041 = vsel %vm1641, %v6018, %v5761
        %v6043 = vsel %vm1641, %v6021, %v5763
        %v6045 = vsel %vm1641, %v6024, %v5765
        %v6047 = vsel %vm1641, %v6027, %v5767
        %v6049 = vsel %vm1641, %v6030, %v5769
        %v6051 = vsel %vm1641, %v6033, %v5771
        %v6053 = vsel %vm1641, %v6036, %v5773
        %v6055 = vsel %vm1641, %v6039, %v5775
        %v6057 = vsel %vm1682, %v6041, %v5897
        %v6060 = vsel %vm1682, %v6043, %v5899
        %v6063 = vsel %vm1682, %v6045, %v5901
        %v6066 = vsel %vm1682, %v6047, %v5903
        %v6069 = vsel %vm1682, %v6049, %v5905
        %v6072 = vsel %vm1682, %v6051, %v5907
        %v6075 = vsel %vm1682, %v6053, %v5909
        %v6078 = vsel %vm1682, %v6055, %v5911
        %v6080 = vld [vmem:[%s3] sm:$0xf]
        %v6081 = vld [vmem:[%s3 + $0x4] sm:$0xf]
        %v6082 = vld [vmem:[%s3 + $0x8] sm:$0xf]
        %v6083 = vld [vmem:[%s3 + $0xc] sm:$0xf]
        %v6084 = vld [vmem:[%s3 + $0x10] sm:$0xf]
        %v6085 = vld [vmem:[%s3 + $0x14] sm:$0xf]
        %v6086 = vld [vmem:[%s3 + $0x18] sm:$0xf]
        %v6087 = vld [vmem:[%s3 + $0x1c] sm:$0xf]
        %v6088 = vld [vmem:[%s3 + $0x20] sm:$0xf]
        %v6089 = vld [vmem:[%s3 + $0x24] sm:$0xf]
        %v6090 = vld [vmem:[%s3 + $0x28] sm:$0xf]
        %v6091 = vld [vmem:[%s3 + $0x2c] sm:$0xf]
        %v6092 = vld [vmem:[%s3 + $0x30] sm:$0xf]
        %v6093 = vld [vmem:[%s3 + $0x34] sm:$0xf]
        %v6094 = vld [vmem:[%s3 + $0x38] sm:$0xf]
        %v6095 = vld [vmem:[%s3 + $0x3c] sm:$0xf]
        %v6096 = vld [vmem:[%s3 + $0x40] sm:$0xf]
        %v6097 = vld [vmem:[%s3 + $0x44] sm:$0xf]
        %v6098 = vld [vmem:[%s3 + $0x48] sm:$0xf]
        %v6099 = vld [vmem:[%s3 + $0x4c] sm:$0xf]
        %v6100 = vld [vmem:[%s3 + $0x50] sm:$0xf]
        %v6101 = vld [vmem:[%s3 + $0x54] sm:$0xf]
        %v6102 = vld [vmem:[%s3 + $0x58] sm:$0xf]
        %v6103 = vld [vmem:[%s3 + $0x5c] sm:$0xf]
        %v6104 = vld [vmem:[%s3 + $0x60] sm:$0xf]
        %v6105 = vld [vmem:[%s3 + $0x64] sm:$0xf]
        %v6106 = vld [vmem:[%s3 + $0x68] sm:$0xf]
        %v6107 = vld [vmem:[%s3 + $0x6c] sm:$0xf]
        %v6108 = vld [vmem:[%s3 + $0x70] sm:$0xf]
        %v6109 = vld [vmem:[%s3 + $0x74] sm:$0xf]
        %v6110 = vld [vmem:[%s3 + $0x78] sm:$0xf]
        %v6111 = vld [vmem:[%s3 + $0x7c] sm:$0xf]
        %v6112 = vld [vmem:[%s3 + $0x80] sm:$0xf]
        %v6113 = vld [vmem:[%s3 + $0x84] sm:$0xf]
        %v6114 = vld [vmem:[%s3 + $0x88] sm:$0xf]
        %v6115 = vld [vmem:[%s3 + $0x8c] sm:$0xf]
        %v6116 = vld [vmem:[%s4] sm:$0x1]
        %v6118 = vlaneseq
        %v6119 = vshrl.u32 %v6118, 7
        %v6120 = vsub.s32 0, %v6119
        %v6121 = vrot.slane %v6116, %v6120
        %v6159 = vunpack.c.l.b16 %v6080
        %v6160 = vunpack.c.l.b16 %v6081
        %v6161 = vunpack.c.l.b16 %v6082
        %v6162 = vunpack.c.l.b16 %v6083
        %v6163 = vunpack.c.l.b16 %v6084
        %v6164 = vunpack.c.l.b16 %v6085
        %v6165 = vunpack.c.l.b16 %v6086
        %v6166 = vunpack.c.l.b16 %v6087
        %v6167 = vunpack.c.l.b16 %v6088
        %v6168 = vunpack.c.l.b16 %v6089
        %v6169 = vunpack.c.l.b16 %v6090
        %v6170 = vunpack.c.l.b16 %v6091
        %v6171 = vunpack.c.l.b16 %v6092
        %v6172 = vunpack.c.l.b16 %v6093
        %v6173 = vunpack.c.l.b16 %v6094
        %v6174 = vunpack.c.l.b16 %v6095
        %v6175 = vunpack.c.l.b16 %v6096
        %v6176 = vunpack.c.l.b16 %v6097
        %v6177 = vunpack.c.l.b16 %v6098
        %v6178 = vunpack.c.l.b16 %v6099
        %v6179 = vunpack.c.l.b16 %v6100
        %v6180 = vunpack.c.l.b16 %v6101
        %v6181 = vunpack.c.l.b16 %v6102
        %v6182 = vunpack.c.l.b16 %v6103
        %v6183 = vunpack.c.l.b16 %v6104
        %v6184 = vunpack.c.l.b16 %v6105
        %v6185 = vunpack.c.l.b16 %v6106
        %v6186 = vunpack.c.l.b16 %v6107
        %v6187 = vunpack.c.l.b16 %v6108
        %v6188 = vunpack.c.l.b16 %v6109
        %v6189 = vunpack.c.l.b16 %v6110
        %v6190 = vunpack.c.l.b16 %v6111
        %v6191 = vunpack.c.l.b16 %v6112
        %v6192 = vunpack.c.l.b16 %v6113
        %v6193 = vunpack.c.l.b16 %v6114
        %v6194 = vunpack.c.l.b16 %v6115
        %v6195 = vpack.c.b16 %v6160, %v6159
        %v6196 = vpack.c.b16 %v6162, %v6161
        %v6197 = vpack.c.b16 %v6164, %v6163
        %v6198 = vpack.c.b16 %v6166, %v6165
        %v6199 = vpack.c.b16 %v6168, %v6167
        %v6200 = vpack.c.b16 %v6170, %v6169
        %v6201 = vpack.c.b16 %v6172, %v6171
        %v6202 = vpack.c.b16 %v6174, %v6173
        %v6203 = vpack.c.b16 %v6176, %v6175
        %v6204 = vpack.c.b16 %v6178, %v6177
        %v6205 = vpack.c.b16 %v6180, %v6179
        %v6206 = vpack.c.b16 %v6182, %v6181
        %v6207 = vpack.c.b16 %v6184, %v6183
        %v6208 = vpack.c.b16 %v6186, %v6185
        %v6209 = vpack.c.b16 %v6188, %v6187
        %v6210 = vpack.c.b16 %v6190, %v6189
        %v6211 = vpack.c.b16 %v6192, %v6191
        %v6212 = vpack.c.b16 %v6194, %v6193
        %v6232 = vsel %vm1590, %v5938, 0
        %v6235 = vsel %vm1590, %v5941, 0
        %v6238 = vsel %vm1590, %v5944, 0
        %v6241 = vsel %vm1590, %v5947, 0
        %v6244 = vsel %vm1590, %v5950, 0
        %v6247 = vsel %vm1590, %v5953, 0
        %v6250 = vsel %vm1590, %v5956, 0
        %v6253 = vsel %vm1590, %v5959, 0
        %6255 = vmatprep.subr.bf16.mxu0 0
        %6256 = vmatpush1.bf16.msra.mxu0 %v6195
        %6257 = vmatprep.subr.bf16.mxu0 0
        %6258 = vmatpush1.bf16.msra.mxu0 %v6196
        %6259 = vmatprep.subr.bf16.mxu0 0
        %6260 = vmatpush1.bf16.msra.mxu0 %v6197
        %6261 = vmatprep.subr.bf16.mxu0 0
        %6262 = vmatpush1.bf16.msra.mxu0 %v6198
        %6263 = vmatprep.subr.bf16.mxu0 0
        %6264 = vmatpush1.bf16.msra.mxu0 %v6199
        %6265 = vmatprep.subr.bf16.mxu0 0
        %6266 = vmatpush1.bf16.msra.mxu0 %v6200
        %6267 = vmatprep.subr.bf16.mxu0 0
        %6268 = vmatpush1.bf16.msra.mxu0 %v6201
        %6269 = vmatprep.subr.bf16.mxu0 0
        %6270 = vmatpush1.bf16.msra.mxu0 %v6202
        %6271 = vmatprep.subr.bf16.mxu0 0
        %6272 = vmatpush1.bf16.msra.mxu0 %v6203
        %6273 = vmatprep.subr.bf16.mxu0 0
        %6274 = vmatpush1.bf16.msra.mxu0 %v6204
        %6275 = vmatprep.subr.bf16.mxu0 0
        %6276 = vmatpush1.bf16.msra.mxu0 %v6205
        %6277 = vmatprep.subr.bf16.mxu0 0
        %6278 = vmatpush1.bf16.msra.mxu0 %v6206
        %6279 = vmatprep.subr.bf16.mxu0 0
        %6280 = vmatpush1.bf16.msra.mxu0 %v6207
        %6281 = vmatprep.subr.bf16.mxu0 0
        %6282 = vmatpush1.bf16.msra.mxu0 %v6208
        %6283 = vmatprep.subr.bf16.mxu0 0
        %6284 = vmatpush1.bf16.msra.mxu0 %v6209
        %6285 = vmatprep.subr.bf16.mxu0 0
        %6286 = vmatpush1.bf16.msra.mxu0 %v6210
        %6287 = vmatprep.mubr.bf16.mxu0 %v6057
        %6288 = vmatmul.mubr.bf16.gmra.mrb[0].mxu0 %v5993
        %v6289 = vpop.f32.mrb[0].mxu0
        %v6290 = vadd.f32 %v6121, %v6289
        %v6291 = vpop.f32.mrb[0].mxu0
        %v6292 = vpop.f32.mrb[0].mxu0
        %v6293 = vadd.f32 %v6121, %v6292
        %v6294 = vpop.f32.mrb[0].mxu0
        %6295 = vmatprep.mubr.bf16.mxu0 %v6060
        %6296 = vmatmul.mubr.bf16.gmra.mrb[0].mxu0 %v5996
        %v6297 = vpop.f32.mrb[0].mxu0
        %v6298 = vadd.f32 %v6121, %v6297
        %v6299 = vpop.f32.mrb[0].mxu0
        %v6300 = vpop.f32.mrb[0].mxu0
        %v6301 = vadd.f32 %v6121, %v6300
        %v6302 = vpop.f32.mrb[0].mxu0
        %6303 = vmatprep.mubr.bf16.mxu0 %v6063
        %6304 = vmatmul.mubr.bf16.gmra.mrb[0].mxu0 %v5999
        %v6305 = vpop.f32.mrb[0].mxu0
        %v6306 = vadd.f32 %v6121, %v6305
        %v6307 = vpop.f32.mrb[0].mxu0
        %v6308 = vpop.f32.mrb[0].mxu0
        %v6309 = vadd.f32 %v6121, %v6308
        %v6310 = vpop.f32.mrb[0].mxu0
        %6311 = vmatprep.mubr.bf16.mxu0 %v6066
        %6312 = vmatmul.mubr.bf16.gmra.mrb[0].mxu0 %v6002
        %v6313 = vpop.f32.mrb[0].mxu0
        %v6314 = vadd.f32 %v6121, %v6313
        %v6315 = vpop.f32.mrb[0].mxu0
        %v6316 = vpop.f32.mrb[0].mxu0
        %v6317 = vadd.f32 %v6121, %v6316
        %v6318 = vpop.f32.mrb[0].mxu0
        %6319 = vmatprep.mubr.bf16.mxu0 %v6069
        %6320 = vmatmul.mubr.bf16.gmra.mrb[0].mxu0 %v6005
        %v6321 = vpop.f32.mrb[0].mxu0
        %v6322 = vadd.f32 %v6121, %v6321
        %v6323 = vpop.f32.mrb[0].mxu0
        %v6324 = vpop.f32.mrb[0].mxu0
        %v6325 = vadd.f32 %v6121, %v6324
        %v6326 = vpop.f32.mrb[0].mxu0
        %6327 = vmatprep.mubr.bf16.mxu0 %v6072
        %6328 = vmatmul.mubr.bf16.gmra.mrb[0].mxu0 %v6008
        %v6329 = vpop.f32.mrb[0].mxu0
        %v6330 = vadd.f32 %v6121, %v6329
        %v6331 = vpop.f32.mrb[0].mxu0
        %v6332 = vpop.f32.mrb[0].mxu0
        %v6333 = vadd.f32 %v6121, %v6332
        %v6334 = vpop.f32.mrb[0].mxu0
        %6335 = vmatprep.mubr.bf16.mxu0 %v6075
        %6336 = vmatmul.mubr.bf16.gmra.mrb[0].mxu0 %v6011
        %v6337 = vpop.f32.mrb[0].mxu0
        %v6338 = vadd.f32 %v6121, %v6337
        %v6339 = vpop.f32.mrb[0].mxu0
        %v6340 = vpop.f32.mrb[0].mxu0
        %v6341 = vadd.f32 %v6121, %v6340
        %v6342 = vpop.f32.mrb[0].mxu0
        %6343 = vmatprep.mubr.bf16.mxu0 %v6078
        %6344 = vmatmul.mubr.bf16.gmra.mrb[0].mxu0 %v6014
        %v6345 = vpop.f32.mrb[0].mxu0
        %v6346 = vadd.f32 %v6121, %v6345
        %v6347 = vpop.f32.mrb[0].mxu0
        %v6348 = vpop.f32.mrb[0].mxu0
        %v6349 = vadd.f32 %v6121, %v6348
        %v6350 = vpop.f32.mrb[0].mxu0
        %6351 = vdwg.mxu0
        %6352 = vmatprep.subr.bf16.mxu0 0
        %6353 = vmatpush1.bf16.msra.mxu0 %v6211
        %6354 = vmatprep.subr.bf16.mxu0 0
        %6355 = vmatpush1.bf16.msra.mxu0 %v6212
        %6356 = vmatprep.subr.bf16.mxu0 0
        %6357 = vmatpush1.bf16.msra.mxu0 0
        %6358 = vmatprep.subr.bf16.mxu0 0
        %6359 = vmatpush1.bf16.msra.mxu0 0
        %6360 = vmatprep.subr.bf16.mxu0 0
        %6361 = vmatpush1.bf16.msra.mxu0 0
        %6362 = vmatprep.subr.bf16.mxu0 0
        %6363 = vmatpush1.bf16.msra.mxu0 0
        %6364 = vmatprep.subr.bf16.mxu0 0
        %6365 = vmatpush1.bf16.msra.mxu0 0
        %6366 = vmatprep.subr.bf16.mxu0 0
        %6367 = vmatpush1.bf16.msra.mxu0 0
        %6368 = vmatprep.subr.bf16.mxu0 0
        %6369 = vmatpush1.bf16.msra.mxu0 0
        %6370 = vmatprep.subr.bf16.mxu0 0
        %6371 = vmatpush1.bf16.msra.mxu0 0
        %6372 = vmatprep.subr.bf16.mxu0 0
        %6373 = vmatpush1.bf16.msra.mxu0 0
        %6374 = vmatprep.subr.bf16.mxu0 0
        %6375 = vmatpush1.bf16.msra.mxu0 0
        %6376 = vmatprep.subr.bf16.mxu0 0
        %6377 = vmatpush1.bf16.msra.mxu0 0
        %6378 = vmatprep.subr.bf16.mxu0 0
        %6379 = vmatpush1.bf16.msra.mxu0 0
        %6380 = vmatprep.subr.bf16.mxu0 0
        %6381 = vmatpush1.bf16.msra.mxu0 0
        %6382 = vmatprep.subr.bf16.mxu0 0
        %6383 = vmatpush1.bf16.msra.mxu0 0
        %6384 = vmatprep.mubr.bf16.mxu0 0
        %6385 = vmatmul.mubr.bf16.gmra.mrb[0].mxu0 %v6232
        %v6386 = vpop.f32.mrb[0].mxu0
        %v6387 = vadd.f32 %v6290, %v6386
        %v6388 = vpop.f32.mrb[0].mxu0
        %v6389 = vpop.f32.mrb[0].mxu0
        %v6390 = vadd.f32 %v6293, %v6389
        %v6391 = vpop.f32.mrb[0].mxu0
        %6392 = vmatprep.mubr.bf16.mxu0 0
        %6393 = vmatmul.mubr.bf16.gmra.mrb[0].mxu0 %v6235
        %v6394 = vpop.f32.mrb[0].mxu0
        %v6395 = vadd.f32 %v6298, %v6394
        %v6396 = vpop.f32.mrb[0].mxu0
        %v6397 = vpop.f32.mrb[0].mxu0
        %v6398 = vadd.f32 %v6301, %v6397
        %v6399 = vpop.f32.mrb[0].mxu0
        %6400 = vmatprep.mubr.bf16.mxu0 0
        %6401 = vmatmul.mubr.bf16.gmra.mrb[0].mxu0 %v6238
        %v6402 = vpop.f32.mrb[0].mxu0
        %v6403 = vadd.f32 %v6306, %v6402
        %v6404 = vpop.f32.mrb[0].mxu0
        %v6405 = vpop.f32.mrb[0].mxu0
        %v6406 = vadd.f32 %v6309, %v6405
        %v6407 = vpop.f32.mrb[0].mxu0
        %6408 = vmatprep.mubr.bf16.mxu0 0
        %6409 = vmatmul.mubr.bf16.gmra.mrb[0].mxu0 %v6241
        %v6410 = vpop.f32.mrb[0].mxu0
        %v6411 = vadd.f32 %v6314, %v6410
        %v6412 = vpop.f32.mrb[0].mxu0
        %v6413 = vpop.f32.mrb[0].mxu0
        %v6414 = vadd.f32 %v6317, %v6413
        %v6415 = vpop.f32.mrb[0].mxu0
        %6416 = vmatprep.mubr.bf16.mxu0 0
        %6417 = vmatmul.mubr.bf16.gmra.mrb[0].mxu0 %v6244
        %v6418 = vpop.f32.mrb[0].mxu0
        %v6419 = vadd.f32 %v6322, %v6418
        %v6420 = vpop.f32.mrb[0].mxu0
        %v6421 = vpop.f32.mrb[0].mxu0
        %v6422 = vadd.f32 %v6325, %v6421
        %v6423 = vpop.f32.mrb[0].mxu0
        %6424 = vmatprep.mubr.bf16.mxu0 0
        %6425 = vmatmul.mubr.bf16.gmra.mrb[0].mxu0 %v6247
        %v6426 = vpop.f32.mrb[0].mxu0
        %v6427 = vadd.f32 %v6330, %v6426
        %v6428 = vpop.f32.mrb[0].mxu0
        %v6429 = vpop.f32.mrb[0].mxu0
        %v6430 = vadd.f32 %v6333, %v6429
        %v6431 = vpop.f32.mrb[0].mxu0
        %6432 = vmatprep.mubr.bf16.mxu0 0
        %6433 = vmatmul.mubr.bf16.gmra.mrb[0].mxu0 %v6250
        %v6434 = vpop.f32.mrb[0].mxu0
        %v6435 = vadd.f32 %v6338, %v6434
        %v6436 = vpop.f32.mrb[0].mxu0
        %v6437 = vpop.f32.mrb[0].mxu0
        %v6438 = vadd.f32 %v6341, %v6437
        %v6439 = vpop.f32.mrb[0].mxu0
        %6440 = vmatprep.mubr.bf16.mxu0 0
        %6441 = vmatmul.mubr.bf16.gmra.mrb[0].mxu0 %v6253
        %v6442 = vpop.f32.mrb[0].mxu0
        %v6443 = vadd.f32 %v6346, %v6442
        %v6444 = vpop.f32.mrb[0].mxu0
        %v6445 = vpop.f32.mrb[0].mxu0
        %v6446 = vadd.f32 %v6349, %v6445
        %v6447 = vpop.f32.mrb[0].mxu0
        %6448 = vdwg.mxu0
        %v6449 = vld [vmem:[%s337] sm:$0xe]
        %v6450 = vld [vmem:[%s337 + $0x4] sm:$0xf]
        %v6451 = vld [vmem:[%s337 + $0x8] sm:$0x1]
        %v6452 = vld [vmem:[%s337 + $0xc] sm:$0xe]
        %v6453 = vld [vmem:[%s337 + $0x10] sm:$0xf]
        %v6454 = vld [vmem:[%s337 + $0x14] sm:$0x1]
        %v6455 = vld [vmem:[%s337 + $0x18] sm:$0xe]
        %v6456 = vld [vmem:[%s337 + $0x1c] sm:$0xf]
        %v6457 = vld [vmem:[%s337 + $0x20] sm:$0x1]
        %v6458 = vld [vmem:[%s337 + $0x24] sm:$0xe]
        %v6459 = vld [vmem:[%s337 + $0x28] sm:$0xf]
        %v6460 = vld [vmem:[%s337 + $0x2c] sm:$0x1]
        %v6461 = vld [vmem:[%s337 + $0x30] sm:$0xe]
        %v6462 = vld [vmem:[%s337 + $0x34] sm:$0xf]
        %v6463 = vld [vmem:[%s337 + $0x38] sm:$0x1]
        %v6464 = vld [vmem:[%s337 + $0x3c] sm:$0xe]
        %v6465 = vld [vmem:[%s337 + $0x40] sm:$0xf]
        %v6466 = vld [vmem:[%s337 + $0x44] sm:$0x1]
        %v6467 = vld [vmem:[%s337 + $0x48] sm:$0xe]
        %v6468 = vld [vmem:[%s337 + $0x4c] sm:$0xf]
        %v6469 = vld [vmem:[%s337 + $0x50] sm:$0x1]
        %v6470 = vld [vmem:[%s337 + $0x54] sm:$0xe]
        %v6471 = vld [vmem:[%s337 + $0x58] sm:$0xf]
        %v6472 = vld [vmem:[%s337 + $0x5c] sm:$0x1]
        %vm6497 = vcmask 1042432
        %vm6498 = vcmask 1046532
        %vm6499 = vmor %vm6497, %vm6498
        %v6500 = vrot.slane %v6449, 5
        %v6501 = vrot.slane %v6500, 4
        %v6502 = vrot.slane %v6450, 5
        %v6503 = vsel %vm6499, %v6501, %v6502
        %v6504 = vrot.slane %v6502, 4
        %v6505 = vrot.slane %v6451, 5
        %v6506 = vsel %vm6499, %v6504, %v6505
        %v6507 = vrot.slane %v6452, 5
        %v6508 = vrot.slane %v6507, 4
        %v6509 = vrot.slane %v6453, 5
        %v6510 = vsel %vm6499, %v6508, %v6509
        %v6511 = vrot.slane %v6509, 4
        %v6512 = vrot.slane %v6454, 5
        %v6513 = vsel %vm6499, %v6511, %v6512
        %v6514 = vrot.slane %v6455, 5
        %v6515 = vrot.slane %v6514, 4
        %v6516 = vrot.slane %v6456, 5
        %v6517 = vsel %vm6499, %v6515, %v6516
        %v6518 = vrot.slane %v6516, 4
        %v6519 = vrot.slane %v6457, 5
        %v6520 = vsel %vm6499, %v6518, %v6519
        %v6521 = vrot.slane %v6458, 5
        %v6522 = vrot.slane %v6521, 4
        %v6523 = vrot.slane %v6459, 5
        %v6524 = vsel %vm6499, %v6522, %v6523
        %v6525 = vrot.slane %v6523, 4
        %v6526 = vrot.slane %v6460, 5
        %v6527 = vsel %vm6499, %v6525, %v6526
        %v6528 = vrot.slane %v6461, 5
        %v6529 = vrot.slane %v6528, 4
        %v6530 = vrot.slane %v6462, 5
        %v6531 = vsel %vm6499, %v6529, %v6530
        %v6532 = vrot.slane %v6530, 4
        %v6533 = vrot.slane %v6463, 5
        %v6534 = vsel %vm6499, %v6532, %v6533
        %v6535 = vrot.slane %v6464, 5
        %v6536 = vrot.slane %v6535, 4
        %v6537 = vrot.slane %v6465, 5
        %v6538 = vsel %vm6499, %v6536, %v6537
        %v6539 = vrot.slane %v6537, 4
        %v6540 = vrot.slane %v6466, 5
        %v6541 = vsel %vm6499, %v6539, %v6540
        %v6542 = vrot.slane %v6467, 5
        %v6543 = vrot.slane %v6542, 4
        %v6544 = vrot.slane %v6468, 5
        %v6545 = vsel %vm6499, %v6543, %v6544
        %v6546 = vrot.slane %v6544, 4
        %v6547 = vrot.slane %v6469, 5
        %v6548 = vsel %vm6499, %v6546, %v6547
        %v6549 = vrot.slane %v6470, 5
        %v6550 = vrot.slane %v6549, 4
        %v6551 = vrot.slane %v6471, 5
        %v6552 = vsel %vm6499, %v6550, %v6551
        %v6553 = vrot.slane %v6551, 4
        %v6554 = vrot.slane %v6472, 5
        %v6555 = vsel %vm6499, %v6553, %v6554
        %v6572 = vunpack.c.l.bf16 %v6503
        %v6573 = vunpack.c.l.bf16 %v6506
        %v6574 = vunpack.c.l.bf16 %v6510
        %v6575 = vunpack.c.l.bf16 %v6513
        %v6576 = vunpack.c.l.bf16 %v6517
        %v6577 = vunpack.c.l.bf16 %v6520
        %v6578 = vunpack.c.l.bf16 %v6524
        %v6579 = vunpack.c.l.bf16 %v6527
        %v6580 = vunpack.c.l.bf16 %v6531
        %v6581 = vunpack.c.l.bf16 %v6534
        %v6582 = vunpack.c.l.bf16 %v6538
        %v6583 = vunpack.c.l.bf16 %v6541
        %v6584 = vunpack.c.l.bf16 %v6545
        %v6585 = vunpack.c.l.bf16 %v6548
        %v6586 = vunpack.c.l.bf16 %v6552
        %v6587 = vunpack.c.l.bf16 %v6555
        %v6588 = vadd.f32 %v6387, %v6572
        %v6589 = vadd.f32 %v6390, %v6573
        %v6590 = vadd.f32 %v6395, %v6574
        %v6591 = vadd.f32 %v6398, %v6575
        %v6592 = vadd.f32 %v6403, %v6576
        %v6593 = vadd.f32 %v6406, %v6577
        %v6594 = vadd.f32 %v6411, %v6578
        %v6595 = vadd.f32 %v6414, %v6579
        %v6596 = vadd.f32 %v6419, %v6580
        %v6597 = vadd.f32 %v6422, %v6581
        %v6598 = vadd.f32 %v6427, %v6582
        %v6599 = vadd.f32 %v6430, %v6583
        %v6600 = vadd.f32 %v6435, %v6584
        %v6601 = vadd.f32 %v6438, %v6585
        %v6602 = vadd.f32 %v6443, %v6586
        %v6603 = vadd.f32 %v6446, %v6587
        %6604 = vst.msk [vmem:[%s217] sm:$0xff] %vm1590, %v6588
        %6605 = vst.msk [vmem:[%s217 + $0x8] sm:$0xff] %vm1590, %v6589
        %6606 = vst.msk [vmem:[%s217 + $0x10] sm:$0xff] %vm1590, %v6590
        %6607 = vst.msk [vmem:[%s217 + $0x18] sm:$0xff] %vm1590, %v6591
        %6608 = vst.msk [vmem:[%s217 + $0x20] sm:$0xff] %vm1590, %v6592
        %6609 = vst.msk [vmem:[%s217 + $0x28] sm:$0xff] %vm1590, %v6593
        %6610 = vst.msk [vmem:[%s217 + $0x30] sm:$0xff] %vm1590, %v6594
        %6611 = vst.msk [vmem:[%s217 + $0x38] sm:$0xff] %vm1590, %v6595
        %6612 = vst.msk [vmem:[%s217 + $0x40] sm:$0xff] %vm1590, %v6596
        %6613 = vst.msk [vmem:[%s217 + $0x48] sm:$0xff] %vm1590, %v6597
        %6614 = vst.msk [vmem:[%s217 + $0x50] sm:$0xff] %vm1590, %v6598
        %6615 = vst.msk [vmem:[%s217 + $0x58] sm:$0xff] %vm1590, %v6599
        %6616 = vst.msk [vmem:[%s217 + $0x60] sm:$0xff] %vm1590, %v6600
        %6617 = vst.msk [vmem:[%s217 + $0x68] sm:$0xff] %vm1590, %v6601
        %6618 = vst.msk [vmem:[%s217 + $0x70] sm:$0xff] %vm1590, %v6602
        %6619 = vst.msk [vmem:[%s217 + $0x78] sm:$0xff] %vm1590, %v6603
        %s6620 = sand.u32 %s137, 1
        %s6621 = scalar_lea.sflag [#allocation4], %s6620
        %s6622 = sand.u32 %s137, 1
        %s6623 = smul.addr %s6622, 128
        %s6624 = scalar_lea.vmem [#allocation3], %s6623
        // Predicated region
        $region41: #{_lambda_.1} parent=39 // pred_check
          %p6625 = pneg %p147
        $region42: #{_lambda_.1} parent=39 // pred_check_branch
          %6627 = sbr.rel (%p6625) target = $region44
        $region43: #{_lambda_.1} parent=39 // pred_region
          %s6629 = ssub.s32 2048, 2048
          %6630 = vsyncadd %s6621, %s6629
          %s6631 = smul.addr %s19, 16
          %s6632 = smul.addr %s6631, 128
          %s6633 = scalar_lea.hbm %s5, %s6632
          %s6634 = sshll.u32 %s6624, 4
          %s6635 = int_to_ptr.vmem [resolvable:$true] %s6634
          %6640 = dma.vmem_to_hbm [thread:$0]  %s6635, 2048, %s6633, %s6621, 128, 128, 8
        $region44: #{_lambda_.1} parent=39 // pred_fallthru
          _
      $region40: #{_lambda_.1} parent=5 // pred_fallthru
        _
      %p6641 = scmp.le.s32.totalorder 2, %s14
      // Predicated region
      $region45: #{_lambda_.1} parent=5 // pred_check
        %p6642 = pneg %p6641
      $region46: #{_lambda_.1} parent=5 // pred_check_branch
        %6644 = sbr.rel (%p6642) target = $region48
      $region47: #{_lambda_.1} parent=5 // pred_region
        %s6645 = ssub.s32 %s14, 2
        // Predicated region
        $region49: #{_lambda_.1} parent=47 // pred_check
          %p6646 = pneg %p153
        $region50: #{_lambda_.1} parent=47 // pred_check_branch
          %6648 = sbr.rel (%p6646) target = $region52
        $region51: #{_lambda_.1} parent=47 // pred_region
          %s6649 = sand.u32 %s138, 1
          %s6650 = scalar_lea.sflag [#allocation4], %s6649
          %s6651 = sand.u32 %s138, 1
          %s6652 = smul.addr %s6651, 128
          %s6653 = scalar_lea.vmem [#allocation3], %s6652
          %6654 = dma.done %s6650, 2048
        $region52: #{_lambda_.1} parent=47 // pred_fallthru
          _
      $region48: #{_lambda_.1} parent=5 // pred_fallthru
        _
    $region6: #{_lambda_.1} parent=1 // loop_footer
      %s18 = sadd.s32 1, %s14
    $region7: #{_lambda_.1} parent=1 // loop_footer_branch
      %13 = sbr.rel target = $region3
    $region8: #{_lambda_.1} parent=1 // loop_exit
      _
    %6655 = vsyncpa [#allocation4], 1
    %s6656 = scalar_lea.sflag [#allocation4], 1
    %6657 = vsyncpa %s6656, 1

</llo_original>
